<compile_context>
chip_gen: v5e
topology: v5e:2x2
jax: 0.10.0
libtpu: 0.0.40
codegen_flags: <defaults>
</compile_context>

<pallas_src>
import functools
import math

import jax
import jax.numpy as jnp
from jax import lax
from jax.experimental import pallas as pl
from jax.experimental.pallas import tpu as pltpu


_LANE = 128        # lane width / MXU-friendly padding target
_ROW_TILE = 256    # internal row tile (fills the 256-wide MXU on v6e / v7x)


def _round_up(x, m):
    return ((x + m - 1) // m) * m


# --------------------------------------------------------------------------- #
# Fused kernel: encoder -> sparse neighbor gather (as MXU matmul) -> decoder
# --------------------------------------------------------------------------- #
def _msne_kernel(x_ref, topk_ref, q_ref,
                 w1_ref, b1_ref, w2_ref, b2_ref, w3_ref, b3_ref,
                 wd1_ref, bd1_ref, wd2_ref, bd2_ref,
                 z_ref, xhat_ref,
                 h_ref,                       # VMEM scratch: (npad, hpad) f32
                 *, tm, n_pad, k_neighbors):
    nt = n_pad // tm

    # ---- encoder: H = relu(relu(relu(X@W1+b1)@W2+b2)@W3+b3), into VMEM -----
    for t in range(nt):                       # static unroll (nt is tiny)
        r0 = t * tm
        x = x_ref[0, pl.ds(r0, tm), :]                                # bf16
        h = jnp.dot(x, w1_ref[0], preferred_element_type=jnp.float32) + b1_ref[0]
        h = jnp.maximum(h, 0.0).astype(jnp.bfloat16)
        h = jnp.dot(h, w2_ref[0], preferred_element_type=jnp.float32) + b2_ref[0]
        h = jnp.maximum(h, 0.0).astype(jnp.bfloat16)
        h = jnp.dot(h, w3_ref[0], preferred_element_type=jnp.float32) + b3_ref[0]
        h_ref[pl.ds(r0, tm), :] = jnp.maximum(h, 0.0)                 # f32 H

    # Full H, cast once to bf16 for the MXU gather matmul.
    h_bf = h_ref[...].astype(jnp.bfloat16)                            # (npad, hpad)

    # ---- gather (selection-matrix matmul) + decoder -------------------------
    for t in range(nt):
        r0 = t * tm
        tk = topk_ref[0, pl.ds(r0, tm), :]                            # (tm, K) i32
        qv = q_ref[0, pl.ds(r0, tm), :]                               # (tm, K) f32
        col = lax.broadcasted_iota(jnp.int32, (tm, n_pad), 1)
        sel = jnp.zeros((tm, n_pad), jnp.float32)
        for k in range(k_neighbors):                                  # K small & static
            sel = sel + jnp.where(col == tk[:, k:k + 1], qv[:, k:k + 1], 0.0)
        q_star = jnp.dot(sel.astype(jnp.bfloat16), h_bf,
                         preferred_element_type=jnp.float32)          # (tm, hpad)

        z = h_ref[pl.ds(r0, tm), :] + q_star                          # f32
        z_ref[0, pl.ds(r0, tm), :] = z

        d = jnp.dot(z.astype(jnp.bfloat16), wd1_ref[0],
                    preferred_element_type=jnp.float32) + bd1_ref[0]
        d = jnp.maximum(d, 0.0).astype(jnp.bfloat16)
        d = jnp.dot(d, wd2_ref[0], preferred_element_type=jnp.float32) + bd2_ref[0]
        xhat_ref[0, pl.ds(r0, tm), :] = jnp.maximum(d, 0.0)


# --------------------------------------------------------------------------- #
# Parameter preparation (padding + bf16 cast + stacking the two AEs)
# --------------------------------------------------------------------------- #
def _pad2(a, rows, cols):
    return jnp.pad(a, ((0, rows - a.shape[0]), (0, cols - a.shape[1])))


def _stack_params(params_list, spad, e2pad, hpad):
    def stack(name, rows, cols, dtype):
        return jnp.stack([_pad2(p[name], rows, cols)
                          for p in params_list]).astype(dtype)
    bf, f32 = jnp.bfloat16, jnp.float32
    return dict(
        w1=stack("w1", spad, 256, bf),    b1=stack("b1", 1, 256, f32),
        w2=stack("w2", 256, e2pad, bf),   b2=stack("b2", 1, e2pad, f32),
        w3=stack("w3", e2pad, hpad, bf),  b3=stack("b3", 1, hpad, f32),
        wd1=stack("wd1", hpad, 256, bf),  bd1=stack("bd1", 1, 256, f32),
        wd2=stack("wd2", 256, spad, bf),  bd2=stack("bd2", 1, spad, f32),
    )


def _vmem_limit_bytes(per_step_bytes):
    """Generation-aware scoped-VMEM limit: double-buffered per-step blocks plus
    headroom, clamped below the physical VMEM of the chip we are running on
    (128 MiB on v5e/v6e, 64 MiB per TC on v7x)."""
    cap = 64 << 20                       # conservative fallback (safe everywhere)
    try:
        cap = int(getattr(pltpu.get_tpu_info(), "vmem_capacity_bytes", cap))
    except Exception:
        pass
    want = 2 * per_step_bytes + (16 << 20)
    return int(min(max(want, 32 << 20), cap - (8 << 20)))


# --------------------------------------------------------------------------- #
# Forward pass
# --------------------------------------------------------------------------- #
@jax.jit
def msne_forward(params_dist, params_mob,
                 x_dist, x_mobility, q_dist, q_mobility, k_dist, k_mobility):
    n, s = x_dist.shape
    hidden = params_dist["w3"].shape[1]
    k_nbr = k_dist.shape[1]

    spad = _round_up(s, _LANE)
    e2pad = _round_up(84, _LANE)
    hpad = _round_up(hidden, _LANE)
    tm = _ROW_TILE
    npad = _round_up(n, tm)

    # ---- cheap wrapper-side prep: O(N*S) pad + O(N*K) gather of Q values ----
    x = jnp.stack([x_dist, x_mobility])                           # (2, N, S)
    x = jnp.pad(x, ((0, 0), (0, npad - n), (0, spad - s))).astype(jnp.bfloat16)

    rows = jnp.arange(n)[:, None]
    topk = jnp.stack([k_dist, k_mobility]).astype(jnp.int32)      # (2, N, K)
    qgat = jnp.stack([q_dist[rows, k_dist],
                      q_mobility[rows, k_mobility]]).astype(jnp.float32)
    # Padded rows get index 0 with weight 0 -> contribute nothing.
    topk = jnp.pad(topk, ((0, 0), (0, npad - n), (0, 0)))
    qgat = jnp.pad(qgat, ((0, 0), (0, npad - n), (0, 0)))

    p = _stack_params([params_dist, params_mob], spad, e2pad, hpad)

    rep = lambda a: (a, 0, 0)     # every block is selected by the AE index only

    # ---- VMEM budget / cost estimate ----------------------------------------
    weight_bytes = ((spad * 256 + 256 * e2pad + e2pad * hpad
                     + hpad * 256 + 256 * spad) * 2
                    + (256 + e2pad + hpad + 256 + spad) * 4)
    step_bytes = (npad * spad * 2                 # X block (bf16)
                  + 2 * npad * _LANE * 4          # topk + q (lane-padded)
                  + weight_bytes
                  + npad * (hpad + spad) * 4      # Z + X_hat output blocks
                  + npad * hpad * 4)              # H scratch
    flops = (2 * 2 * npad * (spad * 256 + 256 * e2pad + e2pad * hpad
                             + hpad * 256 + 256 * spad)
             + 2 * 2 * npad * npad * hpad)        # selection matmul
    hbm_bytes = (2 * npad * spad * 2 + 2 * npad * k_nbr * 8
                 + 2 * weight_bytes + 2 * npad * (hpad + spad) * 4)

    kernel = functools.partial(_msne_kernel, tm=tm, n_pad=npad,
                               k_neighbors=k_nbr)

    z, xhat = pl.pallas_call(
        kernel,
        grid=(2,),
        in_specs=[
            pl.BlockSpec((1, npad, spad), rep),       # X
            pl.BlockSpec((1, npad, k_nbr), rep),      # top_k indices
            pl.BlockSpec((1, npad, k_nbr), rep),      # gathered Q values
            pl.BlockSpec((1, spad, 256), rep), pl.BlockSpec((1, 1, 256), rep),
            pl.BlockSpec((1, 256, e2pad), rep), pl.BlockSpec((1, 1, e2pad), rep),
            pl.BlockSpec((1, e2pad, hpad), rep), pl.BlockSpec((1, 1, hpad), rep),
            pl.BlockSpec((1, hpad, 256), rep), pl.BlockSpec((1, 1, 256), rep),
            pl.BlockSpec((1, 256, spad), rep), pl.BlockSpec((1, 1, spad), rep),
        ],
        out_specs=(
            pl.BlockSpec((1, npad, hpad), rep),       # Z
            pl.BlockSpec((1, npad, spad), rep),       # X_hat
        ),
        out_shape=(jax.ShapeDtypeStruct((2, npad, hpad), jnp.float32),
                   jax.ShapeDtypeStruct((2, npad, spad), jnp.float32)),
        scratch_shapes=[pltpu.VMEM((npad, hpad), jnp.float32)],
        compiler_params=pltpu.CompilerParams(
            dimension_semantics=("parallel",),
            vmem_limit_bytes=_vmem_limit_bytes(step_bytes)),
        cost_estimate=pl.CostEstimate(
            flops=int(flops), transcendentals=0, bytes_accessed=int(hbm_bytes)),
    )(x, topk, qgat, p["w1"], p["b1"], p["w2"], p["b2"], p["w3"], p["b3"],
      p["wd1"], p["bd1"], p["wd2"], p["bd2"])

    x_dist_hat = xhat[0, :n, :s]
    x_mob_hat = xhat[1, :n, :s]
    h_dist = z[0, :n, :hidden]
    h_mob = z[1, :n, :hidden]
    return x_dist_hat, h_dist, x_mob_hat, h_mob


# --------------------------------------------------------------------------- #
# Parameter init (mirrors PyTorch nn.Linear; weight stored as (in, out))
# --------------------------------------------------------------------------- #
def _init_linear(key, in_dim, out_dim):
    kw, kb = jax.random.split(key)
    bound = 1.0 / math.sqrt(in_dim)
    w = jax.random.uniform(kw, (in_dim, out_dim), jnp.float32, -bound, bound)
    b = jax.random.uniform(kb, (1, out_dim), jnp.float32, -bound, bound)
    return w, b


def init_autoencoder_params(key, network_size, hidden_dim):
    ks = jax.random.split(key, 5)
    w1, b1 = _init_linear(ks[0], network_size, 256)
    w2, b2 = _init_linear(ks[1], 256, 84)
    w3, b3 = _init_linear(ks[2], 84, hidden_dim)
    wd1, bd1 = _init_linear(ks[3], hidden_dim, 256)
    wd2, bd2 = _init_linear(ks[4], 256, network_size)
    return dict(w1=w1, b1=b1, w2=w2, b2=b2, w3=w3, b3=b3,
                wd1=wd1, bd1=bd1, wd2=wd2, bd2=bd2)


# --------------------------------------------------------------------------- #
# Plain-JAX reference of the PyTorch forward (same bf16-in / f32-acc matmuls;
# q_star kept in f32 like the PyTorch loop)
# --------------------------------------------------------------------------- #
def _reference_ae(x, q, top_k, p):
    def lin(a, w, b):
        return jnp.dot(a.astype(jnp.bfloat16), w.astype(jnp.bfloat16),
                       preferred_element_type=jnp.float32) + b
    h = jax.nn.relu(lin(x, p["w1"], p["b1"]))
    h = jax.nn.relu(lin(h, p["w2"], p["b2"]))
    h = jax.nn.relu(lin(h, p["w3"], p["b3"]))
    n = q.shape[0]
    qg = q[jnp.arange(n)[:, None], top_k]                 # (N, K)
    q_star = (qg[..., None] * h[top_k, :]).sum(axis=1)    # handles duplicates
    z = h + q_star
    h2 = jax.nn.relu(lin(z, p["wd1"], p["bd1"]))
    x_hat = jax.nn.relu(lin(h2, p["wd2"], p["bd2"]))
    return x_hat, z


if __name__ == "__main__":
    key = jax.random.PRNGKey(0)
    k_pd, k_pm, k_xd, k_xm, k_qd, k_qm, k_kd, k_km = jax.random.split(key, 8)

    # Small shapes consistent with the module (rows padded 192->256 internally,
    # features 16->128, hidden 8->128).
    n_samples = 192
    network_size = 16
    hidden_dim = 8
    top_k = 3

    params_dist = init_autoencoder_params(k_pd, network_size, hidden_dim)
    params_mob = init_autoencoder_params(k_pm, network_size, hidden_dim)

    x_dist = jax.random.normal(k_xd, (n_samples, network_size), jnp.float32)
    x_mob = jax.random.normal(k_xm, (n_samples, network_size), jnp.float32)
    q_dist = jax.random.uniform(k_qd, (n_samples, n_samples), jnp.float32)
    q_mob = jax.random.uniform(k_qm, (n_samples, n_samples), jnp.float32)
    k_dist = jax.random.randint(k_kd, (n_samples, top_k), 0, n_samples, jnp.int32)
    k_mob = jax.random.randint(k_km, (n_samples, top_k), 0, n_samples, jnp.int32)

    outs = msne_forward(params_dist, params_mob,
                        x_dist, x_mob, q_dist, q_mob, k_dist, k_mob)
    outs = jax.block_until_ready(outs)
    x_dist_hat, h_dist, x_mob_hat, h_mob = outs

    ref_xd, ref_hd = _reference_ae(x_dist, q_dist, k_dist, params_dist)
    ref_xm, ref_hm = _reference_ae(x_mob, q_mob, k_mob, params_mob)
    assert jnp.allclose(x_dist_hat, ref_xd, atol=1e-2, rtol=1e-2)
    assert jnp.allclose(h_dist, ref_hd, atol=1e-2, rtol=1e-2)
    assert jnp.allclose(x_mob_hat, ref_xm, atol=1e-2, rtol=1e-2)
    assert jnp.allclose(h_mob, ref_hm, atol=1e-2, rtol=1e-2)

    print("KERNEL_OK")
</pallas_src>

<mosaic_0001>
module attributes {stable_mosaic.version = 11 : i64} {
  func.func @_msne_kernel(%arg0: i32, %arg1: memref<1x256x128xbf16, #tpu.memory_space<vmem>>, %arg2: memref<1x256x3xi32, #tpu.memory_space<vmem>>, %arg3: memref<1x256x3xf32, #tpu.memory_space<vmem>>, %arg4: memref<1x128x256xbf16, #tpu.memory_space<vmem>>, %arg5: memref<1x1x256xf32, #tpu.memory_space<vmem>>, %arg6: memref<1x256x128xbf16, #tpu.memory_space<vmem>>, %arg7: memref<1x1x128xf32, #tpu.memory_space<vmem>>, %arg8: memref<1x128x128xbf16, #tpu.memory_space<vmem>>, %arg9: memref<1x1x128xf32, #tpu.memory_space<vmem>>, %arg10: memref<1x128x256xbf16, #tpu.memory_space<vmem>>, %arg11: memref<1x1x256xf32, #tpu.memory_space<vmem>>, %arg12: memref<1x256x128xbf16, #tpu.memory_space<vmem>>, %arg13: memref<1x1x128xf32, #tpu.memory_space<vmem>>, %arg14: memref<1x256x128xf32, #tpu.memory_space<vmem>>, %arg15: memref<1x256x128xf32, #tpu.memory_space<vmem>>, %arg16: memref<256x128xf32, #tpu.memory_space<vmem>>) attributes {dimension_semantics = [#tpu.dimension_semantics<parallel>], iteration_bounds = array<i64: 2>, scalar_prefetch = 0 : i64, scratch_operands = 1 : i64, tpu.core_type = #tpu.core_type<tc>, window_params = [{transform_indices = @transform_0, window_bounds = array<i64: 1, 256, 128>}, {transform_indices = @transform_1, window_bounds = array<i64: 1, 256, 3>}, {transform_indices = @transform_2, window_bounds = array<i64: 1, 256, 3>}, {transform_indices = @transform_3, window_bounds = array<i64: 1, 128, 256>}, {transform_indices = @transform_4, window_bounds = array<i64: 1, 1, 256>}, {transform_indices = @transform_5, window_bounds = array<i64: 1, 256, 128>}, {transform_indices = @transform_6, window_bounds = array<i64: 1, 1, 128>}, {transform_indices = @transform_7, window_bounds = array<i64: 1, 128, 128>}, {transform_indices = @transform_8, window_bounds = array<i64: 1, 1, 128>}, {transform_indices = @transform_9, window_bounds = array<i64: 1, 128, 256>}, {transform_indices = @transform_10, window_bounds = array<i64: 1, 1, 256>}, {transform_indices = @transform_11, window_bounds = array<i64: 1, 256, 128>}, {transform_indices = @transform_12, window_bounds = array<i64: 1, 1, 128>}, {transform_indices = @transform_13, window_bounds = array<i64: 1, 256, 128>}, {transform_indices = @transform_14, window_bounds = array<i64: 1, 256, 128>}]} {
    %c0 = arith.constant 0 : index
    %c0_0 = arith.constant 0 : index
    %c0_1 = arith.constant 0 : index
    %0 = vector.load %arg1[%c0, %c0_0, %c0_1] : memref<1x256x128xbf16, #tpu.memory_space<vmem>>, vector<1x256x128xbf16>
    %1 = vector.shape_cast %0 : vector<1x256x128xbf16> to vector<256x128xbf16>
    %c0_2 = arith.constant 0 : index
    %c0_3 = arith.constant 0 : index
    %c0_4 = arith.constant 0 : index
    %2 = vector.load %arg4[%c0_2, %c0_3, %c0_4] : memref<1x128x256xbf16, #tpu.memory_space<vmem>>, vector<1x128x256xbf16>
    %3 = vector.shape_cast %2 : vector<1x128x256xbf16> to vector<128x256xbf16>
    %cst = arith.constant dense<0.000000e+00> : vector<256x256xf32>
    %4 = tpu.matmul %1, %3, %cst {dimension_numbers = #tpu.dot_dimension_numbers<[1], [0], [0], [1], [0, 0, 1, 1], [], []>} : vector<256x128xbf16>, vector<128x256xbf16>, vector<256x256xf32> -> vector<256x256xf32>
    %c0_5 = arith.constant 0 : index
    %c0_6 = arith.constant 0 : index
    %c0_7 = arith.constant 0 : index
    %5 = vector.load %arg5[%c0_5, %c0_6, %c0_7] : memref<1x1x256xf32, #tpu.memory_space<vmem>>, vector<1x1x256xf32>
    %6 = vector.shape_cast %5 : vector<1x1x256xf32> to vector<1x256xf32>
    %7 = vector.broadcast %6 : vector<1x256xf32> to vector<256x256xf32>
    %8 = arith.addf %4, %7 : vector<256x256xf32>
    %cst_8 = arith.constant 0.000000e+00 : f32
    %9 = vector.broadcast %cst_8 : f32 to vector<256x256xf32>
    %10 = arith.maximumf %8, %9 : vector<256x256xf32>
    %11 = arith.truncf %10 : vector<256x256xf32> to vector<256x256xbf16>
    %c0_9 = arith.constant 0 : index
    %c0_10 = arith.constant 0 : index
    %c0_11 = arith.constant 0 : index
    %12 = vector.load %arg6[%c0_9, %c0_10, %c0_11] : memref<1x256x128xbf16, #tpu.memory_space<vmem>>, vector<1x256x128xbf16>
    %13 = vector.shape_cast %12 : vector<1x256x128xbf16> to vector<256x128xbf16>
    %cst_12 = arith.constant dense<0.000000e+00> : vector<256x128xf32>
    %14 = tpu.matmul %11, %13, %cst_12 {dimension_numbers = #tpu.dot_dimension_numbers<[1], [0], [0], [1], [0, 0, 1, 1], [], []>} : vector<256x256xbf16>, vector<256x128xbf16>, vector<256x128xf32> -> vector<256x128xf32>
    %c0_13 = arith.constant 0 : index
    %c0_14 = arith.constant 0 : index
    %c0_15 = arith.constant 0 : index
    %15 = vector.load %arg7[%c0_13, %c0_14, %c0_15] : memref<1x1x128xf32, #tpu.memory_space<vmem>>, vector<1x1x128xf32>
    %16 = vector.shape_cast %15 : vector<1x1x128xf32> to vector<1x128xf32>
    %17 = vector.broadcast %16 : vector<1x128xf32> to vector<256x128xf32>
    %18 = arith.addf %14, %17 : vector<256x128xf32>
    %cst_16 = arith.constant 0.000000e+00 : f32
    %19 = vector.broadcast %cst_16 : f32 to vector<256x128xf32>
    %20 = arith.maximumf %18, %19 : vector<256x128xf32>
    %21 = arith.truncf %20 : vector<256x128xf32> to vector<256x128xbf16>
    %c0_17 = arith.constant 0 : index
    %c0_18 = arith.constant 0 : index
    %c0_19 = arith.constant 0 : index
    %22 = vector.load %arg8[%c0_17, %c0_18, %c0_19] : memref<1x128x128xbf16, #tpu.memory_space<vmem>>, vector<1x128x128xbf16>
    %23 = vector.shape_cast %22 : vector<1x128x128xbf16> to vector<128x128xbf16>
    %cst_20 = arith.constant dense<0.000000e+00> : vector<256x128xf32>
    %24 = tpu.matmul %21, %23, %cst_20 {dimension_numbers = #tpu.dot_dimension_numbers<[1], [0], [0], [1], [0, 0, 1, 1], [], []>} : vector<256x128xbf16>, vector<128x128xbf16>, vector<256x128xf32> -> vector<256x128xf32>
    %c0_21 = arith.constant 0 : index
    %c0_22 = arith.constant 0 : index
    %c0_23 = arith.constant 0 : index
    %25 = vector.load %arg9[%c0_21, %c0_22, %c0_23] : memref<1x1x128xf32, #tpu.memory_space<vmem>>, vector<1x1x128xf32>
    %26 = vector.shape_cast %25 : vector<1x1x128xf32> to vector<1x128xf32>
    %27 = vector.broadcast %26 : vector<1x128xf32> to vector<256x128xf32>
    %28 = arith.addf %24, %27 : vector<256x128xf32>
    %cst_24 = arith.constant 0.000000e+00 : f32
    %29 = vector.broadcast %cst_24 : f32 to vector<256x128xf32>
    %30 = arith.maximumf %28, %29 : vector<256x128xf32>
    %c0_25 = arith.constant 0 : index
    %c0_26 = arith.constant 0 : index
    %31 = vector.load %arg16[%c0_25, %c0_26] : memref<256x128xf32, #tpu.memory_space<vmem>>, vector<256x128xf32>
    tpu.vector_store %arg16[%c0_25, %c0_26], %30 {strides = array<i32>} : memref<256x128xf32, #tpu.memory_space<vmem>>, vector<256x128xf32>,
    %c0_27 = arith.constant 0 : index
    %c0_28 = arith.constant 0 : index
    %32 = vector.load %arg16[%c0_27, %c0_28] : memref<256x128xf32, #tpu.memory_space<vmem>>, vector<256x128xf32>
    %33 = arith.truncf %32 : vector<256x128xf32> to vector<256x128xbf16>
    %c0_29 = arith.constant 0 : index
    %c0_30 = arith.constant 0 : index
    %c0_31 = arith.constant 0 : index
    %34 = vector.load %arg2[%c0_29, %c0_30, %c0_31] : memref<1x256x3xi32, #tpu.memory_space<vmem>>, vector<1x256x3xi32>
    %35 = vector.shape_cast %34 : vector<1x256x3xi32> to vector<256x3xi32>
    %c0_32 = arith.constant 0 : index
    %c0_33 = arith.constant 0 : index
    %c0_34 = arith.constant 0 : index
    %36 = vector.load %arg3[%c0_32, %c0_33, %c0_34] : memref<1x256x3xf32, #tpu.memory_space<vmem>>, vector<1x256x3xf32>
    %37 = vector.shape_cast %36 : vector<1x256x3xf32> to vector<256x3xf32>
    %38 = tpu.iota {dimensions = array<i32: 1>} : vector<256x256xi32>
    %cst_35 = arith.constant 0.000000e+00 : f32
    %39 = vector.broadcast %cst_35 : f32 to vector<256x256xf32>
    %40 = vector.extract_strided_slice %35 {offsets = [0, 0], sizes = [256, 1], strides = [1, 1]} : vector<256x3xi32> to vector<256x1xi32>
    %41 = vector.broadcast %40 : vector<256x1xi32> to vector<256x256xi32>
    %42 = arith.cmpi eq, %38, %41 : vector<256x256xi32>
    %43 = vector.extract_strided_slice %37 {offsets = [0, 0], sizes = [256, 1], strides = [1, 1]} : vector<256x3xf32> to vector<256x1xf32>
    %cst_36 = arith.constant 0.000000e+00 : f32
    %44 = vector.shape_cast %43 : vector<256x1xf32> to vector<256x1xf32>
    %45 = vector.broadcast %44 : vector<256x1xf32> to vector<256x256xf32>
    %46 = vector.broadcast %cst_36 : f32 to vector<256x256xf32>
    %47 = arith.select %42, %45, %46 : vector<256x256xi1>, vector<256x256xf32>
    %48 = arith.addf %39, %47 : vector<256x256xf32>
    %49 = vector.extract_strided_slice %35 {offsets = [0, 1], sizes = [256, 1], strides = [1, 1]} : vector<256x3xi32> to vector<256x1xi32>
    %50 = vector.broadcast %49 : vector<256x1xi32> to vector<256x256xi32>
    %51 = arith.cmpi eq, %38, %50 : vector<256x256xi32>
    %52 = vector.extract_strided_slice %37 {offsets = [0, 1], sizes = [256, 1], strides = [1, 1]} : vector<256x3xf32> to vector<256x1xf32>
    %cst_37 = arith.constant 0.000000e+00 : f32
    %53 = vector.shape_cast %52 : vector<256x1xf32> to vector<256x1xf32>
    %54 = vector.broadcast %53 : vector<256x1xf32> to vector<256x256xf32>
    %55 = vector.broadcast %cst_37 : f32 to vector<256x256xf32>
    %56 = arith.select %51, %54, %55 : vector<256x256xi1>, vector<256x256xf32>
    %57 = arith.addf %48, %56 : vector<256x256xf32>
    %58 = vector.extract_strided_slice %35 {offsets = [0, 2], sizes = [256, 1], strides = [1, 1]} : vector<256x3xi32> to vector<256x1xi32>
    %59 = vector.broadcast %58 : vector<256x1xi32> to vector<256x256xi32>
    %60 = arith.cmpi eq, %38, %59 : vector<256x256xi32>
    %61 = vector.extract_strided_slice %37 {offsets = [0, 2], sizes = [256, 1], strides = [1, 1]} : vector<256x3xf32> to vector<256x1xf32>
    %cst_38 = arith.constant 0.000000e+00 : f32
    %62 = vector.shape_cast %61 : vector<256x1xf32> to vector<256x1xf32>
    %63 = vector.broadcast %62 : vector<256x1xf32> to vector<256x256xf32>
    %64 = vector.broadcast %cst_38 : f32 to vector<256x256xf32>
    %65 = arith.select %60, %63, %64 : vector<256x256xi1>, vector<256x256xf32>
    %66 = arith.addf %57, %65 : vector<256x256xf32>
    %67 = arith.truncf %66 : vector<256x256xf32> to vector<256x256xbf16>
    %cst_39 = arith.constant dense<0.000000e+00> : vector<256x128xf32>
    %68 = tpu.matmul %67, %33, %cst_39 {dimension_numbers = #tpu.dot_dimension_numbers<[1], [0], [0], [1], [0, 0, 1, 1], [], []>} : vector<256x256xbf16>, vector<256x128xbf16>, vector<256x128xf32> -> vector<256x128xf32>
    %c0_40 = arith.constant 0 : index
    %c0_41 = arith.constant 0 : index
    %69 = vector.load %arg16[%c0_40, %c0_41] : memref<256x128xf32, #tpu.memory_space<vmem>>, vector<256x128xf32>
    %70 = arith.addf %69, %68 : vector<256x128xf32>
    %c0_42 = arith.constant 0 : index
    %c0_43 = arith.constant 0 : index
    %c0_44 = arith.constant 0 : index
    %71 = vector.load %arg14[%c0_42, %c0_43, %c0_44] : memref<1x256x128xf32, #tpu.memory_space<vmem>>, vector<1x256x128xf32>
    %72 = vector.shape_cast %71 : vector<1x256x128xf32> to vector<256x128xf32>
    %73 = vector.shape_cast %70 : vector<256x128xf32> to vector<1x256x128xf32>
    tpu.vector_store %arg14[%c0_42, %c0_43, %c0_44], %73 {strides = array<i32>} : memref<1x256x128xf32, #tpu.memory_space<vmem>>, vector<1x256x128xf32>,
    %74 = arith.truncf %70 : vector<256x128xf32> to vector<256x128xbf16>
    %c0_45 = arith.constant 0 : index
    %c0_46 = arith.constant 0 : index
    %c0_47 = arith.constant 0 : index
    %75 = vector.load %arg10[%c0_45, %c0_46, %c0_47] : memref<1x128x256xbf16, #tpu.memory_space<vmem>>, vector<1x128x256xbf16>
    %76 = vector.shape_cast %75 : vector<1x128x256xbf16> to vector<128x256xbf16>
    %cst_48 = arith.constant dense<0.000000e+00> : vector<256x256xf32>
    %77 = tpu.matmul %74, %76, %cst_48 {dimension_numbers = #tpu.dot_dimension_numbers<[1], [0], [0], [1], [0, 0, 1, 1], [], []>} : vector<256x128xbf16>, vector<128x256xbf16>, vector<256x256xf32> -> vector<256x256xf32>
    %c0_49 = arith.constant 0 : index
    %c0_50 = arith.constant 0 : index
    %c0_51 = arith.constant 0 : index
    %78 = vector.load %arg11[%c0_49, %c0_50, %c0_51] : memref<1x1x256xf32, #tpu.memory_space<vmem>>, vector<1x1x256xf32>
    %79 = vector.shape_cast %78 : vector<1x1x256xf32> to vector<1x256xf32>
    %80 = vector.broadcast %79 : vector<1x256xf32> to vector<256x256xf32>
    %81 = arith.addf %77, %80 : vector<256x256xf32>
    %cst_52 = arith.constant 0.000000e+00 : f32
    %82 = vector.broadcast %cst_52 : f32 to vector<256x256xf32>
    %83 = arith.maximumf %81, %82 : vector<256x256xf32>
    %84 = arith.truncf %83 : vector<256x256xf32> to vector<256x256xbf16>
    %c0_53 = arith.constant 0 : index
    %c0_54 = arith.constant 0 : index
    %c0_55 = arith.constant 0 : index
    %85 = vector.load %arg12[%c0_53, %c0_54, %c0_55] : memref<1x256x128xbf16, #tpu.memory_space<vmem>>, vector<1x256x128xbf16>
    %86 = vector.shape_cast %85 : vector<1x256x128xbf16> to vector<256x128xbf16>
    %cst_56 = arith.constant dense<0.000000e+00> : vector<256x128xf32>
    %87 = tpu.matmul %84, %86, %cst_56 {dimension_numbers = #tpu.dot_dimension_numbers<[1], [0], [0], [1], [0, 0, 1, 1], [], []>} : vector<256x256xbf16>, vector<256x128xbf16>, vector<256x128xf32> -> vector<256x128xf32>
    %c0_57 = arith.constant 0 : index
    %c0_58 = arith.constant 0 : index
    %c0_59 = arith.constant 0 : index
    %88 = vector.load %arg13[%c0_57, %c0_58, %c0_59] : memref<1x1x128xf32, #tpu.memory_space<vmem>>, vector<1x1x128xf32>
    %89 = vector.shape_cast %88 : vector<1x1x128xf32> to vector<1x128xf32>
    %90 = vector.broadcast %89 : vector<1x128xf32> to vector<256x128xf32>
    %91 = arith.addf %87, %90 : vector<256x128xf32>
    %cst_60 = arith.constant 0.000000e+00 : f32
    %92 = vector.broadcast %cst_60 : f32 to vector<256x128xf32>
    %93 = arith.maximumf %91, %92 : vector<256x128xf32>
    %c0_61 = arith.constant 0 : index
    %c0_62 = arith.constant 0 : index
    %c0_63 = arith.constant 0 : index
    %94 = vector.load %arg15[%c0_61, %c0_62, %c0_63] : memref<1x256x128xf32, #tpu.memory_space<vmem>>, vector<1x256x128xf32>
    %95 = vector.shape_cast %94 : vector<1x256x128xf32> to vector<256x128xf32>
    %96 = vector.shape_cast %93 : vector<256x128xf32> to vector<1x256x128xf32>
    tpu.vector_store %arg15[%c0_61, %c0_62, %c0_63], %96 {strides = array<i32>} : memref<1x256x128xf32, #tpu.memory_space<vmem>>, vector<1x256x128xf32>,
    return
  }
  func.func @transform_0(%arg0: i32) -> (i32, i32, i32) {
    %c0_i32 = arith.constant 0 : i32
    %c0_i32_0 = arith.constant 0 : i32
    %c0_i32_1 = arith.constant 0 : i32
    return %arg0, %c0_i32, %c0_i32_0 : i32, i32, i32
  }
  func.func @transform_1(%arg0: i32) -> (i32, i32, i32) {
    %c0_i32 = arith.constant 0 : i32
    %c0_i32_0 = arith.constant 0 : i32
    %c0_i32_1 = arith.constant 0 : i32
    return %arg0, %c0_i32, %c0_i32_0 : i32, i32, i32
  }
  func.func @transform_2(%arg0: i32) -> (i32, i32, i32) {
    %c0_i32 = arith.constant 0 : i32
    %c0_i32_0 = arith.constant 0 : i32
    %c0_i32_1 = arith.constant 0 : i32
    return %arg0, %c0_i32, %c0_i32_0 : i32, i32, i32
  }
  func.func @transform_3(%arg0: i32) -> (i32, i32, i32) {
    %c0_i32 = arith.constant 0 : i32
    %c0_i32_0 = arith.constant 0 : i32
    %c0_i32_1 = arith.constant 0 : i32
    return %arg0, %c0_i32, %c0_i32_0 : i32, i32, i32
  }
  func.func @transform_4(%arg0: i32) -> (i32, i32, i32) {
    %c0_i32 = arith.constant 0 : i32
    %c0_i32_0 = arith.constant 0 : i32
    %c0_i32_1 = arith.constant 0 : i32
    return %arg0, %c0_i32, %c0_i32_0 : i32, i32, i32
  }
  func.func @transform_5(%arg0: i32) -> (i32, i32, i32) {
    %c0_i32 = arith.constant 0 : i32
    %c0_i32_0 = arith.constant 0 : i32
    %c0_i32_1 = arith.constant 0 : i32
    return %arg0, %c0_i32, %c0_i32_0 : i32, i32, i32
  }
  func.func @transform_6(%arg0: i32) -> (i32, i32, i32) {
    %c0_i32 = arith.constant 0 : i32
    %c0_i32_0 = arith.constant 0 : i32
    %c0_i32_1 = arith.constant 0 : i32
    return %arg0, %c0_i32, %c0_i32_0 : i32, i32, i32
  }
  func.func @transform_7(%arg0: i32) -> (i32, i32, i32) {
    %c0_i32 = arith.constant 0 : i32
    %c0_i32_0 = arith.constant 0 : i32
    %c0_i32_1 = arith.constant 0 : i32
    return %arg0, %c0_i32, %c0_i32_0 : i32, i32, i32
  }
  func.func @transform_8(%arg0: i32) -> (i32, i32, i32) {
    %c0_i32 = arith.constant 0 : i32
    %c0_i32_0 = arith.constant 0 : i32
    %c0_i32_1 = arith.constant 0 : i32
    return %arg0, %c0_i32, %c0_i32_0 : i32, i32, i32
  }
  func.func @transform_9(%arg0: i32) -> (i32, i32, i32) {
    %c0_i32 = arith.constant 0 : i32
    %c0_i32_0 = arith.constant 0 : i32
    %c0_i32_1 = arith.constant 0 : i32
    return %arg0, %c0_i32, %c0_i32_0 : i32, i32, i32
  }
  func.func @transform_10(%arg0: i32) -> (i32, i32, i32) {
    %c0_i32 = arith.constant 0 : i32
    %c0_i32_0 = arith.constant 0 : i32
    %c0_i32_1 = arith.constant 0 : i32
    return %arg0, %c0_i32, %c0_i32_0 : i32, i32, i32
  }
  func.func @transform_11(%arg0: i32) -> (i32, i32, i32) {
    %c0_i32 = arith.constant 0 : i32
    %c0_i32_0 = arith.constant 0 : i32
    %c0_i32_1 = arith.constant 0 : i32
    return %arg0, %c0_i32, %c0_i32_0 : i32, i32, i32
  }
  func.func @transform_12(%arg0: i32) -> (i32, i32, i32) {
    %c0_i32 = arith.constant 0 : i32
    %c0_i32_0 = arith.constant 0 : i32
    %c0_i32_1 = arith.constant 0 : i32
    return %arg0, %c0_i32, %c0_i32_0 : i32, i32, i32
  }
  func.func @transform_13(%arg0: i32) -> (i32, i32, i32) {
    %c0_i32 = arith.constant 0 : i32
    %c0_i32_0 = arith.constant 0 : i32
    %c0_i32_1 = arith.constant 0 : i32
    return %arg0, %c0_i32, %c0_i32_0 : i32, i32, i32
  }
  func.func @transform_14(%arg0: i32) -> (i32, i32, i32) {
    %c0_i32 = arith.constant 0 : i32
    %c0_i32_0 = arith.constant 0 : i32
    %c0_i32_1 = arith.constant 0 : i32
    return %arg0, %c0_i32, %c0_i32_0 : i32, i32, i32
  }
}

</mosaic_0001>

<llo_original>
// kernel: msne_forward.1
$region0: #{msne_forward.1}
  #allocation0 [shape = 'u32[]', space=smem, size = 0x4, offset = 0x4, fixed_abs, tag = 'smem constant byte address 0x4 - core index']
  #allocation1 [shape = 'u32[72,128]{1,0:T(1,128)}', space=vmem, size = 0x9000, scoped, tag = 'internal scratch']
  #allocation2 [shape = 'f32[256,128]{1,0:T(8,128)}', space=vmem, size = 0x20000, scoped, tag = 'scratch operand']
  %s0 = inlined_call_operand.vmem [shape: bf16[2,256,128], index: 0, kind: input, shape index: {}]
  %s1 = inlined_call_operand.vmem [shape: s32[2,256,3], index: 1, kind: input, shape index: {}]
  %s2 = inlined_call_operand.vmem [shape: f32[2,256,3], index: 2, kind: input, shape index: {}]
  %s3 = inlined_call_operand.vmem [shape: bf16[2,128,256], index: 3, kind: input, shape index: {}]
  %s4 = inlined_call_operand.vmem [shape: f32[2,1,256], index: 4, kind: input, shape index: {}]
  %s5 = inlined_call_operand.vmem [shape: bf16[2,256,128], index: 5, kind: input, shape index: {}]
  %s6 = inlined_call_operand.vmem [shape: f32[2,1,128], index: 6, kind: input, shape index: {}]
  %s7 = inlined_call_operand.vmem [shape: bf16[2,128,128], index: 7, kind: input, shape index: {}]
  %s8 = inlined_call_operand.vmem [shape: f32[2,1,128], index: 8, kind: input, shape index: {}]
  %s9 = inlined_call_operand.vmem [shape: bf16[2,128,256], index: 9, kind: input, shape index: {}]
  %s10 = inlined_call_operand.vmem [shape: f32[2,1,256], index: 10, kind: input, shape index: {}]
  %s11 = inlined_call_operand.vmem [shape: bf16[2,256,128], index: 11, kind: input, shape index: {}]
  %s12 = inlined_call_operand.vmem [shape: f32[2,1,128], index: 12, kind: input, shape index: {}]
  %s13 = inlined_call_operand.vmem [shape: f32[2,256,128], index: 13, kind: output, shape index: {0}]
  %s14 = inlined_call_operand.vmem [shape: f32[2,256,128], index: 14, kind: output, shape index: {1}]
  %15 = xla_tuple %s13, %s14
  %s16 = sld [smem:[#allocation0]]
  $region93: #{msne_forward.1} parent=0
    _
  %s18 = ssub.s32 1, %s16
  %s19 = scalar_select 0, %s18, %s16
  loop: start=0, step=1, limit=4
  $region2: #{msne_forward.1} parent=0 // loop_pre_header
    _
  $region3: #{msne_forward.1} parent=0 // loop_header
    %s21 = sphi 0, %s25
    %p22 = scmp.ge.s32.totalorder %s21, 4
    %s31 = sphi 0, %s33
    %s34 = sphi 0, %s31
    %s35 = sphi 0, %s34
    %s51 = sphi 0, %s35
    %s57 = sphi 0, %s59
    %s60 = sphi 0, %s57
    %s61 = sphi 0, %s60
    %s77 = sphi 0, %s61
    %s83 = sphi 0, %s85
    %s86 = sphi 0, %s83
    %s87 = sphi 0, %s86
    %s103 = sphi 0, %s87
    %s109 = sphi 0, %s111
    %s112 = sphi 0, %s109
    %s113 = sphi 0, %s112
    %s129 = sphi 0, %s113
    %s135 = sphi 0, %s137
    %s138 = sphi 0, %s135
    %s139 = sphi 0, %s138
    %s155 = sphi 0, %s139
    %s161 = sphi 0, %s163
    %s164 = sphi 0, %s161
    %s165 = sphi 0, %s164
    %s181 = sphi 0, %s165
    %s187 = sphi 0, %s189
    %s190 = sphi 0, %s187
    %s191 = sphi 0, %s190
    %s207 = sphi 0, %s191
    %s213 = sphi 0, %s215
    %s216 = sphi 0, %s213
    %s217 = sphi 0, %s216
    %s233 = sphi 0, %s217
    %s239 = sphi 0, %s241
    %s242 = sphi 0, %s239
    %s243 = sphi 0, %s242
    %s259 = sphi 0, %s243
    %s265 = sphi 0, %s267
    %s268 = sphi 0, %s265
    %s269 = sphi 0, %s268
    %s285 = sphi 0, %s269
    %s291 = sphi 0, %s293
    %s294 = sphi 0, %s291
    %s295 = sphi 0, %s294
    %s311 = sphi 0, %s295
    %s317 = sphi 0, %s319
    %s320 = sphi 0, %s317
    %s321 = sphi 0, %s320
    %s337 = sphi 0, %s321
    %s343 = sphi 0, %s345
    %s346 = sphi 0, %s343
    %s347 = sphi 0, %s346
    %s363 = sphi 0, %s347
    %s369 = sphi 0, %s371
    %s372 = sphi 0, %s369
    %s373 = sphi 0, %s372
    %s389 = sphi 0, %s373
    %s395 = sphi 0, %s397
    %s398 = sphi 0, %s395
    %s399 = sphi 0, %s398
    %s415 = sphi 0, %s399
  $region4: #{msne_forward.1} parent=0 // loop_header_branch
    %24 = sbr.rel (%p22) target = $region8
  $region5: #{msne_forward.1} parent=0 // loop_body
    %s26 = ssub.s32 %s21, 1
    %s27 = ssub.s32 %s21, 2
    %s28 = sadd.s32 %s21, 1
    %s29 = ssub.s32 %s21, %s28
    %p30 = scmp.eq.s32.totalorder %s29, 0
    %s32 = sadd.s32 %s31, 1
    %s33 = scalar_select %p30, %s31, %s32
    %p36 = pneg %p30
    %p37 = scmp.eq.s32.totalorder %s21, 1
    %p38 = por %p36, %p37
    %p39 = scmp.ne.s32.totalorder %s31, %s34
    %p40 = scmp.eq.s32.totalorder %s21, 0
    %p41 = por %p39, %p40
    %p42 = scmp.ne.s32.totalorder %s31, %s34
    %p43 = scmp.eq.s32.totalorder %s26, 1
    %p44 = por %p42, %p43
    %p45 = scmp.ne.s32.totalorder %s34, %s35
    %p46 = scmp.eq.s32.totalorder %s26, 0
    %p47 = por %p45, %p46
    %p48 = scmp.ne.s32.totalorder %s34, %s35
    %p49 = scmp.eq.s32.totalorder %s27, 1
    %p50 = por %p48, %p49
    %p52 = scmp.ne.s32.totalorder %s35, %s51
    %p53 = scmp.eq.s32.totalorder %s27, 0
    %p54 = por %p52, %p53
    %s55 = ssub.s32 %s21, %s28
    %p56 = scmp.eq.s32.totalorder %s55, 0
    %s58 = sadd.s32 %s57, 1
    %s59 = scalar_select %p56, %s57, %s58
    %p62 = pneg %p56
    %p63 = scmp.eq.s32.totalorder %s21, 1
    %p64 = por %p62, %p63
    %p65 = scmp.ne.s32.totalorder %s57, %s60
    %p66 = scmp.eq.s32.totalorder %s21, 0
    %p67 = por %p65, %p66
    %p68 = scmp.ne.s32.totalorder %s57, %s60
    %p69 = scmp.eq.s32.totalorder %s26, 1
    %p70 = por %p68, %p69
    %p71 = scmp.ne.s32.totalorder %s60, %s61
    %p72 = scmp.eq.s32.totalorder %s26, 0
    %p73 = por %p71, %p72
    %p74 = scmp.ne.s32.totalorder %s60, %s61
    %p75 = scmp.eq.s32.totalorder %s27, 1
    %p76 = por %p74, %p75
    %p78 = scmp.ne.s32.totalorder %s61, %s77
    %p79 = scmp.eq.s32.totalorder %s27, 0
    %p80 = por %p78, %p79
    %s81 = ssub.s32 %s21, %s28
    %p82 = scmp.eq.s32.totalorder %s81, 0
    %s84 = sadd.s32 %s83, 1
    %s85 = scalar_select %p82, %s83, %s84
    %p88 = pneg %p82
    %p89 = scmp.eq.s32.totalorder %s21, 1
    %p90 = por %p88, %p89
    %p91 = scmp.ne.s32.totalorder %s83, %s86
    %p92 = scmp.eq.s32.totalorder %s21, 0
    %p93 = por %p91, %p92
    %p94 = scmp.ne.s32.totalorder %s83, %s86
    %p95 = scmp.eq.s32.totalorder %s26, 1
    %p96 = por %p94, %p95
    %p97 = scmp.ne.s32.totalorder %s86, %s87
    %p98 = scmp.eq.s32.totalorder %s26, 0
    %p99 = por %p97, %p98
    %p100 = scmp.ne.s32.totalorder %s86, %s87
    %p101 = scmp.eq.s32.totalorder %s27, 1
    %p102 = por %p100, %p101
    %p104 = scmp.ne.s32.totalorder %s87, %s103
    %p105 = scmp.eq.s32.totalorder %s27, 0
    %p106 = por %p104, %p105
    %s107 = ssub.s32 %s21, %s28
    %p108 = scmp.eq.s32.totalorder %s107, 0
    %s110 = sadd.s32 %s109, 1
    %s111 = scalar_select %p108, %s109, %s110
    %p114 = pneg %p108
    %p115 = scmp.eq.s32.totalorder %s21, 1
    %p116 = por %p114, %p115
    %p117 = scmp.ne.s32.totalorder %s109, %s112
    %p118 = scmp.eq.s32.totalorder %s21, 0
    %p119 = por %p117, %p118
    %p120 = scmp.ne.s32.totalorder %s109, %s112
    %p121 = scmp.eq.s32.totalorder %s26, 1
    %p122 = por %p120, %p121
    %p123 = scmp.ne.s32.totalorder %s112, %s113
    %p124 = scmp.eq.s32.totalorder %s26, 0
    %p125 = por %p123, %p124
    %p126 = scmp.ne.s32.totalorder %s112, %s113
    %p127 = scmp.eq.s32.totalorder %s27, 1
    %p128 = por %p126, %p127
    %p130 = scmp.ne.s32.totalorder %s113, %s129
    %p131 = scmp.eq.s32.totalorder %s27, 0
    %p132 = por %p130, %p131
    %s133 = ssub.s32 %s21, %s28
    %p134 = scmp.eq.s32.totalorder %s133, 0
    %s136 = sadd.s32 %s135, 1
    %s137 = scalar_select %p134, %s135, %s136
    %p140 = pneg %p134
    %p141 = scmp.eq.s32.totalorder %s21, 1
    %p142 = por %p140, %p141
    %p143 = scmp.ne.s32.totalorder %s135, %s138
    %p144 = scmp.eq.s32.totalorder %s21, 0
    %p145 = por %p143, %p144
    %p146 = scmp.ne.s32.totalorder %s135, %s138
    %p147 = scmp.eq.s32.totalorder %s26, 1
    %p148 = por %p146, %p147
    %p149 = scmp.ne.s32.totalorder %s138, %s139
    %p150 = scmp.eq.s32.totalorder %s26, 0
    %p151 = por %p149, %p150
    %p152 = scmp.ne.s32.totalorder %s138, %s139
    %p153 = scmp.eq.s32.totalorder %s27, 1
    %p154 = por %p152, %p153
    %p156 = scmp.ne.s32.totalorder %s139, %s155
    %p157 = scmp.eq.s32.totalorder %s27, 0
    %p158 = por %p156, %p157
    %s159 = ssub.s32 %s21, %s28
    %p160 = scmp.eq.s32.totalorder %s159, 0
    %s162 = sadd.s32 %s161, 1
    %s163 = scalar_select %p160, %s161, %s162
    %p166 = pneg %p160
    %p167 = scmp.eq.s32.totalorder %s21, 1
    %p168 = por %p166, %p167
    %p169 = scmp.ne.s32.totalorder %s161, %s164
    %p170 = scmp.eq.s32.totalorder %s21, 0
    %p171 = por %p169, %p170
    %p172 = scmp.ne.s32.totalorder %s161, %s164
    %p173 = scmp.eq.s32.totalorder %s26, 1
    %p174 = por %p172, %p173
    %p175 = scmp.ne.s32.totalorder %s164, %s165
    %p176 = scmp.eq.s32.totalorder %s26, 0
    %p177 = por %p175, %p176
    %p178 = scmp.ne.s32.totalorder %s164, %s165
    %p179 = scmp.eq.s32.totalorder %s27, 1
    %p180 = por %p178, %p179
    %p182 = scmp.ne.s32.totalorder %s165, %s181
    %p183 = scmp.eq.s32.totalorder %s27, 0
    %p184 = por %p182, %p183
    %s185 = ssub.s32 %s21, %s28
    %p186 = scmp.eq.s32.totalorder %s185, 0
    %s188 = sadd.s32 %s187, 1
    %s189 = scalar_select %p186, %s187, %s188
    %p192 = pneg %p186
    %p193 = scmp.eq.s32.totalorder %s21, 1
    %p194 = por %p192, %p193
    %p195 = scmp.ne.s32.totalorder %s187, %s190
    %p196 = scmp.eq.s32.totalorder %s21, 0
    %p197 = por %p195, %p196
    %p198 = scmp.ne.s32.totalorder %s187, %s190
    %p199 = scmp.eq.s32.totalorder %s26, 1
    %p200 = por %p198, %p199
    %p201 = scmp.ne.s32.totalorder %s190, %s191
    %p202 = scmp.eq.s32.totalorder %s26, 0
    %p203 = por %p201, %p202
    %p204 = scmp.ne.s32.totalorder %s190, %s191
    %p205 = scmp.eq.s32.totalorder %s27, 1
    %p206 = por %p204, %p205
    %p208 = scmp.ne.s32.totalorder %s191, %s207
    %p209 = scmp.eq.s32.totalorder %s27, 0
    %p210 = por %p208, %p209
    %s211 = ssub.s32 %s21, %s28
    %p212 = scmp.eq.s32.totalorder %s211, 0
    %s214 = sadd.s32 %s213, 1
    %s215 = scalar_select %p212, %s213, %s214
    %p218 = pneg %p212
    %p219 = scmp.eq.s32.totalorder %s21, 1
    %p220 = por %p218, %p219
    %p221 = scmp.ne.s32.totalorder %s213, %s216
    %p222 = scmp.eq.s32.totalorder %s21, 0
    %p223 = por %p221, %p222
    %p224 = scmp.ne.s32.totalorder %s213, %s216
    %p225 = scmp.eq.s32.totalorder %s26, 1
    %p226 = por %p224, %p225
    %p227 = scmp.ne.s32.totalorder %s216, %s217
    %p228 = scmp.eq.s32.totalorder %s26, 0
    %p229 = por %p227, %p228
    %p230 = scmp.ne.s32.totalorder %s216, %s217
    %p231 = scmp.eq.s32.totalorder %s27, 1
    %p232 = por %p230, %p231
    %p234 = scmp.ne.s32.totalorder %s217, %s233
    %p235 = scmp.eq.s32.totalorder %s27, 0
    %p236 = por %p234, %p235
    %s237 = ssub.s32 %s21, %s28
    %p238 = scmp.eq.s32.totalorder %s237, 0
    %s240 = sadd.s32 %s239, 1
    %s241 = scalar_select %p238, %s239, %s240
    %p244 = pneg %p238
    %p245 = scmp.eq.s32.totalorder %s21, 1
    %p246 = por %p244, %p245
    %p247 = scmp.ne.s32.totalorder %s239, %s242
    %p248 = scmp.eq.s32.totalorder %s21, 0
    %p249 = por %p247, %p248
    %p250 = scmp.ne.s32.totalorder %s239, %s242
    %p251 = scmp.eq.s32.totalorder %s26, 1
    %p252 = por %p250, %p251
    %p253 = scmp.ne.s32.totalorder %s242, %s243
    %p254 = scmp.eq.s32.totalorder %s26, 0
    %p255 = por %p253, %p254
    %p256 = scmp.ne.s32.totalorder %s242, %s243
    %p257 = scmp.eq.s32.totalorder %s27, 1
    %p258 = por %p256, %p257
    %p260 = scmp.ne.s32.totalorder %s243, %s259
    %p261 = scmp.eq.s32.totalorder %s27, 0
    %p262 = por %p260, %p261
    %s263 = ssub.s32 %s21, %s28
    %p264 = scmp.eq.s32.totalorder %s263, 0
    %s266 = sadd.s32 %s265, 1
    %s267 = scalar_select %p264, %s265, %s266
    %p270 = pneg %p264
    %p271 = scmp.eq.s32.totalorder %s21, 1
    %p272 = por %p270, %p271
    %p273 = scmp.ne.s32.totalorder %s265, %s268
    %p274 = scmp.eq.s32.totalorder %s21, 0
    %p275 = por %p273, %p274
    %p276 = scmp.ne.s32.totalorder %s265, %s268
    %p277 = scmp.eq.s32.totalorder %s26, 1
    %p278 = por %p276, %p277
    %p279 = scmp.ne.s32.totalorder %s268, %s269
    %p280 = scmp.eq.s32.totalorder %s26, 0
    %p281 = por %p279, %p280
    %p282 = scmp.ne.s32.totalorder %s268, %s269
    %p283 = scmp.eq.s32.totalorder %s27, 1
    %p284 = por %p282, %p283
    %p286 = scmp.ne.s32.totalorder %s269, %s285
    %p287 = scmp.eq.s32.totalorder %s27, 0
    %p288 = por %p286, %p287
    %s289 = ssub.s32 %s21, %s28
    %p290 = scmp.eq.s32.totalorder %s289, 0
    %s292 = sadd.s32 %s291, 1
    %s293 = scalar_select %p290, %s291, %s292
    %p296 = pneg %p290
    %p297 = scmp.eq.s32.totalorder %s21, 1
    %p298 = por %p296, %p297
    %p299 = scmp.ne.s32.totalorder %s291, %s294
    %p300 = scmp.eq.s32.totalorder %s21, 0
    %p301 = por %p299, %p300
    %p302 = scmp.ne.s32.totalorder %s291, %s294
    %p303 = scmp.eq.s32.totalorder %s26, 1
    %p304 = por %p302, %p303
    %p305 = scmp.ne.s32.totalorder %s294, %s295
    %p306 = scmp.eq.s32.totalorder %s26, 0
    %p307 = por %p305, %p306
    %p308 = scmp.ne.s32.totalorder %s294, %s295
    %p309 = scmp.eq.s32.totalorder %s27, 1
    %p310 = por %p308, %p309
    %p312 = scmp.ne.s32.totalorder %s295, %s311
    %p313 = scmp.eq.s32.totalorder %s27, 0
    %p314 = por %p312, %p313
    %s315 = ssub.s32 %s21, %s28
    %p316 = scmp.eq.s32.totalorder %s315, 0
    %s318 = sadd.s32 %s317, 1
    %s319 = scalar_select %p316, %s317, %s318
    %p322 = pneg %p316
    %p323 = scmp.eq.s32.totalorder %s21, 1
    %p324 = por %p322, %p323
    %p325 = scmp.ne.s32.totalorder %s317, %s320
    %p326 = scmp.eq.s32.totalorder %s21, 0
    %p327 = por %p325, %p326
    %p328 = scmp.ne.s32.totalorder %s317, %s320
    %p329 = scmp.eq.s32.totalorder %s26, 1
    %p330 = por %p328, %p329
    %p331 = scmp.ne.s32.totalorder %s320, %s321
    %p332 = scmp.eq.s32.totalorder %s26, 0
    %p333 = por %p331, %p332
    %p334 = scmp.ne.s32.totalorder %s320, %s321
    %p335 = scmp.eq.s32.totalorder %s27, 1
    %p336 = por %p334, %p335
    %p338 = scmp.ne.s32.totalorder %s321, %s337
    %p339 = scmp.eq.s32.totalorder %s27, 0
    %p340 = por %p338, %p339
    %s341 = ssub.s32 %s21, %s28
    %p342 = scmp.eq.s32.totalorder %s341, 0
    %s344 = sadd.s32 %s343, 1
    %s345 = scalar_select %p342, %s343, %s344
    %p348 = pneg %p342
    %p349 = scmp.eq.s32.totalorder %s21, 1
    %p350 = por %p348, %p349
    %p351 = scmp.ne.s32.totalorder %s343, %s346
    %p352 = scmp.eq.s32.totalorder %s21, 0
    %p353 = por %p351, %p352
    %p354 = scmp.ne.s32.totalorder %s343, %s346
    %p355 = scmp.eq.s32.totalorder %s26, 1
    %p356 = por %p354, %p355
    %p357 = scmp.ne.s32.totalorder %s346, %s347
    %p358 = scmp.eq.s32.totalorder %s26, 0
    %p359 = por %p357, %p358
    %p360 = scmp.ne.s32.totalorder %s346, %s347
    %p361 = scmp.eq.s32.totalorder %s27, 1
    %p362 = por %p360, %p361
    %p364 = scmp.ne.s32.totalorder %s347, %s363
    %p365 = scmp.eq.s32.totalorder %s27, 0
    %p366 = por %p364, %p365
    %s367 = ssub.s32 %s21, %s28
    %p368 = scmp.eq.s32.totalorder %s367, 0
    %s370 = sadd.s32 %s369, 1
    %s371 = scalar_select %p368, %s369, %s370
    %p374 = pneg %p368
    %p375 = scmp.eq.s32.totalorder %s21, 1
    %p376 = por %p374, %p375
    %p377 = scmp.ne.s32.totalorder %s369, %s372
    %p378 = scmp.eq.s32.totalorder %s21, 0
    %p379 = por %p377, %p378
    %p380 = scmp.ne.s32.totalorder %s369, %s372
    %p381 = scmp.eq.s32.totalorder %s26, 1
    %p382 = por %p380, %p381
    %p383 = scmp.ne.s32.totalorder %s372, %s373
    %p384 = scmp.eq.s32.totalorder %s26, 0
    %p385 = por %p383, %p384
    %p386 = scmp.ne.s32.totalorder %s372, %s373
    %p387 = scmp.eq.s32.totalorder %s27, 1
    %p388 = por %p386, %p387
    %p390 = scmp.ne.s32.totalorder %s373, %s389
    %p391 = scmp.eq.s32.totalorder %s27, 0
    %p392 = por %p390, %p391
    %s393 = ssub.s32 %s21, %s28
    %p394 = scmp.eq.s32.totalorder %s393, 0
    %s396 = sadd.s32 %s395, 1
    %s397 = scalar_select %p394, %s395, %s396
    %p400 = pneg %p394
    %p401 = scmp.eq.s32.totalorder %s21, 1
    %p402 = por %p400, %p401
    %p403 = scmp.ne.s32.totalorder %s395, %s398
    %p404 = scmp.eq.s32.totalorder %s21, 0
    %p405 = por %p403, %p404
    %p406 = scmp.ne.s32.totalorder %s395, %s398
    %p407 = scmp.eq.s32.totalorder %s26, 1
    %p408 = por %p406, %p407
    %p409 = scmp.ne.s32.totalorder %s398, %s399
    %p410 = scmp.eq.s32.totalorder %s26, 0
    %p411 = por %p409, %p410
    %p412 = scmp.ne.s32.totalorder %s398, %s399
    %p413 = scmp.eq.s32.totalorder %s27, 1
    %p414 = por %p412, %p413
    %p416 = scmp.ne.s32.totalorder %s399, %s415
    %p417 = scmp.eq.s32.totalorder %s27, 0
    %p418 = por %p416, %p417
    %p419 = scmp.le.s32.totalorder 1, %s21
    %p420 = scmp.lt.s32.totalorder %s21, 3
    %p421 = pnand %p419, %p420
    %p422 = pneg %p421
    // Predicated region
    $region9: #{msne_forward.1} parent=5 // pred_check
      _
    $region10: #{msne_forward.1} parent=5 // pred_check_branch
      %424 = sbr.rel (%p421) target = $region12
    $region11: #{msne_forward.1} parent=5 // pred_region
      %s425 = ssub.s32 %s21, 1
    $region12: #{msne_forward.1} parent=5 // pred_fallthru
      _
    %p426 = scmp.lt.s32.totalorder %s21, 2
    // Predicated region
    $region13: #{msne_forward.1} parent=5 // pred_check
      %p427 = pneg %p426
    $region14: #{msne_forward.1} parent=5 // pred_check_branch
      %429 = sbr.rel (%p427) target = $region16
    $region15: #{msne_forward.1} parent=5 // pred_region
      // Predicated region
      $region17: #{msne_forward.1} parent=15 // pred_check
        %p430 = pneg %p41
      $region18: #{msne_forward.1} parent=15 // pred_check_branch
        %432 = sbr.rel (%p430) target = $region20
      $region19: #{msne_forward.1} parent=15 // pred_region
        %p433 = scmp.lt.s32.totalorder %s21, 1
        %s434 = scalar_select %p433, %s21, 1
        %s435 = smul.addr %s434, 32
        %s436 = smul.addr %s435, 4
        %s437 = scalar_lea.vmem %s0, %s436
      $region20: #{msne_forward.1} parent=15 // pred_fallthru
        _
      // Predicated region
      $region21: #{msne_forward.1} parent=15 // pred_check
        %p438 = pneg %p67
      $region22: #{msne_forward.1} parent=15 // pred_check_branch
        %440 = sbr.rel (%p438) target = $region24
      $region23: #{msne_forward.1} parent=15 // pred_region
        %p441 = scmp.lt.s32.totalorder %s21, 1
        %s442 = scalar_select %p441, %s21, 1
        %s443 = smul.addr %s442, 32
        %s444 = smul.addr %s443, 8
        %s445 = scalar_lea.vmem %s1, %s444
      $region24: #{msne_forward.1} parent=15 // pred_fallthru
        _
      // Predicated region
      $region25: #{msne_forward.1} parent=15 // pred_check
        %p446 = pneg %p93
      $region26: #{msne_forward.1} parent=15 // pred_check_branch
        %448 = sbr.rel (%p446) target = $region28
      $region27: #{msne_forward.1} parent=15 // pred_region
        %p449 = scmp.lt.s32.totalorder %s21, 1
        %s450 = scalar_select %p449, %s21, 1
        %s451 = smul.addr %s450, 32
        %s452 = smul.addr %s451, 8
        %s453 = scalar_lea.vmem %s2, %s452
      $region28: #{msne_forward.1} parent=15 // pred_fallthru
        _
      // Predicated region
      $region29: #{msne_forward.1} parent=15 // pred_check
        %p454 = pneg %p119
      $region30: #{msne_forward.1} parent=15 // pred_check_branch
        %456 = sbr.rel (%p454) target = $region32
      $region31: #{msne_forward.1} parent=15 // pred_region
        %p457 = scmp.lt.s32.totalorder %s21, 1
        %s458 = scalar_select %p457, %s21, 1
        %s459 = smul.addr %s458, 32
        %s460 = smul.addr %s459, 4
        %s461 = scalar_lea.vmem %s3, %s460
      $region32: #{msne_forward.1} parent=15 // pred_fallthru
        _
      // Predicated region
      $region33: #{msne_forward.1} parent=15 // pred_check
        %p462 = pneg %p145
      $region34: #{msne_forward.1} parent=15 // pred_check_branch
        %464 = sbr.rel (%p462) target = $region36
      $region35: #{msne_forward.1} parent=15 // pred_region
        %p465 = scmp.lt.s32.totalorder %s21, 1
        %s466 = scalar_select %p465, %s21, 1
        %s467 = smul.addr %s466, 2
        %s468 = scalar_lea.vmem %s4, %s467
      $region36: #{msne_forward.1} parent=15 // pred_fallthru
        _
      // Predicated region
      $region37: #{msne_forward.1} parent=15 // pred_check
        %p469 = pneg %p171
      $region38: #{msne_forward.1} parent=15 // pred_check_branch
        %471 = sbr.rel (%p469) target = $region40
      $region39: #{msne_forward.1} parent=15 // pred_region
        %p472 = scmp.lt.s32.totalorder %s21, 1
        %s473 = scalar_select %p472, %s21, 1
        %s474 = smul.addr %s473, 32
        %s475 = smul.addr %s474, 4
        %s476 = scalar_lea.vmem %s5, %s475
      $region40: #{msne_forward.1} parent=15 // pred_fallthru
        _
      // Predicated region
      $region41: #{msne_forward.1} parent=15 // pred_check
        %p477 = pneg %p197
      $region42: #{msne_forward.1} parent=15 // pred_check_branch
        %479 = sbr.rel (%p477) target = $region44
      $region43: #{msne_forward.1} parent=15 // pred_region
        %p480 = scmp.lt.s32.totalorder %s21, 1
        %s481 = scalar_select %p480, %s21, 1
        %s482 = scalar_lea.vmem %s6, %s481
      $region44: #{msne_forward.1} parent=15 // pred_fallthru
        _
      // Predicated region
      $region45: #{msne_forward.1} parent=15 // pred_check
        %p483 = pneg %p223
      $region46: #{msne_forward.1} parent=15 // pred_check_branch
        %485 = sbr.rel (%p483) target = $region48
      $region47: #{msne_forward.1} parent=15 // pred_region
        %p486 = scmp.lt.s32.totalorder %s21, 1
        %s487 = scalar_select %p486, %s21, 1
        %s488 = smul.addr %s487, 16
        %s489 = smul.addr %s488, 4
        %s490 = scalar_lea.vmem %s7, %s489
      $region48: #{msne_forward.1} parent=15 // pred_fallthru
        _
      // Predicated region
      $region49: #{msne_forward.1} parent=15 // pred_check
        %p491 = pneg %p249
      $region50: #{msne_forward.1} parent=15 // pred_check_branch
        %493 = sbr.rel (%p491) target = $region52
      $region51: #{msne_forward.1} parent=15 // pred_region
        %p494 = scmp.lt.s32.totalorder %s21, 1
        %s495 = scalar_select %p494, %s21, 1
        %s496 = scalar_lea.vmem %s8, %s495
      $region52: #{msne_forward.1} parent=15 // pred_fallthru
        _
      // Predicated region
      $region53: #{msne_forward.1} parent=15 // pred_check
        %p497 = pneg %p275
      $region54: #{msne_forward.1} parent=15 // pred_check_branch
        %499 = sbr.rel (%p497) target = $region56
      $region55: #{msne_forward.1} parent=15 // pred_region
        %p500 = scmp.lt.s32.totalorder %s21, 1
        %s501 = scalar_select %p500, %s21, 1
        %s502 = smul.addr %s501, 32
        %s503 = smul.addr %s502, 4
        %s504 = scalar_lea.vmem %s9, %s503
      $region56: #{msne_forward.1} parent=15 // pred_fallthru
        _
      // Predicated region
      $region57: #{msne_forward.1} parent=15 // pred_check
        %p505 = pneg %p301
      $region58: #{msne_forward.1} parent=15 // pred_check_branch
        %507 = sbr.rel (%p505) target = $region60
      $region59: #{msne_forward.1} parent=15 // pred_region
        %p508 = scmp.lt.s32.totalorder %s21, 1
        %s509 = scalar_select %p508, %s21, 1
        %s510 = smul.addr %s509, 2
        %s511 = scalar_lea.vmem %s10, %s510
      $region60: #{msne_forward.1} parent=15 // pred_fallthru
        _
      // Predicated region
      $region61: #{msne_forward.1} parent=15 // pred_check
        %p512 = pneg %p327
      $region62: #{msne_forward.1} parent=15 // pred_check_branch
        %514 = sbr.rel (%p512) target = $region64
      $region63: #{msne_forward.1} parent=15 // pred_region
        %p515 = scmp.lt.s32.totalorder %s21, 1
        %s516 = scalar_select %p515, %s21, 1
        %s517 = smul.addr %s516, 32
        %s518 = smul.addr %s517, 4
        %s519 = scalar_lea.vmem %s11, %s518
      $region64: #{msne_forward.1} parent=15 // pred_fallthru
        _
      // Predicated region
      $region65: #{msne_forward.1} parent=15 // pred_check
        %p520 = pneg %p353
      $region66: #{msne_forward.1} parent=15 // pred_check_branch
        %522 = sbr.rel (%p520) target = $region68
      $region67: #{msne_forward.1} parent=15 // pred_region
        %p523 = scmp.lt.s32.totalorder %s21, 1
        %s524 = scalar_select %p523, %s21, 1
        %s525 = scalar_lea.vmem %s12, %s524
      $region68: #{msne_forward.1} parent=15 // pred_fallthru
        _
    $region16: #{msne_forward.1} parent=5 // pred_fallthru
      _
    %p526 = scmp.le.s32.totalorder 1, %s21
    %p527 = scmp.lt.s32.totalorder %s21, 3
    %p528 = pnand %p526, %p527
    %p529 = pneg %p528
    // Predicated region
    $region69: #{msne_forward.1} parent=5 // pred_check
      _
    $region70: #{msne_forward.1} parent=5 // pred_check_branch
      %531 = sbr.rel (%p528) target = $region72
    $region71: #{msne_forward.1} parent=5 // pred_region
      %s532 = ssub.s32 %s21, 1
      %p533 = scmp.lt.s32.totalorder %s26, 1
      %s534 = scalar_select %p533, %s26, 1
      %s535 = smul.addr %s534, 32
      %s536 = smul.addr %s535, 4
      %s537 = scalar_lea.vmem %s0, %s536
      %p538 = pneg %p47
      %p539 = pneg %p44
      %p540 = scmp.lt.s32.totalorder %s26, 1
      %s541 = scalar_select %p540, %s26, 1
      %s542 = smul.addr %s541, 32
      %s543 = smul.addr %s542, 8
      %s544 = scalar_lea.vmem %s1, %s543
      %p545 = pneg %p73
      %p546 = pneg %p70
      %p547 = scmp.lt.s32.totalorder %s26, 1
      %s548 = scalar_select %p547, %s26, 1
      %s549 = smul.addr %s548, 32
      %s550 = smul.addr %s549, 8
      %s551 = scalar_lea.vmem %s2, %s550
      %p552 = pneg %p99
      %p553 = pneg %p96
      %p554 = scmp.lt.s32.totalorder %s26, 1
      %s555 = scalar_select %p554, %s26, 1
      %s556 = smul.addr %s555, 32
      %s557 = smul.addr %s556, 4
      %s558 = scalar_lea.vmem %s3, %s557
      %p559 = pneg %p125
      %p560 = pneg %p122
      %p561 = scmp.lt.s32.totalorder %s26, 1
      %s562 = scalar_select %p561, %s26, 1
      %s563 = smul.addr %s562, 2
      %s564 = scalar_lea.vmem %s4, %s563
      %p565 = pneg %p151
      %p566 = pneg %p148
      %p567 = scmp.lt.s32.totalorder %s26, 1
      %s568 = scalar_select %p567, %s26, 1
      %s569 = smul.addr %s568, 32
      %s570 = smul.addr %s569, 4
      %s571 = scalar_lea.vmem %s5, %s570
      %p572 = pneg %p177
      %p573 = pneg %p174
      %p574 = scmp.lt.s32.totalorder %s26, 1
      %s575 = scalar_select %p574, %s26, 1
      %s576 = scalar_lea.vmem %s6, %s575
      %p577 = pneg %p203
      %p578 = pneg %p200
      %p579 = scmp.lt.s32.totalorder %s26, 1
      %s580 = scalar_select %p579, %s26, 1
      %s581 = smul.addr %s580, 16
      %s582 = smul.addr %s581, 4
      %s583 = scalar_lea.vmem %s7, %s582
      %p584 = pneg %p229
      %p585 = pneg %p226
      %p586 = scmp.lt.s32.totalorder %s26, 1
      %s587 = scalar_select %p586, %s26, 1
      %s588 = scalar_lea.vmem %s8, %s587
      %p589 = pneg %p255
      %p590 = pneg %p252
      %p591 = scmp.lt.s32.totalorder %s26, 1
      %s592 = scalar_select %p591, %s26, 1
      %s593 = smul.addr %s592, 32
      %s594 = smul.addr %s593, 4
      %s595 = scalar_lea.vmem %s9, %s594
      %p596 = pneg %p281
      %p597 = pneg %p278
      %p598 = scmp.lt.s32.totalorder %s26, 1
      %s599 = scalar_select %p598, %s26, 1
      %s600 = smul.addr %s599, 2
      %s601 = scalar_lea.vmem %s10, %s600
      %p602 = pneg %p307
      %p603 = pneg %p304
      %p604 = scmp.lt.s32.totalorder %s26, 1
      %s605 = scalar_select %p604, %s26, 1
      %s606 = smul.addr %s605, 32
      %s607 = smul.addr %s606, 4
      %s608 = scalar_lea.vmem %s11, %s607
      %p609 = pneg %p333
      %p610 = pneg %p330
      %p611 = scmp.lt.s32.totalorder %s26, 1
      %s612 = scalar_select %p611, %s26, 1
      %s613 = scalar_lea.vmem %s12, %s612
      %p614 = pneg %p359
      %p615 = pneg %p356
      %p616 = pneg %p385
      %p617 = pneg %p382
      %p618 = scmp.lt.s32.totalorder %s26, 1
      %s619 = scalar_select %p618, %s26, 1
      %s620 = smul.addr %s619, 32
      %s621 = smul.addr %s620, 8
      %s622 = scalar_lea.vmem %s13, %s621
      %p623 = pneg %p411
      %p624 = pneg %p408
      %p625 = scmp.lt.s32.totalorder %s26, 1
      %s626 = scalar_select %p625, %s26, 1
      %s627 = smul.addr %s626, 32
      %s628 = smul.addr %s627, 8
      %s629 = scalar_lea.vmem %s14, %s628
      %p630 = scmp.lt.s32.totalorder %s26, 1
      %s631 = scalar_select %p630, %s26, 1
      %s632 = smul.addr %s631, 32
      %s633 = smul.addr %s632, 4
      %s634 = scalar_lea.vmem %s0, %s633
      %p635 = scmp.lt.s32.totalorder %s26, 1
      %s636 = scalar_select %p635, %s26, 1
      %s637 = smul.addr %s636, 32
      %s638 = smul.addr %s637, 8
      %s639 = scalar_lea.vmem %s1, %s638
      %p640 = scmp.lt.s32.totalorder %s26, 1
      %s641 = scalar_select %p640, %s26, 1
      %s642 = smul.addr %s641, 32
      %s643 = smul.addr %s642, 8
      %s644 = scalar_lea.vmem %s2, %s643
      %p645 = scmp.lt.s32.totalorder %s26, 1
      %s646 = scalar_select %p645, %s26, 1
      %s647 = smul.addr %s646, 32
      %s648 = smul.addr %s647, 4
      %s649 = scalar_lea.vmem %s3, %s648
      %p650 = scmp.lt.s32.totalorder %s26, 1
      %s651 = scalar_select %p650, %s26, 1
      %s652 = smul.addr %s651, 2
      %s653 = scalar_lea.vmem %s4, %s652
      %p654 = scmp.lt.s32.totalorder %s26, 1
      %s655 = scalar_select %p654, %s26, 1
      %s656 = smul.addr %s655, 32
      %s657 = smul.addr %s656, 4
      %s658 = scalar_lea.vmem %s5, %s657
      %p659 = scmp.lt.s32.totalorder %s26, 1
      %s660 = scalar_select %p659, %s26, 1
      %s661 = scalar_lea.vmem %s6, %s660
      %p662 = scmp.lt.s32.totalorder %s26, 1
      %s663 = scalar_select %p662, %s26, 1
      %s664 = smul.addr %s663, 16
      %s665 = smul.addr %s664, 4
      %s666 = scalar_lea.vmem %s7, %s665
      %p667 = scmp.lt.s32.totalorder %s26, 1
      %s668 = scalar_select %p667, %s26, 1
      %s669 = scalar_lea.vmem %s8, %s668
      %p670 = scmp.lt.s32.totalorder %s26, 1
      %s671 = scalar_select %p670, %s26, 1
      %s672 = smul.addr %s671, 32
      %s673 = smul.addr %s672, 4
      %s674 = scalar_lea.vmem %s9, %s673
      %p675 = scmp.lt.s32.totalorder %s26, 1
      %s676 = scalar_select %p675, %s26, 1
      %s677 = smul.addr %s676, 2
      %s678 = scalar_lea.vmem %s10, %s677
      %p679 = scmp.lt.s32.totalorder %s26, 1
      %s680 = scalar_select %p679, %s26, 1
      %s681 = smul.addr %s680, 32
      %s682 = smul.addr %s681, 4
      %s683 = scalar_lea.vmem %s11, %s682
      %p684 = scmp.lt.s32.totalorder %s26, 1
      %s685 = scalar_select %p684, %s26, 1
      %s686 = scalar_lea.vmem %s12, %s685
      %p687 = scmp.lt.s32.totalorder %s26, 1
      %s688 = scalar_select %p687, %s26, 1
      %s689 = smul.addr %s688, 32
      %s690 = smul.addr %s689, 8
      %s691 = scalar_lea.vmem %s13, %s690
      %p692 = scmp.lt.s32.totalorder %s26, 1
      %s693 = scalar_select %p692, %s26, 1
      %s694 = smul.addr %s693, 32
      %s695 = smul.addr %s694, 8
      %s696 = scalar_lea.vmem %s14, %s695
      %v697 = vld [vmem:[%s634] sm:$0xf]
      %v698 = vld [vmem:[%s634 + $0x4] sm:$0xf]
      %v699 = vld [vmem:[%s634 + $0x8] sm:$0xf]
      %v700 = vld [vmem:[%s634 + $0xc] sm:$0xf]
      %v701 = vld [vmem:[%s634 + $0x10] sm:$0xf]
      %v702 = vld [vmem:[%s634 + $0x14] sm:$0xf]
      %v703 = vld [vmem:[%s634 + $0x18] sm:$0xf]
      %v704 = vld [vmem:[%s634 + $0x1c] sm:$0xf]
      %v705 = vld [vmem:[%s634 + $0x20] sm:$0xf]
      %v706 = vld [vmem:[%s634 + $0x24] sm:$0xf]
      %v707 = vld [vmem:[%s634 + $0x28] sm:$0xf]
      %v708 = vld [vmem:[%s634 + $0x2c] sm:$0xf]
      %v709 = vld [vmem:[%s634 + $0x30] sm:$0xf]
      %v710 = vld [vmem:[%s634 + $0x34] sm:$0xf]
      %v711 = vld [vmem:[%s634 + $0x38] sm:$0xf]
      %v712 = vld [vmem:[%s634 + $0x3c] sm:$0xf]
      %v713 = vld [vmem:[%s634 + $0x40] sm:$0xf]
      %v714 = vld [vmem:[%s634 + $0x44] sm:$0xf]
      %v715 = vld [vmem:[%s634 + $0x48] sm:$0xf]
      %v716 = vld [vmem:[%s634 + $0x4c] sm:$0xf]
      %v717 = vld [vmem:[%s634 + $0x50] sm:$0xf]
      %v718 = vld [vmem:[%s634 + $0x54] sm:$0xf]
      %v719 = vld [vmem:[%s634 + $0x58] sm:$0xf]
      %v720 = vld [vmem:[%s634 + $0x5c] sm:$0xf]
      %v721 = vld [vmem:[%s634 + $0x60] sm:$0xf]
      %v722 = vld [vmem:[%s634 + $0x64] sm:$0xf]
      %v723 = vld [vmem:[%s634 + $0x68] sm:$0xf]
      %v724 = vld [vmem:[%s634 + $0x6c] sm:$0xf]
      %v725 = vld [vmem:[%s634 + $0x70] sm:$0xf]
      %v726 = vld [vmem:[%s634 + $0x74] sm:$0xf]
      %v727 = vld [vmem:[%s634 + $0x78] sm:$0xf]
      %v728 = vld [vmem:[%s634 + $0x7c] sm:$0xf]
      %v729 = vld [vmem:[%s649] sm:$0xff]
      %v730 = vld [vmem:[%s649 + $0x8] sm:$0xff]
      %v731 = vld [vmem:[%s649 + $0x10] sm:$0xff]
      %v732 = vld [vmem:[%s649 + $0x18] sm:$0xff]
      %v733 = vld [vmem:[%s649 + $0x20] sm:$0xff]
      %v734 = vld [vmem:[%s649 + $0x28] sm:$0xff]
      %v735 = vld [vmem:[%s649 + $0x30] sm:$0xff]
      %v736 = vld [vmem:[%s649 + $0x38] sm:$0xff]
      %v737 = vld [vmem:[%s649 + $0x40] sm:$0xff]
      %v738 = vld [vmem:[%s649 + $0x48] sm:$0xff]
      %v739 = vld [vmem:[%s649 + $0x50] sm:$0xff]
      %v740 = vld [vmem:[%s649 + $0x58] sm:$0xff]
      %v741 = vld [vmem:[%s649 + $0x60] sm:$0xff]
      %v742 = vld [vmem:[%s649 + $0x68] sm:$0xff]
      %v743 = vld [vmem:[%s649 + $0x70] sm:$0xff]
      %v744 = vld [vmem:[%s649 + $0x78] sm:$0xff]
      %v745 = vld [vmem:[%s653] sm:$0x3]
      %v747 = vperm.slane %v745, 0
      %v748 = vperm.slane %v745, 1
      %v783 = vunpack.c.l.b16 %v697
      %v784 = vunpack.c.l.b16 %v698
      %v785 = vunpack.c.l.b16 %v699
      %v786 = vunpack.c.l.b16 %v700
      %v787 = vunpack.c.l.b16 %v701
      %v788 = vunpack.c.l.b16 %v702
      %v789 = vunpack.c.l.b16 %v703
      %v790 = vunpack.c.l.b16 %v704
      %v791 = vunpack.c.l.b16 %v705
      %v792 = vunpack.c.l.b16 %v706
      %v793 = vunpack.c.l.b16 %v707
      %v794 = vunpack.c.l.b16 %v708
      %v795 = vunpack.c.l.b16 %v709
      %v796 = vunpack.c.l.b16 %v710
      %v797 = vunpack.c.l.b16 %v711
      %v798 = vunpack.c.l.b16 %v712
      %v799 = vunpack.c.l.b16 %v713
      %v800 = vunpack.c.l.b16 %v714
      %v801 = vunpack.c.l.b16 %v715
      %v802 = vunpack.c.l.b16 %v716
      %v803 = vunpack.c.l.b16 %v717
      %v804 = vunpack.c.l.b16 %v718
      %v805 = vunpack.c.l.b16 %v719
      %v806 = vunpack.c.l.b16 %v720
      %v807 = vunpack.c.l.b16 %v721
      %v808 = vunpack.c.l.b16 %v722
      %v809 = vunpack.c.l.b16 %v723
      %v810 = vunpack.c.l.b16 %v724
      %v811 = vunpack.c.l.b16 %v725
      %v812 = vunpack.c.l.b16 %v726
      %v813 = vunpack.c.l.b16 %v727
      %v814 = vunpack.c.l.b16 %v728
      %v815 = vpack.c.b16 %v784, %v783
      %v816 = vpack.c.b16 %v786, %v785
      %v817 = vpack.c.b16 %v788, %v787
      %v818 = vpack.c.b16 %v790, %v789
      %v819 = vpack.c.b16 %v792, %v791
      %v820 = vpack.c.b16 %v794, %v793
      %v821 = vpack.c.b16 %v796, %v795
      %v822 = vpack.c.b16 %v798, %v797
      %v823 = vpack.c.b16 %v800, %v799
      %v824 = vpack.c.b16 %v802, %v801
      %v825 = vpack.c.b16 %v804, %v803
      %v826 = vpack.c.b16 %v806, %v805
      %v827 = vpack.c.b16 %v808, %v807
      %v828 = vpack.c.b16 %v810, %v809
      %v829 = vpack.c.b16 %v812, %v811
      %v830 = vpack.c.b16 %v814, %v813
      %v863 = vunpack.c.l.b16 %v729
      %v864 = vunpack.c.h.b16 %v729
      %v865 = vunpack.c.l.b16 %v730
      %v866 = vunpack.c.h.b16 %v730
      %v867 = vunpack.c.l.b16 %v731
      %v868 = vunpack.c.h.b16 %v731
      %v869 = vunpack.c.l.b16 %v732
      %v870 = vunpack.c.h.b16 %v732
      %v871 = vunpack.c.l.b16 %v733
      %v872 = vunpack.c.h.b16 %v733
      %v873 = vunpack.c.l.b16 %v734
      %v874 = vunpack.c.h.b16 %v734
      %v875 = vunpack.c.l.b16 %v735
      %v876 = vunpack.c.h.b16 %v735
      %v877 = vunpack.c.l.b16 %v736
      %v878 = vunpack.c.h.b16 %v736
      %v879 = vunpack.c.l.b16 %v737
      %v880 = vunpack.c.h.b16 %v737
      %v881 = vunpack.c.l.b16 %v738
      %v882 = vunpack.c.h.b16 %v738
      %v883 = vunpack.c.l.b16 %v739
      %v884 = vunpack.c.h.b16 %v739
      %v885 = vunpack.c.l.b16 %v740
      %v886 = vunpack.c.h.b16 %v740
      %v887 = vunpack.c.l.b16 %v741
      %v888 = vunpack.c.h.b16 %v741
      %v889 = vunpack.c.l.b16 %v742
      %v890 = vunpack.c.h.b16 %v742
      %v891 = vunpack.c.l.b16 %v743
      %v892 = vunpack.c.h.b16 %v743
      %v893 = vunpack.c.l.b16 %v744
      %v894 = vunpack.c.h.b16 %v744
      %v895 = vpack.c.b16 %v865, %v863
      %v896 = vpack.c.b16 %v866, %v864
      %v897 = vpack.c.b16 %v869, %v867
      %v898 = vpack.c.b16 %v870, %v868
      %v899 = vpack.c.b16 %v873, %v871
      %v900 = vpack.c.b16 %v874, %v872
      %v901 = vpack.c.b16 %v877, %v875
      %v902 = vpack.c.b16 %v878, %v876
      %v903 = vpack.c.b16 %v881, %v879
      %v904 = vpack.c.b16 %v882, %v880
      %v905 = vpack.c.b16 %v885, %v883
      %v906 = vpack.c.b16 %v886, %v884
      %v907 = vpack.c.b16 %v889, %v887
      %v908 = vpack.c.b16 %v890, %v888
      %v909 = vpack.c.b16 %v893, %v891
      %v910 = vpack.c.b16 %v894, %v892
      %927 = vmatpush.bf16.msra.mxu0 %v909
      %928 = vmatpush.bf16.msra.mxu0 %v907
      %929 = vmatpush.bf16.msra.mxu0 %v905
      %930 = vmatpush.bf16.msra.mxu0 %v903
      %931 = vmatpush.bf16.msra.mxu0 %v901
      %932 = vmatpush.bf16.msra.mxu0 %v899
      %933 = vmatpush.bf16.msra.mxu0 %v897
      %934 = vmatpush.bf16.msra.mxu0 %v895
      %935 = vmatmul.bf16.gmra.mxu0 %v815
      %v936 = vpop.f32.mrf.mxu0
      %v937 = vadd.f32 %v747, %v936
      %v938 = vpop.f32.mrf.mxu0
      %v939 = vadd.f32 %v747, %v938
      %940 = vmatmul.bf16.gmra.mxu0 %v816
      %v941 = vpop.f32.mrf.mxu0
      %v942 = vadd.f32 %v747, %v941
      %v943 = vpop.f32.mrf.mxu0
      %v944 = vadd.f32 %v747, %v943
      %945 = vmatmul.bf16.gmra.mxu0 %v817
      %v946 = vpop.f32.mrf.mxu0
      %v947 = vadd.f32 %v747, %v946
      %v948 = vpop.f32.mrf.mxu0
      %v949 = vadd.f32 %v747, %v948
      %950 = vmatmul.bf16.gmra.mxu0 %v818
      %v951 = vpop.f32.mrf.mxu0
      %v952 = vadd.f32 %v747, %v951
      %v953 = vpop.f32.mrf.mxu0
      %v954 = vadd.f32 %v747, %v953
      %955 = vmatmul.bf16.gmra.mxu0 %v819
      %v956 = vpop.f32.mrf.mxu0
      %v957 = vadd.f32 %v747, %v956
      %v958 = vpop.f32.mrf.mxu0
      %v959 = vadd.f32 %v747, %v958
      %960 = vmatmul.bf16.gmra.mxu0 %v820
      %v961 = vpop.f32.mrf.mxu0
      %v962 = vadd.f32 %v747, %v961
      %v963 = vpop.f32.mrf.mxu0
      %v964 = vadd.f32 %v747, %v963
      %965 = vmatmul.bf16.gmra.mxu0 %v821
      %v966 = vpop.f32.mrf.mxu0
      %v967 = vadd.f32 %v747, %v966
      %v968 = vpop.f32.mrf.mxu0
      %v969 = vadd.f32 %v747, %v968
      %970 = vmatmul.bf16.gmra.mxu0 %v822
      %v971 = vpop.f32.mrf.mxu0
      %v972 = vadd.f32 %v747, %v971
      %v973 = vpop.f32.mrf.mxu0
      %v974 = vadd.f32 %v747, %v973
      %975 = vmatmul.bf16.gmra.mxu0 %v823
      %v976 = vpop.f32.mrf.mxu0
      %v977 = vadd.f32 %v747, %v976
      %v978 = vpop.f32.mrf.mxu0
      %v979 = vadd.f32 %v747, %v978
      %980 = vmatmul.bf16.gmra.mxu0 %v824
      %v981 = vpop.f32.mrf.mxu0
      %v982 = vadd.f32 %v747, %v981
      %v983 = vpop.f32.mrf.mxu0
      %v984 = vadd.f32 %v747, %v983
      %985 = vmatmul.bf16.gmra.mxu0 %v825
      %v986 = vpop.f32.mrf.mxu0
      %v987 = vadd.f32 %v747, %v986
      %v988 = vpop.f32.mrf.mxu0
      %v989 = vadd.f32 %v747, %v988
      %990 = vmatmul.bf16.gmra.mxu0 %v826
      %v991 = vpop.f32.mrf.mxu0
      %v992 = vadd.f32 %v747, %v991
      %v993 = vpop.f32.mrf.mxu0
      %v994 = vadd.f32 %v747, %v993
      %995 = vmatmul.bf16.gmra.mxu0 %v827
      %v996 = vpop.f32.mrf.mxu0
      %v997 = vadd.f32 %v747, %v996
      %v998 = vpop.f32.mrf.mxu0
      %v999 = vadd.f32 %v747, %v998
      %1000 = vmatmul.bf16.gmra.mxu0 %v828
      %v1001 = vpop.f32.mrf.mxu0
      %v1002 = vadd.f32 %v747, %v1001
      %v1003 = vpop.f32.mrf.mxu0
      %v1004 = vadd.f32 %v747, %v1003
      %1005 = vmatmul.bf16.gmra.mxu0 %v829
      %v1006 = vpop.f32.mrf.mxu0
      %v1007 = vadd.f32 %v747, %v1006
      %v1008 = vpop.f32.mrf.mxu0
      %v1009 = vadd.f32 %v747, %v1008
      %1010 = vmatmul.bf16.gmra.mxu0 %v830
      %v1011 = vpop.f32.mrf.mxu0
      %v1012 = vadd.f32 %v747, %v1011
      %v1013 = vpop.f32.mrf.mxu0
      %v1014 = vadd.f32 %v747, %v1013
      %1015 = vdwg.mxu0
      %1016 = vmatpush.bf16.msra.mxu0 %v910
      %1017 = vmatpush.bf16.msra.mxu0 %v908
      %1018 = vmatpush.bf16.msra.mxu0 %v906
      %1019 = vmatpush.bf16.msra.mxu0 %v904
      %1020 = vmatpush.bf16.msra.mxu0 %v902
      %1021 = vmatpush.bf16.msra.mxu0 %v900
      %1022 = vmatpush.bf16.msra.mxu0 %v898
      %1023 = vmatpush.bf16.msra.mxu0 %v896
      %1024 = vmatmul.bf16.gmra.mxu0 %v815
      %v1025 = vpop.f32.mrf.mxu0
      %v1026 = vadd.f32 %v748, %v1025
      %v1027 = vpop.f32.mrf.mxu0
      %v1028 = vadd.f32 %v748, %v1027
      %1029 = vmatmul.bf16.gmra.mxu0 %v816
      %v1030 = vpop.f32.mrf.mxu0
      %v1031 = vadd.f32 %v748, %v1030
      %v1032 = vpop.f32.mrf.mxu0
      %v1033 = vadd.f32 %v748, %v1032
      %1034 = vmatmul.bf16.gmra.mxu0 %v817
      %v1035 = vpop.f32.mrf.mxu0
      %v1036 = vadd.f32 %v748, %v1035
      %v1037 = vpop.f32.mrf.mxu0
      %v1038 = vadd.f32 %v748, %v1037
      %1039 = vmatmul.bf16.gmra.mxu0 %v818
      %v1040 = vpop.f32.mrf.mxu0
      %v1041 = vadd.f32 %v748, %v1040
      %v1042 = vpop.f32.mrf.mxu0
      %v1043 = vadd.f32 %v748, %v1042
      %1044 = vmatmul.bf16.gmra.mxu0 %v819
      %v1045 = vpop.f32.mrf.mxu0
      %v1046 = vadd.f32 %v748, %v1045
      %v1047 = vpop.f32.mrf.mxu0
      %v1048 = vadd.f32 %v748, %v1047
      %1049 = vmatmul.bf16.gmra.mxu0 %v820
      %v1050 = vpop.f32.mrf.mxu0
      %v1051 = vadd.f32 %v748, %v1050
      %v1052 = vpop.f32.mrf.mxu0
      %v1053 = vadd.f32 %v748, %v1052
      %1054 = vmatmul.bf16.gmra.mxu0 %v821
      %v1055 = vpop.f32.mrf.mxu0
      %v1056 = vadd.f32 %v748, %v1055
      %v1057 = vpop.f32.mrf.mxu0
      %v1058 = vadd.f32 %v748, %v1057
      %1059 = vmatmul.bf16.gmra.mxu0 %v822
      %v1060 = vpop.f32.mrf.mxu0
      %v1061 = vadd.f32 %v748, %v1060
      %v1062 = vpop.f32.mrf.mxu0
      %v1063 = vadd.f32 %v748, %v1062
      %1064 = vmatmul.bf16.gmra.mxu0 %v823
      %v1065 = vpop.f32.mrf.mxu0
      %v1066 = vadd.f32 %v748, %v1065
      %v1067 = vpop.f32.mrf.mxu0
      %v1068 = vadd.f32 %v748, %v1067
      %1069 = vmatmul.bf16.gmra.mxu0 %v824
      %v1070 = vpop.f32.mrf.mxu0
      %v1071 = vadd.f32 %v748, %v1070
      %v1072 = vpop.f32.mrf.mxu0
      %v1073 = vadd.f32 %v748, %v1072
      %1074 = vmatmul.bf16.gmra.mxu0 %v825
      %v1075 = vpop.f32.mrf.mxu0
      %v1076 = vadd.f32 %v748, %v1075
      %v1077 = vpop.f32.mrf.mxu0
      %v1078 = vadd.f32 %v748, %v1077
      %1079 = vmatmul.bf16.gmra.mxu0 %v826
      %v1080 = vpop.f32.mrf.mxu0
      %v1081 = vadd.f32 %v748, %v1080
      %v1082 = vpop.f32.mrf.mxu0
      %v1083 = vadd.f32 %v748, %v1082
      %1084 = vmatmul.bf16.gmra.mxu0 %v827
      %v1085 = vpop.f32.mrf.mxu0
      %v1086 = vadd.f32 %v748, %v1085
      %v1087 = vpop.f32.mrf.mxu0
      %v1088 = vadd.f32 %v748, %v1087
      %1089 = vmatmul.bf16.gmra.mxu0 %v828
      %v1090 = vpop.f32.mrf.mxu0
      %v1091 = vadd.f32 %v748, %v1090
      %v1092 = vpop.f32.mrf.mxu0
      %v1093 = vadd.f32 %v748, %v1092
      %1094 = vmatmul.bf16.gmra.mxu0 %v829
      %v1095 = vpop.f32.mrf.mxu0
      %v1096 = vadd.f32 %v748, %v1095
      %v1097 = vpop.f32.mrf.mxu0
      %v1098 = vadd.f32 %v748, %v1097
      %1099 = vmatmul.bf16.gmra.mxu0 %v830
      %v1100 = vpop.f32.mrf.mxu0
      %v1101 = vadd.f32 %v748, %v1100
      %v1102 = vpop.f32.mrf.mxu0
      %v1103 = vadd.f32 %v748, %v1102
      %1104 = vdwg.mxu0
      %v1105 = vmax.f32 %v937, 0.0
      %v1106 = vmax.f32 %v1026, 0.0
      %v1107 = vmax.f32 %v939, 0.0
      %v1108 = vmax.f32 %v1028, 0.0
      %v1109 = vmax.f32 %v942, 0.0
      %v1110 = vmax.f32 %v1031, 0.0
      %v1111 = vmax.f32 %v944, 0.0
      %v1112 = vmax.f32 %v1033, 0.0
      %v1113 = vmax.f32 %v947, 0.0
      %v1114 = vmax.f32 %v1036, 0.0
      %v1115 = vmax.f32 %v949, 0.0
      %v1116 = vmax.f32 %v1038, 0.0
      %v1117 = vmax.f32 %v952, 0.0
      %v1118 = vmax.f32 %v1041, 0.0
      %v1119 = vmax.f32 %v954, 0.0
      %v1120 = vmax.f32 %v1043, 0.0
      %v1121 = vmax.f32 %v957, 0.0
      %v1122 = vmax.f32 %v1046, 0.0
      %v1123 = vmax.f32 %v959, 0.0
      %v1124 = vmax.f32 %v1048, 0.0
      %v1125 = vmax.f32 %v962, 0.0
      %v1126 = vmax.f32 %v1051, 0.0
      %v1127 = vmax.f32 %v964, 0.0
      %v1128 = vmax.f32 %v1053, 0.0
      %v1129 = vmax.f32 %v967, 0.0
      %v1130 = vmax.f32 %v1056, 0.0
      %v1131 = vmax.f32 %v969, 0.0
      %v1132 = vmax.f32 %v1058, 0.0
      %v1133 = vmax.f32 %v972, 0.0
      %v1134 = vmax.f32 %v1061, 0.0
      %v1135 = vmax.f32 %v974, 0.0
      %v1136 = vmax.f32 %v1063, 0.0
      %v1137 = vmax.f32 %v977, 0.0
      %v1138 = vmax.f32 %v1066, 0.0
      %v1139 = vmax.f32 %v979, 0.0
      %v1140 = vmax.f32 %v1068, 0.0
      %v1141 = vmax.f32 %v982, 0.0
      %v1142 = vmax.f32 %v1071, 0.0
      %v1143 = vmax.f32 %v984, 0.0
      %v1144 = vmax.f32 %v1073, 0.0
      %v1145 = vmax.f32 %v987, 0.0
      %v1146 = vmax.f32 %v1076, 0.0
      %v1147 = vmax.f32 %v989, 0.0
      %v1148 = vmax.f32 %v1078, 0.0
      %v1149 = vmax.f32 %v992, 0.0
      %v1150 = vmax.f32 %v1081, 0.0
      %v1151 = vmax.f32 %v994, 0.0
      %v1152 = vmax.f32 %v1083, 0.0
      %v1153 = vmax.f32 %v997, 0.0
      %v1154 = vmax.f32 %v1086, 0.0
      %v1155 = vmax.f32 %v999, 0.0
      %v1156 = vmax.f32 %v1088, 0.0
      %v1157 = vmax.f32 %v1002, 0.0
      %v1158 = vmax.f32 %v1091, 0.0
      %v1159 = vmax.f32 %v1004, 0.0
      %v1160 = vmax.f32 %v1093, 0.0
      %v1161 = vmax.f32 %v1007, 0.0
      %v1162 = vmax.f32 %v1096, 0.0
      %v1163 = vmax.f32 %v1009, 0.0
      %v1164 = vmax.f32 %v1098, 0.0
      %v1165 = vmax.f32 %v1012, 0.0
      %v1166 = vmax.f32 %v1101, 0.0
      %v1167 = vmax.f32 %v1014, 0.0
      %v1168 = vmax.f32 %v1103, 0.0
      %v1169 = vpack.c.bf16 %v1107, %v1105
      %v1170 = vpack.c.bf16 %v1108, %v1106
      %v1171 = vpack.c.bf16 %v1111, %v1109
      %v1172 = vpack.c.bf16 %v1112, %v1110
      %v1173 = vpack.c.bf16 %v1115, %v1113
      %v1174 = vpack.c.bf16 %v1116, %v1114
      %v1175 = vpack.c.bf16 %v1119, %v1117
      %v1176 = vpack.c.bf16 %v1120, %v1118
      %v1177 = vpack.c.bf16 %v1123, %v1121
      %v1178 = vpack.c.bf16 %v1124, %v1122
      %v1179 = vpack.c.bf16 %v1127, %v1125
      %v1180 = vpack.c.bf16 %v1128, %v1126
      %v1181 = vpack.c.bf16 %v1131, %v1129
      %v1182 = vpack.c.bf16 %v1132, %v1130
      %v1183 = vpack.c.bf16 %v1135, %v1133
      %v1184 = vpack.c.bf16 %v1136, %v1134
      %v1185 = vpack.c.bf16 %v1139, %v1137
      %v1186 = vpack.c.bf16 %v1140, %v1138
      %v1187 = vpack.c.bf16 %v1143, %v1141
      %v1188 = vpack.c.bf16 %v1144, %v1142
      %v1189 = vpack.c.bf16 %v1147, %v1145
      %v1190 = vpack.c.bf16 %v1148, %v1146
      %v1191 = vpack.c.bf16 %v1151, %v1149
      %v1192 = vpack.c.bf16 %v1152, %v1150
      %v1193 = vpack.c.bf16 %v1155, %v1153
      %v1194 = vpack.c.bf16 %v1156, %v1154
      %v1195 = vpack.c.bf16 %v1159, %v1157
      %v1196 = vpack.c.bf16 %v1160, %v1158
      %v1197 = vpack.c.bf16 %v1163, %v1161
      %v1198 = vpack.c.bf16 %v1164, %v1162
      %v1199 = vpack.c.bf16 %v1167, %v1165
      %v1200 = vpack.c.bf16 %v1168, %v1166
      %v1201 = vld [vmem:[%s658] sm:$0xf]
      %v1202 = vld [vmem:[%s658 + $0x4] sm:$0xf]
      %v1203 = vld [vmem:[%s658 + $0x8] sm:$0xf]
      %v1204 = vld [vmem:[%s658 + $0xc] sm:$0xf]
      %v1205 = vld [vmem:[%s658 + $0x10] sm:$0xf]
      %v1206 = vld [vmem:[%s658 + $0x14] sm:$0xf]
      %v1207 = vld [vmem:[%s658 + $0x18] sm:$0xf]
      %v1208 = vld [vmem:[%s658 + $0x1c] sm:$0xf]
      %v1209 = vld [vmem:[%s658 + $0x20] sm:$0xf]
      %v1210 = vld [vmem:[%s658 + $0x24] sm:$0xf]
      %v1211 = vld [vmem:[%s658 + $0x28] sm:$0xf]
      %v1212 = vld [vmem:[%s658 + $0x2c] sm:$0xf]
      %v1213 = vld [vmem:[%s658 + $0x30] sm:$0xf]
      %v1214 = vld [vmem:[%s658 + $0x34] sm:$0xf]
      %v1215 = vld [vmem:[%s658 + $0x38] sm:$0xf]
      %v1216 = vld [vmem:[%s658 + $0x3c] sm:$0xf]
      %v1217 = vld [vmem:[%s658 + $0x40] sm:$0xf]
      %v1218 = vld [vmem:[%s658 + $0x44] sm:$0xf]
      %v1219 = vld [vmem:[%s658 + $0x48] sm:$0xf]
      %v1220 = vld [vmem:[%s658 + $0x4c] sm:$0xf]
      %v1221 = vld [vmem:[%s658 + $0x50] sm:$0xf]
      %v1222 = vld [vmem:[%s658 + $0x54] sm:$0xf]
      %v1223 = vld [vmem:[%s658 + $0x58] sm:$0xf]
      %v1224 = vld [vmem:[%s658 + $0x5c] sm:$0xf]
      %v1225 = vld [vmem:[%s658 + $0x60] sm:$0xf]
      %v1226 = vld [vmem:[%s658 + $0x64] sm:$0xf]
      %v1227 = vld [vmem:[%s658 + $0x68] sm:$0xf]
      %v1228 = vld [vmem:[%s658 + $0x6c] sm:$0xf]
      %v1229 = vld [vmem:[%s658 + $0x70] sm:$0xf]
      %v1230 = vld [vmem:[%s658 + $0x74] sm:$0xf]
      %v1231 = vld [vmem:[%s658 + $0x78] sm:$0xf]
      %v1232 = vld [vmem:[%s658 + $0x7c] sm:$0xf]
      %v1233 = vld [vmem:[%s661] sm:$0x1]
      %v1235 = vperm.slane %v1233, 0
      %v1269 = vunpack.c.l.b16 %v1201
      %v1270 = vunpack.c.l.b16 %v1202
      %v1271 = vunpack.c.l.b16 %v1203
      %v1272 = vunpack.c.l.b16 %v1204
      %v1273 = vunpack.c.l.b16 %v1205
      %v1274 = vunpack.c.l.b16 %v1206
      %v1275 = vunpack.c.l.b16 %v1207
      %v1276 = vunpack.c.l.b16 %v1208
      %v1277 = vunpack.c.l.b16 %v1209
      %v1278 = vunpack.c.l.b16 %v1210
      %v1279 = vunpack.c.l.b16 %v1211
      %v1280 = vunpack.c.l.b16 %v1212
      %v1281 = vunpack.c.l.b16 %v1213
      %v1282 = vunpack.c.l.b16 %v1214
      %v1283 = vunpack.c.l.b16 %v1215
      %v1284 = vunpack.c.l.b16 %v1216
      %v1285 = vunpack.c.l.b16 %v1217
      %v1286 = vunpack.c.l.b16 %v1218
      %v1287 = vunpack.c.l.b16 %v1219
      %v1288 = vunpack.c.l.b16 %v1220
      %v1289 = vunpack.c.l.b16 %v1221
      %v1290 = vunpack.c.l.b16 %v1222
      %v1291 = vunpack.c.l.b16 %v1223
      %v1292 = vunpack.c.l.b16 %v1224
      %v1293 = vunpack.c.l.b16 %v1225
      %v1294 = vunpack.c.l.b16 %v1226
      %v1295 = vunpack.c.l.b16 %v1227
      %v1296 = vunpack.c.l.b16 %v1228
      %v1297 = vunpack.c.l.b16 %v1229
      %v1298 = vunpack.c.l.b16 %v1230
      %v1299 = vunpack.c.l.b16 %v1231
      %v1300 = vunpack.c.l.b16 %v1232
      %v1301 = vpack.c.b16 %v1270, %v1269
      %v1302 = vpack.c.b16 %v1272, %v1271
      %v1303 = vpack.c.b16 %v1274, %v1273
      %v1304 = vpack.c.b16 %v1276, %v1275
      %v1305 = vpack.c.b16 %v1278, %v1277
      %v1306 = vpack.c.b16 %v1280, %v1279
      %v1307 = vpack.c.b16 %v1282, %v1281
      %v1308 = vpack.c.b16 %v1284, %v1283
      %v1309 = vpack.c.b16 %v1286, %v1285
      %v1310 = vpack.c.b16 %v1288, %v1287
      %v1311 = vpack.c.b16 %v1290, %v1289
      %v1312 = vpack.c.b16 %v1292, %v1291
      %v1313 = vpack.c.b16 %v1294, %v1293
      %v1314 = vpack.c.b16 %v1296, %v1295
      %v1315 = vpack.c.b16 %v1298, %v1297
      %v1316 = vpack.c.b16 %v1300, %v1299
      %1333 = vmatpush.bf16.msra.mxu0 %v1308
      %1334 = vmatpush.bf16.msra.mxu0 %v1307
      %1335 = vmatpush.bf16.msra.mxu0 %v1306
      %1336 = vmatpush.bf16.msra.mxu0 %v1305
      %1337 = vmatpush.bf16.msra.mxu0 %v1304
      %1338 = vmatpush.bf16.msra.mxu0 %v1303
      %1339 = vmatpush.bf16.msra.mxu0 %v1302
      %1340 = vmatpush.bf16.msra.mxu0 %v1301
      %1341 = vmatmul.bf16.gmra.mxu0 %v1169
      %v1342 = vpop.f32.mrf.mxu0
      %v1343 = vadd.f32 %v1235, %v1342
      %v1344 = vpop.f32.mrf.mxu0
      %v1345 = vadd.f32 %v1235, %v1344
      %1346 = vmatmul.bf16.gmra.mxu0 %v1171
      %v1347 = vpop.f32.mrf.mxu0
      %v1348 = vadd.f32 %v1235, %v1347
      %v1349 = vpop.f32.mrf.mxu0
      %v1350 = vadd.f32 %v1235, %v1349
      %1351 = vmatmul.bf16.gmra.mxu0 %v1173
      %v1352 = vpop.f32.mrf.mxu0
      %v1353 = vadd.f32 %v1235, %v1352
      %v1354 = vpop.f32.mrf.mxu0
      %v1355 = vadd.f32 %v1235, %v1354
      %1356 = vmatmul.bf16.gmra.mxu0 %v1175
      %v1357 = vpop.f32.mrf.mxu0
      %v1358 = vadd.f32 %v1235, %v1357
      %v1359 = vpop.f32.mrf.mxu0
      %v1360 = vadd.f32 %v1235, %v1359
      %1361 = vmatmul.bf16.gmra.mxu0 %v1177
      %v1362 = vpop.f32.mrf.mxu0
      %v1363 = vadd.f32 %v1235, %v1362
      %v1364 = vpop.f32.mrf.mxu0
      %v1365 = vadd.f32 %v1235, %v1364
      %1366 = vmatmul.bf16.gmra.mxu0 %v1179
      %v1367 = vpop.f32.mrf.mxu0
      %v1368 = vadd.f32 %v1235, %v1367
      %v1369 = vpop.f32.mrf.mxu0
      %v1370 = vadd.f32 %v1235, %v1369
      %1371 = vmatmul.bf16.gmra.mxu0 %v1181
      %v1372 = vpop.f32.mrf.mxu0
      %v1373 = vadd.f32 %v1235, %v1372
      %v1374 = vpop.f32.mrf.mxu0
      %v1375 = vadd.f32 %v1235, %v1374
      %1376 = vmatmul.bf16.gmra.mxu0 %v1183
      %v1377 = vpop.f32.mrf.mxu0
      %v1378 = vadd.f32 %v1235, %v1377
      %v1379 = vpop.f32.mrf.mxu0
      %v1380 = vadd.f32 %v1235, %v1379
      %1381 = vmatmul.bf16.gmra.mxu0 %v1185
      %v1382 = vpop.f32.mrf.mxu0
      %v1383 = vadd.f32 %v1235, %v1382
      %v1384 = vpop.f32.mrf.mxu0
      %v1385 = vadd.f32 %v1235, %v1384
      %1386 = vmatmul.bf16.gmra.mxu0 %v1187
      %v1387 = vpop.f32.mrf.mxu0
      %v1388 = vadd.f32 %v1235, %v1387
      %v1389 = vpop.f32.mrf.mxu0
      %v1390 = vadd.f32 %v1235, %v1389
      %1391 = vmatmul.bf16.gmra.mxu0 %v1189
      %v1392 = vpop.f32.mrf.mxu0
      %v1393 = vadd.f32 %v1235, %v1392
      %v1394 = vpop.f32.mrf.mxu0
      %v1395 = vadd.f32 %v1235, %v1394
      %1396 = vmatmul.bf16.gmra.mxu0 %v1191
      %v1397 = vpop.f32.mrf.mxu0
      %v1398 = vadd.f32 %v1235, %v1397
      %v1399 = vpop.f32.mrf.mxu0
      %v1400 = vadd.f32 %v1235, %v1399
      %1401 = vmatmul.bf16.gmra.mxu0 %v1193
      %v1402 = vpop.f32.mrf.mxu0
      %v1403 = vadd.f32 %v1235, %v1402
      %v1404 = vpop.f32.mrf.mxu0
      %v1405 = vadd.f32 %v1235, %v1404
      %1406 = vmatmul.bf16.gmra.mxu0 %v1195
      %v1407 = vpop.f32.mrf.mxu0
      %v1408 = vadd.f32 %v1235, %v1407
      %v1409 = vpop.f32.mrf.mxu0
      %v1410 = vadd.f32 %v1235, %v1409
      %1411 = vmatmul.bf16.gmra.mxu0 %v1197
      %v1412 = vpop.f32.mrf.mxu0
      %v1413 = vadd.f32 %v1235, %v1412
      %v1414 = vpop.f32.mrf.mxu0
      %v1415 = vadd.f32 %v1235, %v1414
      %1416 = vmatmul.bf16.gmra.mxu0 %v1199
      %v1417 = vpop.f32.mrf.mxu0
      %v1418 = vadd.f32 %v1235, %v1417
      %v1419 = vpop.f32.mrf.mxu0
      %v1420 = vadd.f32 %v1235, %v1419
      %1421 = vdwg.mxu0
      %1422 = vmatpush.bf16.msra.mxu0 %v1316
      %1423 = vmatpush.bf16.msra.mxu0 %v1315
      %1424 = vmatpush.bf16.msra.mxu0 %v1314
      %1425 = vmatpush.bf16.msra.mxu0 %v1313
      %1426 = vmatpush.bf16.msra.mxu0 %v1312
      %1427 = vmatpush.bf16.msra.mxu0 %v1311
      %1428 = vmatpush.bf16.msra.mxu0 %v1310
      %1429 = vmatpush.bf16.msra.mxu0 %v1309
      %1430 = vmatmul.bf16.gmra.mxu0 %v1170
      %v1431 = vpop.f32.mrf.mxu0
      %v1432 = vadd.f32 %v1343, %v1431
      %v1433 = vpop.f32.mrf.mxu0
      %v1434 = vadd.f32 %v1345, %v1433
      %1435 = vmatmul.bf16.gmra.mxu0 %v1172
      %v1436 = vpop.f32.mrf.mxu0
      %v1437 = vadd.f32 %v1348, %v1436
      %v1438 = vpop.f32.mrf.mxu0
      %v1439 = vadd.f32 %v1350, %v1438
      %1440 = vmatmul.bf16.gmra.mxu0 %v1174
      %v1441 = vpop.f32.mrf.mxu0
      %v1442 = vadd.f32 %v1353, %v1441
      %v1443 = vpop.f32.mrf.mxu0
      %v1444 = vadd.f32 %v1355, %v1443
      %1445 = vmatmul.bf16.gmra.mxu0 %v1176
      %v1446 = vpop.f32.mrf.mxu0
      %v1447 = vadd.f32 %v1358, %v1446
      %v1448 = vpop.f32.mrf.mxu0
      %v1449 = vadd.f32 %v1360, %v1448
      %1450 = vmatmul.bf16.gmra.mxu0 %v1178
      %v1451 = vpop.f32.mrf.mxu0
      %v1452 = vadd.f32 %v1363, %v1451
      %v1453 = vpop.f32.mrf.mxu0
      %v1454 = vadd.f32 %v1365, %v1453
      %1455 = vmatmul.bf16.gmra.mxu0 %v1180
      %v1456 = vpop.f32.mrf.mxu0
      %v1457 = vadd.f32 %v1368, %v1456
      %v1458 = vpop.f32.mrf.mxu0
      %v1459 = vadd.f32 %v1370, %v1458
      %1460 = vmatmul.bf16.gmra.mxu0 %v1182
      %v1461 = vpop.f32.mrf.mxu0
      %v1462 = vadd.f32 %v1373, %v1461
      %v1463 = vpop.f32.mrf.mxu0
      %v1464 = vadd.f32 %v1375, %v1463
      %1465 = vmatmul.bf16.gmra.mxu0 %v1184
      %v1466 = vpop.f32.mrf.mxu0
      %v1467 = vadd.f32 %v1378, %v1466
      %v1468 = vpop.f32.mrf.mxu0
      %v1469 = vadd.f32 %v1380, %v1468
      %1470 = vmatmul.bf16.gmra.mxu0 %v1186
      %v1471 = vpop.f32.mrf.mxu0
      %v1472 = vadd.f32 %v1383, %v1471
      %v1473 = vpop.f32.mrf.mxu0
      %v1474 = vadd.f32 %v1385, %v1473
      %1475 = vmatmul.bf16.gmra.mxu0 %v1188
      %v1476 = vpop.f32.mrf.mxu0
      %v1477 = vadd.f32 %v1388, %v1476
      %v1478 = vpop.f32.mrf.mxu0
      %v1479 = vadd.f32 %v1390, %v1478
      %1480 = vmatmul.bf16.gmra.mxu0 %v1190
      %v1481 = vpop.f32.mrf.mxu0
      %v1482 = vadd.f32 %v1393, %v1481
      %v1483 = vpop.f32.mrf.mxu0
      %v1484 = vadd.f32 %v1395, %v1483
      %1485 = vmatmul.bf16.gmra.mxu0 %v1192
      %v1486 = vpop.f32.mrf.mxu0
      %v1487 = vadd.f32 %v1398, %v1486
      %v1488 = vpop.f32.mrf.mxu0
      %v1489 = vadd.f32 %v1400, %v1488
      %1490 = vmatmul.bf16.gmra.mxu0 %v1194
      %v1491 = vpop.f32.mrf.mxu0
      %v1492 = vadd.f32 %v1403, %v1491
      %v1493 = vpop.f32.mrf.mxu0
      %v1494 = vadd.f32 %v1405, %v1493
      %1495 = vmatmul.bf16.gmra.mxu0 %v1196
      %v1496 = vpop.f32.mrf.mxu0
      %v1497 = vadd.f32 %v1408, %v1496
      %v1498 = vpop.f32.mrf.mxu0
      %v1499 = vadd.f32 %v1410, %v1498
      %1500 = vmatmul.bf16.gmra.mxu0 %v1198
      %v1501 = vpop.f32.mrf.mxu0
      %v1502 = vadd.f32 %v1413, %v1501
      %v1503 = vpop.f32.mrf.mxu0
      %v1504 = vadd.f32 %v1415, %v1503
      %1505 = vmatmul.bf16.gmra.mxu0 %v1200
      %v1506 = vpop.f32.mrf.mxu0
      %v1507 = vadd.f32 %v1418, %v1506
      %v1508 = vpop.f32.mrf.mxu0
      %v1509 = vadd.f32 %v1420, %v1508
      %1510 = vdwg.mxu0
      %v1511 = vmax.f32 %v1432, 0.0
      %v1512 = vmax.f32 %v1434, 0.0
      %v1513 = vmax.f32 %v1437, 0.0
      %v1514 = vmax.f32 %v1439, 0.0
      %v1515 = vmax.f32 %v1442, 0.0
      %v1516 = vmax.f32 %v1444, 0.0
      %v1517 = vmax.f32 %v1447, 0.0
      %v1518 = vmax.f32 %v1449, 0.0
      %v1519 = vmax.f32 %v1452, 0.0
      %v1520 = vmax.f32 %v1454, 0.0
      %v1521 = vmax.f32 %v1457, 0.0
      %v1522 = vmax.f32 %v1459, 0.0
      %v1523 = vmax.f32 %v1462, 0.0
      %v1524 = vmax.f32 %v1464, 0.0
      %v1525 = vmax.f32 %v1467, 0.0
      %v1526 = vmax.f32 %v1469, 0.0
      %v1527 = vmax.f32 %v1472, 0.0
      %v1528 = vmax.f32 %v1474, 0.0
      %v1529 = vmax.f32 %v1477, 0.0
      %v1530 = vmax.f32 %v1479, 0.0
      %v1531 = vmax.f32 %v1482, 0.0
      %v1532 = vmax.f32 %v1484, 0.0
      %v1533 = vmax.f32 %v1487, 0.0
      %v1534 = vmax.f32 %v1489, 0.0
      %v1535 = vmax.f32 %v1492, 0.0
      %v1536 = vmax.f32 %v1494, 0.0
      %v1537 = vmax.f32 %v1497, 0.0
      %v1538 = vmax.f32 %v1499, 0.0
      %v1539 = vmax.f32 %v1502, 0.0
      %v1540 = vmax.f32 %v1504, 0.0
      %v1541 = vmax.f32 %v1507, 0.0
      %v1542 = vmax.f32 %v1509, 0.0
      %v1543 = vpack.c.bf16 %v1512, %v1511
      %v1544 = vpack.c.bf16 %v1514, %v1513
      %v1545 = vpack.c.bf16 %v1516, %v1515
      %v1546 = vpack.c.bf16 %v1518, %v1517
      %v1547 = vpack.c.bf16 %v1520, %v1519
      %v1548 = vpack.c.bf16 %v1522, %v1521
      %v1549 = vpack.c.bf16 %v1524, %v1523
      %v1550 = vpack.c.bf16 %v1526, %v1525
      %v1551 = vpack.c.bf16 %v1528, %v1527
      %v1552 = vpack.c.bf16 %v1530, %v1529
      %v1553 = vpack.c.bf16 %v1532, %v1531
      %v1554 = vpack.c.bf16 %v1534, %v1533
      %v1555 = vpack.c.bf16 %v1536, %v1535
      %v1556 = vpack.c.bf16 %v1538, %v1537
      %v1557 = vpack.c.bf16 %v1540, %v1539
      %v1558 = vpack.c.bf16 %v1542, %v1541
      %v1559 = vld [vmem:[%s666] sm:$0xf]
      %v1560 = vld [vmem:[%s666 + $0x4] sm:$0xf]
      %v1561 = vld [vmem:[%s666 + $0x8] sm:$0xf]
      %v1562 = vld [vmem:[%s666 + $0xc] sm:$0xf]
      %v1563 = vld [vmem:[%s666 + $0x10] sm:$0xf]
      %v1564 = vld [vmem:[%s666 + $0x14] sm:$0xf]
      %v1565 = vld [vmem:[%s666 + $0x18] sm:$0xf]
      %v1566 = vld [vmem:[%s666 + $0x1c] sm:$0xf]
      %v1567 = vld [vmem:[%s666 + $0x20] sm:$0xf]
      %v1568 = vld [vmem:[%s666 + $0x24] sm:$0xf]
      %v1569 = vld [vmem:[%s666 + $0x28] sm:$0xf]
      %v1570 = vld [vmem:[%s666 + $0x2c] sm:$0xf]
      %v1571 = vld [vmem:[%s666 + $0x30] sm:$0xf]
      %v1572 = vld [vmem:[%s666 + $0x34] sm:$0xf]
      %v1573 = vld [vmem:[%s666 + $0x38] sm:$0xf]
      %v1574 = vld [vmem:[%s666 + $0x3c] sm:$0xf]
      %v1575 = vld [vmem:[%s669] sm:$0x1]
      %v1577 = vperm.slane %v1575, 0
      %v1595 = vunpack.c.l.b16 %v1559
      %v1596 = vunpack.c.l.b16 %v1560
      %v1597 = vunpack.c.l.b16 %v1561
      %v1598 = vunpack.c.l.b16 %v1562
      %v1599 = vunpack.c.l.b16 %v1563
      %v1600 = vunpack.c.l.b16 %v1564
      %v1601 = vunpack.c.l.b16 %v1565
      %v1602 = vunpack.c.l.b16 %v1566
      %v1603 = vunpack.c.l.b16 %v1567
      %v1604 = vunpack.c.l.b16 %v1568
      %v1605 = vunpack.c.l.b16 %v1569
      %v1606 = vunpack.c.l.b16 %v1570
      %v1607 = vunpack.c.l.b16 %v1571
      %v1608 = vunpack.c.l.b16 %v1572
      %v1609 = vunpack.c.l.b16 %v1573
      %v1610 = vunpack.c.l.b16 %v1574
      %v1611 = vpack.c.b16 %v1596, %v1595
      %v1612 = vpack.c.b16 %v1598, %v1597
      %v1613 = vpack.c.b16 %v1600, %v1599
      %v1614 = vpack.c.b16 %v1602, %v1601
      %v1615 = vpack.c.b16 %v1604, %v1603
      %v1616 = vpack.c.b16 %v1606, %v1605
      %v1617 = vpack.c.b16 %v1608, %v1607
      %v1618 = vpack.c.b16 %v1610, %v1609
      %1627 = vmatpush.bf16.msra.mxu0 %v1618
      %1628 = vmatpush.bf16.msra.mxu0 %v1617
      %1629 = vmatpush.bf16.msra.mxu0 %v1616
      %1630 = vmatpush.bf16.msra.mxu0 %v1615
      %1631 = vmatpush.bf16.msra.mxu0 %v1614
      %1632 = vmatpush.bf16.msra.mxu0 %v1613
      %1633 = vmatpush.bf16.msra.mxu0 %v1612
      %1634 = vmatpush.bf16.msra.mxu0 %v1611
      %1635 = vmatmul.bf16.gmra.mxu0 %v1543
      %v1636 = vpop.f32.mrf.mxu0
      %v1637 = vadd.f32 %v1577, %v1636
      %v1638 = vpop.f32.mrf.mxu0
      %v1639 = vadd.f32 %v1577, %v1638
      %1640 = vmatmul.bf16.gmra.mxu0 %v1544
      %v1641 = vpop.f32.mrf.mxu0
      %v1642 = vadd.f32 %v1577, %v1641
      %v1643 = vpop.f32.mrf.mxu0
      %v1644 = vadd.f32 %v1577, %v1643
      %1645 = vmatmul.bf16.gmra.mxu0 %v1545
      %v1646 = vpop.f32.mrf.mxu0
      %v1647 = vadd.f32 %v1577, %v1646
      %v1648 = vpop.f32.mrf.mxu0
      %v1649 = vadd.f32 %v1577, %v1648
      %1650 = vmatmul.bf16.gmra.mxu0 %v1546
      %v1651 = vpop.f32.mrf.mxu0
      %v1652 = vadd.f32 %v1577, %v1651
      %v1653 = vpop.f32.mrf.mxu0
      %v1654 = vadd.f32 %v1577, %v1653
      %1655 = vmatmul.bf16.gmra.mxu0 %v1547
      %v1656 = vpop.f32.mrf.mxu0
      %v1657 = vadd.f32 %v1577, %v1656
      %v1658 = vpop.f32.mrf.mxu0
      %v1659 = vadd.f32 %v1577, %v1658
      %1660 = vmatmul.bf16.gmra.mxu0 %v1548
      %v1661 = vpop.f32.mrf.mxu0
      %v1662 = vadd.f32 %v1577, %v1661
      %v1663 = vpop.f32.mrf.mxu0
      %v1664 = vadd.f32 %v1577, %v1663
      %1665 = vmatmul.bf16.gmra.mxu0 %v1549
      %v1666 = vpop.f32.mrf.mxu0
      %v1667 = vadd.f32 %v1577, %v1666
      %v1668 = vpop.f32.mrf.mxu0
      %v1669 = vadd.f32 %v1577, %v1668
      %1670 = vmatmul.bf16.gmra.mxu0 %v1550
      %v1671 = vpop.f32.mrf.mxu0
      %v1672 = vadd.f32 %v1577, %v1671
      %v1673 = vpop.f32.mrf.mxu0
      %v1674 = vadd.f32 %v1577, %v1673
      %1675 = vmatmul.bf16.gmra.mxu0 %v1551
      %v1676 = vpop.f32.mrf.mxu0
      %v1677 = vadd.f32 %v1577, %v1676
      %v1678 = vpop.f32.mrf.mxu0
      %v1679 = vadd.f32 %v1577, %v1678
      %1680 = vmatmul.bf16.gmra.mxu0 %v1552
      %v1681 = vpop.f32.mrf.mxu0
      %v1682 = vadd.f32 %v1577, %v1681
      %v1683 = vpop.f32.mrf.mxu0
      %v1684 = vadd.f32 %v1577, %v1683
      %1685 = vmatmul.bf16.gmra.mxu0 %v1553
      %v1686 = vpop.f32.mrf.mxu0
      %v1687 = vadd.f32 %v1577, %v1686
      %v1688 = vpop.f32.mrf.mxu0
      %v1689 = vadd.f32 %v1577, %v1688
      %1690 = vmatmul.bf16.gmra.mxu0 %v1554
      %v1691 = vpop.f32.mrf.mxu0
      %v1692 = vadd.f32 %v1577, %v1691
      %v1693 = vpop.f32.mrf.mxu0
      %v1694 = vadd.f32 %v1577, %v1693
      %1695 = vmatmul.bf16.gmra.mxu0 %v1555
      %v1696 = vpop.f32.mrf.mxu0
      %v1697 = vadd.f32 %v1577, %v1696
      %v1698 = vpop.f32.mrf.mxu0
      %v1699 = vadd.f32 %v1577, %v1698
      %1700 = vmatmul.bf16.gmra.mxu0 %v1556
      %v1701 = vpop.f32.mrf.mxu0
      %v1702 = vadd.f32 %v1577, %v1701
      %v1703 = vpop.f32.mrf.mxu0
      %v1704 = vadd.f32 %v1577, %v1703
      %1705 = vmatmul.bf16.gmra.mxu0 %v1557
      %v1706 = vpop.f32.mrf.mxu0
      %v1707 = vadd.f32 %v1577, %v1706
      %v1708 = vpop.f32.mrf.mxu0
      %v1709 = vadd.f32 %v1577, %v1708
      %1710 = vmatmul.bf16.gmra.mxu0 %v1558
      %v1711 = vpop.f32.mrf.mxu0
      %v1712 = vadd.f32 %v1577, %v1711
      %v1713 = vpop.f32.mrf.mxu0
      %v1714 = vadd.f32 %v1577, %v1713
      %1715 = vdwg.mxu0
      %v1716 = vmax.f32 %v1637, 0.0
      %v1717 = vmax.f32 %v1639, 0.0
      %v1718 = vmax.f32 %v1642, 0.0
      %v1719 = vmax.f32 %v1644, 0.0
      %v1720 = vmax.f32 %v1647, 0.0
      %v1721 = vmax.f32 %v1649, 0.0
      %v1722 = vmax.f32 %v1652, 0.0
      %v1723 = vmax.f32 %v1654, 0.0
      %v1724 = vmax.f32 %v1657, 0.0
      %v1725 = vmax.f32 %v1659, 0.0
      %v1726 = vmax.f32 %v1662, 0.0
      %v1727 = vmax.f32 %v1664, 0.0
      %v1728 = vmax.f32 %v1667, 0.0
      %v1729 = vmax.f32 %v1669, 0.0
      %v1730 = vmax.f32 %v1672, 0.0
      %v1731 = vmax.f32 %v1674, 0.0
      %v1732 = vmax.f32 %v1677, 0.0
      %v1733 = vmax.f32 %v1679, 0.0
      %v1734 = vmax.f32 %v1682, 0.0
      %v1735 = vmax.f32 %v1684, 0.0
      %v1736 = vmax.f32 %v1687, 0.0
      %v1737 = vmax.f32 %v1689, 0.0
      %v1738 = vmax.f32 %v1692, 0.0
      %v1739 = vmax.f32 %v1694, 0.0
      %v1740 = vmax.f32 %v1697, 0.0
      %v1741 = vmax.f32 %v1699, 0.0
      %v1742 = vmax.f32 %v1702, 0.0
      %v1743 = vmax.f32 %v1704, 0.0
      %v1744 = vmax.f32 %v1707, 0.0
      %v1745 = vmax.f32 %v1709, 0.0
      %v1746 = vmax.f32 %v1712, 0.0
      %v1747 = vmax.f32 %v1714, 0.0
      %1748 = vst [vmem:[#allocation2] sm:$0xff] %v1716
      %1749 = vst [vmem:[#allocation2 + $0x8] sm:$0xff] %v1717
      %1750 = vst [vmem:[#allocation2 + $0x10] sm:$0xff] %v1718
      %1751 = vst [vmem:[#allocation2 + $0x18] sm:$0xff] %v1719
      %1752 = vst [vmem:[#allocation2 + $0x20] sm:$0xff] %v1720
      %1753 = vst [vmem:[#allocation2 + $0x28] sm:$0xff] %v1721
      %1754 = vst [vmem:[#allocation2 + $0x30] sm:$0xff] %v1722
      %1755 = vst [vmem:[#allocation2 + $0x38] sm:$0xff] %v1723
      %1756 = vst [vmem:[#allocation2 + $0x40] sm:$0xff] %v1724
      %1757 = vst [vmem:[#allocation2 + $0x48] sm:$0xff] %v1725
      %1758 = vst [vmem:[#allocation2 + $0x50] sm:$0xff] %v1726
      %1759 = vst [vmem:[#allocation2 + $0x58] sm:$0xff] %v1727
      %1760 = vst [vmem:[#allocation2 + $0x60] sm:$0xff] %v1728
      %1761 = vst [vmem:[#allocation2 + $0x68] sm:$0xff] %v1729
      %1762 = vst [vmem:[#allocation2 + $0x70] sm:$0xff] %v1730
      %1763 = vst [vmem:[#allocation2 + $0x78] sm:$0xff] %v1731
      %1764 = vst [vmem:[#allocation2 + $0x80] sm:$0xff] %v1732
      %1765 = vst [vmem:[#allocation2 + $0x88] sm:$0xff] %v1733
      %1766 = vst [vmem:[#allocation2 + $0x90] sm:$0xff] %v1734
      %1767 = vst [vmem:[#allocation2 + $0x98] sm:$0xff] %v1735
      %1768 = vst [vmem:[#allocation2 + $0xa0] sm:$0xff] %v1736
      %1769 = vst [vmem:[#allocation2 + $0xa8] sm:$0xff] %v1737
      %1770 = vst [vmem:[#allocation2 + $0xb0] sm:$0xff] %v1738
      %1771 = vst [vmem:[#allocation2 + $0xb8] sm:$0xff] %v1739
      %1772 = vst [vmem:[#allocation2 + $0xc0] sm:$0xff] %v1740
      %1773 = vst [vmem:[#allocation2 + $0xc8] sm:$0xff] %v1741
      %1774 = vst [vmem:[#allocation2 + $0xd0] sm:$0xff] %v1742
      %1775 = vst [vmem:[#allocation2 + $0xd8] sm:$0xff] %v1743
      %1776 = vst [vmem:[#allocation2 + $0xe0] sm:$0xff] %v1744
      %1777 = vst [vmem:[#allocation2 + $0xe8] sm:$0xff] %v1745
      %1778 = vst [vmem:[#allocation2 + $0xf0] sm:$0xff] %v1746
      %1779 = vst [vmem:[#allocation2 + $0xf8] sm:$0xff] %v1747
      %v1780 = vld [vmem:[#allocation2] sm:$0xff]
      %v1781 = vld [vmem:[#allocation2 + $0x8] sm:$0xff]
      %v1782 = vld [vmem:[#allocation2 + $0x10] sm:$0xff]
      %v1783 = vld [vmem:[#allocation2 + $0x18] sm:$0xff]
      %v1784 = vld [vmem:[#allocation2 + $0x20] sm:$0xff]
      %v1785 = vld [vmem:[#allocation2 + $0x28] sm:$0xff]
      %v1786 = vld [vmem:[#allocation2 + $0x30] sm:$0xff]
      %v1787 = vld [vmem:[#allocation2 + $0x38] sm:$0xff]
      %v1788 = vld [vmem:[#allocation2 + $0x40] sm:$0xff]
      %v1789 = vld [vmem:[#allocation2 + $0x48] sm:$0xff]
      %v1790 = vld [vmem:[#allocation2 + $0x50] sm:$0xff]
      %v1791 = vld [vmem:[#allocation2 + $0x58] sm:$0xff]
      %v1792 = vld [vmem:[#allocation2 + $0x60] sm:$0xff]
      %v1793 = vld [vmem:[#allocation2 + $0x68] sm:$0xff]
      %v1794 = vld [vmem:[#allocation2 + $0x70] sm:$0xff]
      %v1795 = vld [vmem:[#allocation2 + $0x78] sm:$0xff]
      %v1796 = vld [vmem:[#allocation2 + $0x80] sm:$0xff]
      %v1797 = vld [vmem:[#allocation2 + $0x88] sm:$0xff]
      %v1798 = vld [vmem:[#allocation2 + $0x90] sm:$0xff]
      %v1799 = vld [vmem:[#allocation2 + $0x98] sm:$0xff]
      %v1800 = vld [vmem:[#allocation2 + $0xa0] sm:$0xff]
      %v1801 = vld [vmem:[#allocation2 + $0xa8] sm:$0xff]
      %v1802 = vld [vmem:[#allocation2 + $0xb0] sm:$0xff]
      %v1803 = vld [vmem:[#allocation2 + $0xb8] sm:$0xff]
      %v1804 = vld [vmem:[#allocation2 + $0xc0] sm:$0xff]
      %v1805 = vld [vmem:[#allocation2 + $0xc8] sm:$0xff]
      %v1806 = vld [vmem:[#allocation2 + $0xd0] sm:$0xff]
      %v1807 = vld [vmem:[#allocation2 + $0xd8] sm:$0xff]
      %v1808 = vld [vmem:[#allocation2 + $0xe0] sm:$0xff]
      %v1809 = vld [vmem:[#allocation2 + $0xe8] sm:$0xff]
      %v1810 = vld [vmem:[#allocation2 + $0xf0] sm:$0xff]
      %v1811 = vld [vmem:[#allocation2 + $0xf8] sm:$0xff]
      %v1812 = vpack.c.bf16 %v1781, %v1780
      %v1813 = vpack.c.bf16 %v1783, %v1782
      %v1814 = vpack.c.bf16 %v1785, %v1784
      %v1815 = vpack.c.bf16 %v1787, %v1786
      %v1816 = vpack.c.bf16 %v1789, %v1788
      %v1817 = vpack.c.bf16 %v1791, %v1790
      %v1818 = vpack.c.bf16 %v1793, %v1792
      %v1819 = vpack.c.bf16 %v1795, %v1794
      %v1820 = vpack.c.bf16 %v1797, %v1796
      %v1821 = vpack.c.bf16 %v1799, %v1798
      %v1822 = vpack.c.bf16 %v1801, %v1800
      %v1823 = vpack.c.bf16 %v1803, %v1802
      %v1824 = vpack.c.bf16 %v1805, %v1804
      %v1825 = vpack.c.bf16 %v1807, %v1806
      %v1826 = vpack.c.bf16 %v1809, %v1808
      %v1827 = vpack.c.bf16 %v1811, %v1810
      %v1828 = vld [vmem:[%s639] sm:$0xff]
      %v1829 = vld [vmem:[%s639 + $0x8] sm:$0xff]
      %v1830 = vld [vmem:[%s639 + $0x10] sm:$0xff]
      %v1831 = vld [vmem:[%s639 + $0x18] sm:$0xff]
      %v1832 = vld [vmem:[%s639 + $0x20] sm:$0xff]
      %v1833 = vld [vmem:[%s639 + $0x28] sm:$0xff]
      %v1834 = vld [vmem:[%s639 + $0x30] sm:$0xff]
      %v1835 = vld [vmem:[%s639 + $0x38] sm:$0xff]
      %v1836 = vld [vmem:[%s639 + $0x40] sm:$0xff]
      %v1837 = vld [vmem:[%s639 + $0x48] sm:$0xff]
      %v1838 = vld [vmem:[%s639 + $0x50] sm:$0xff]
      %v1839 = vld [vmem:[%s639 + $0x58] sm:$0xff]
      %v1840 = vld [vmem:[%s639 + $0x60] sm:$0xff]
      %v1841 = vld [vmem:[%s639 + $0x68] sm:$0xff]
      %v1842 = vld [vmem:[%s639 + $0x70] sm:$0xff]
      %v1843 = vld [vmem:[%s639 + $0x78] sm:$0xff]
      %v1844 = vld [vmem:[%s639 + $0x80] sm:$0xff]
      %v1845 = vld [vmem:[%s639 + $0x88] sm:$0xff]
      %v1846 = vld [vmem:[%s639 + $0x90] sm:$0xff]
      %v1847 = vld [vmem:[%s639 + $0x98] sm:$0xff]
      %v1848 = vld [vmem:[%s639 + $0xa0] sm:$0xff]
      %v1849 = vld [vmem:[%s639 + $0xa8] sm:$0xff]
      %v1850 = vld [vmem:[%s639 + $0xb0] sm:$0xff]
      %v1851 = vld [vmem:[%s639 + $0xb8] sm:$0xff]
      %v1852 = vld [vmem:[%s639 + $0xc0] sm:$0xff]
      %v1853 = vld [vmem:[%s639 + $0xc8] sm:$0xff]
      %v1854 = vld [vmem:[%s639 + $0xd0] sm:$0xff]
      %v1855 = vld [vmem:[%s639 + $0xd8] sm:$0xff]
      %v1856 = vld [vmem:[%s639 + $0xe0] sm:$0xff]
      %v1857 = vld [vmem:[%s639 + $0xe8] sm:$0xff]
      %v1858 = vld [vmem:[%s639 + $0xf0] sm:$0xff]
      %v1859 = vld [vmem:[%s639 + $0xf8] sm:$0xff]
      %v1860 = vld [vmem:[%s644] sm:$0xff]
      %v1861 = vld [vmem:[%s644 + $0x8] sm:$0xff]
      %v1862 = vld [vmem:[%s644 + $0x10] sm:$0xff]
      %v1863 = vld [vmem:[%s644 + $0x18] sm:$0xff]
      %v1864 = vld [vmem:[%s644 + $0x20] sm:$0xff]
      %v1865 = vld [vmem:[%s644 + $0x28] sm:$0xff]
      %v1866 = vld [vmem:[%s644 + $0x30] sm:$0xff]
      %v1867 = vld [vmem:[%s644 + $0x38] sm:$0xff]
      %v1868 = vld [vmem:[%s644 + $0x40] sm:$0xff]
      %v1869 = vld [vmem:[%s644 + $0x48] sm:$0xff]
      %v1870 = vld [vmem:[%s644 + $0x50] sm:$0xff]
      %v1871 = vld [vmem:[%s644 + $0x58] sm:$0xff]
      %v1872 = vld [vmem:[%s644 + $0x60] sm:$0xff]
      %v1873 = vld [vmem:[%s644 + $0x68] sm:$0xff]
      %v1874 = vld [vmem:[%s644 + $0x70] sm:$0xff]
      %v1875 = vld [vmem:[%s644 + $0x78] sm:$0xff]
      %v1876 = vld [vmem:[%s644 + $0x80] sm:$0xff]
      %v1877 = vld [vmem:[%s644 + $0x88] sm:$0xff]
      %v1878 = vld [vmem:[%s644 + $0x90] sm:$0xff]
      %v1879 = vld [vmem:[%s644 + $0x98] sm:$0xff]
      %v1880 = vld [vmem:[%s644 + $0xa0] sm:$0xff]
      %v1881 = vld [vmem:[%s644 + $0xa8] sm:$0xff]
      %v1882 = vld [vmem:[%s644 + $0xb0] sm:$0xff]
      %v1883 = vld [vmem:[%s644 + $0xb8] sm:$0xff]
      %v1884 = vld [vmem:[%s644 + $0xc0] sm:$0xff]
      %v1885 = vld [vmem:[%s644 + $0xc8] sm:$0xff]
      %v1886 = vld [vmem:[%s644 + $0xd0] sm:$0xff]
      %v1887 = vld [vmem:[%s644 + $0xd8] sm:$0xff]
      %v1888 = vld [vmem:[%s644 + $0xe0] sm:$0xff]
      %v1889 = vld [vmem:[%s644 + $0xe8] sm:$0xff]
      %v1890 = vld [vmem:[%s644 + $0xf0] sm:$0xff]
      %v1891 = vld [vmem:[%s644 + $0xf8] sm:$0xff]
      %v1892 = vlaneseq
      %v1893 = vand.u32 %v1892, 127
      %v1894 = vadd.s32 %v1893, 128
      %1895 = vset.pattern.permute.xlu0 0
      %1896 = vperm.xlu0 %1895, %v1828
      %v1897 = vpop.permute.xlu0 %1896
      %1898 = vset.pattern.permute.xlu0 0
      %1899 = vperm.xlu0 %1898, %v1829
      %v1900 = vpop.permute.xlu0 %1899
      %1901 = vset.pattern.permute.xlu0 0
      %1902 = vperm.xlu0 %1901, %v1830
      %v1903 = vpop.permute.xlu0 %1902
      %1904 = vset.pattern.permute.xlu0 0
      %1905 = vperm.xlu0 %1904, %v1831
      %v1906 = vpop.permute.xlu0 %1905
      %1907 = vset.pattern.permute.xlu0 0
      %1908 = vperm.xlu0 %1907, %v1832
      %v1909 = vpop.permute.xlu0 %1908
      %1910 = vset.pattern.permute.xlu0 0
      %1911 = vperm.xlu0 %1910, %v1833
      %v1912 = vpop.permute.xlu0 %1911
      %1913 = vset.pattern.permute.xlu0 0
      %1914 = vperm.xlu0 %1913, %v1834
      %v1915 = vpop.permute.xlu0 %1914
      %1916 = vset.pattern.permute.xlu0 0
      %1917 = vperm.xlu0 %1916, %v1835
      %v1918 = vpop.permute.xlu0 %1917
      %1919 = vset.pattern.permute.xlu0 0
      %1920 = vperm.xlu0 %1919, %v1836
      %v1921 = vpop.permute.xlu0 %1920
      %1922 = vset.pattern.permute.xlu0 0
      %1923 = vperm.xlu0 %1922, %v1837
      %v1924 = vpop.permute.xlu0 %1923
      %1925 = vset.pattern.permute.xlu0 0
      %1926 = vperm.xlu0 %1925, %v1838
      %v1927 = vpop.permute.xlu0 %1926
      %1928 = vset.pattern.permute.xlu0 0
      %1929 = vperm.xlu0 %1928, %v1839
      %v1930 = vpop.permute.xlu0 %1929
      %1931 = vset.pattern.permute.xlu0 0
      %1932 = vperm.xlu0 %1931, %v1840
      %v1933 = vpop.permute.xlu0 %1932
      %1934 = vset.pattern.permute.xlu0 0
      %1935 = vperm.xlu0 %1934, %v1841
      %v1936 = vpop.permute.xlu0 %1935
      %1937 = vset.pattern.permute.xlu0 0
      %1938 = vperm.xlu0 %1937, %v1842
      %v1939 = vpop.permute.xlu0 %1938
      %1940 = vset.pattern.permute.xlu0 0
      %1941 = vperm.xlu0 %1940, %v1843
      %v1942 = vpop.permute.xlu0 %1941
      %1943 = vset.pattern.permute.xlu0 0
      %1944 = vperm.xlu0 %1943, %v1844
      %v1945 = vpop.permute.xlu0 %1944
      %1946 = vset.pattern.permute.xlu0 0
      %1947 = vperm.xlu0 %1946, %v1845
      %v1948 = vpop.permute.xlu0 %1947
      %1949 = vset.pattern.permute.xlu0 0
      %1950 = vperm.xlu0 %1949, %v1846
      %v1951 = vpop.permute.xlu0 %1950
      %1952 = vset.pattern.permute.xlu0 0
      %1953 = vperm.xlu0 %1952, %v1847
      %v1954 = vpop.permute.xlu0 %1953
      %1955 = vset.pattern.permute.xlu0 0
      %1956 = vperm.xlu0 %1955, %v1848
      %v1957 = vpop.permute.xlu0 %1956
      %1958 = vset.pattern.permute.xlu0 0
      %1959 = vperm.xlu0 %1958, %v1849
      %v1960 = vpop.permute.xlu0 %1959
      %1961 = vset.pattern.permute.xlu0 0
      %1962 = vperm.xlu0 %1961, %v1850
      %v1963 = vpop.permute.xlu0 %1962
      %1964 = vset.pattern.permute.xlu0 0
      %1965 = vperm.xlu0 %1964, %v1851
      %v1966 = vpop.permute.xlu0 %1965
      %1967 = vset.pattern.permute.xlu0 0
      %1968 = vperm.xlu0 %1967, %v1852
      %v1969 = vpop.permute.xlu0 %1968
      %1970 = vset.pattern.permute.xlu0 0
      %1971 = vperm.xlu0 %1970, %v1853
      %v1972 = vpop.permute.xlu0 %1971
      %1973 = vset.pattern.permute.xlu0 0
      %1974 = vperm.xlu0 %1973, %v1854
      %v1975 = vpop.permute.xlu0 %1974
      %1976 = vset.pattern.permute.xlu0 0
      %1977 = vperm.xlu0 %1976, %v1855
      %v1978 = vpop.permute.xlu0 %1977
      %1979 = vset.pattern.permute.xlu0 0
      %1980 = vperm.xlu0 %1979, %v1856
      %v1981 = vpop.permute.xlu0 %1980
      %1982 = vset.pattern.permute.xlu0 0
      %1983 = vperm.xlu0 %1982, %v1857
      %v1984 = vpop.permute.xlu0 %1983
      %1985 = vset.pattern.permute.xlu0 0
      %1986 = vperm.xlu0 %1985, %v1858
      %v1987 = vpop.permute.xlu0 %1986
      %1988 = vset.pattern.permute.xlu0 0
      %1989 = vperm.xlu0 %1988, %v1859
      %v1990 = vpop.permute.xlu0 %1989
      %vm1991 = vcmp.eq.s32.totalorder %v1893, %v1897
      %vm1992 = vcmp.eq.s32.totalorder %v1894, %v1897
      %vm1993 = vcmp.eq.s32.totalorder %v1893, %v1900
      %vm1994 = vcmp.eq.s32.totalorder %v1894, %v1900
      %vm1995 = vcmp.eq.s32.totalorder %v1893, %v1903
      %vm1996 = vcmp.eq.s32.totalorder %v1894, %v1903
      %vm1997 = vcmp.eq.s32.totalorder %v1893, %v1906
      %vm1998 = vcmp.eq.s32.totalorder %v1894, %v1906
      %vm1999 = vcmp.eq.s32.totalorder %v1893, %v1909
      %vm2000 = vcmp.eq.s32.totalorder %v1894, %v1909
      %vm2001 = vcmp.eq.s32.totalorder %v1893, %v1912
      %vm2002 = vcmp.eq.s32.totalorder %v1894, %v1912
      %vm2003 = vcmp.eq.s32.totalorder %v1893, %v1915
      %vm2004 = vcmp.eq.s32.totalorder %v1894, %v1915
      %vm2005 = vcmp.eq.s32.totalorder %v1893, %v1918
      %vm2006 = vcmp.eq.s32.totalorder %v1894, %v1918
      %vm2007 = vcmp.eq.s32.totalorder %v1893, %v1921
      %vm2008 = vcmp.eq.s32.totalorder %v1894, %v1921
      %vm2009 = vcmp.eq.s32.totalorder %v1893, %v1924
      %vm2010 = vcmp.eq.s32.totalorder %v1894, %v1924
      %vm2011 = vcmp.eq.s32.totalorder %v1893, %v1927
      %vm2012 = vcmp.eq.s32.totalorder %v1894, %v1927
      %vm2013 = vcmp.eq.s32.totalorder %v1893, %v1930
      %vm2014 = vcmp.eq.s32.totalorder %v1894, %v1930
      %vm2015 = vcmp.eq.s32.totalorder %v1893, %v1933
      %vm2016 = vcmp.eq.s32.totalorder %v1894, %v1933
      %vm2017 = vcmp.eq.s32.totalorder %v1893, %v1936
      %vm2018 = vcmp.eq.s32.totalorder %v1894, %v1936
      %vm2019 = vcmp.eq.s32.totalorder %v1893, %v1939
      %vm2020 = vcmp.eq.s32.totalorder %v1894, %v1939
      %vm2021 = vcmp.eq.s32.totalorder %v1893, %v1942
      %vm2022 = vcmp.eq.s32.totalorder %v1894, %v1942
      %vm2023 = vcmp.eq.s32.totalorder %v1893, %v1945
      %vm2024 = vcmp.eq.s32.totalorder %v1894, %v1945
      %vm2025 = vcmp.eq.s32.totalorder %v1893, %v1948
      %vm2026 = vcmp.eq.s32.totalorder %v1894, %v1948
      %vm2027 = vcmp.eq.s32.totalorder %v1893, %v1951
      %vm2028 = vcmp.eq.s32.totalorder %v1894, %v1951
      %vm2029 = vcmp.eq.s32.totalorder %v1893, %v1954
      %vm2030 = vcmp.eq.s32.totalorder %v1894, %v1954
      %vm2031 = vcmp.eq.s32.totalorder %v1893, %v1957
      %vm2032 = vcmp.eq.s32.totalorder %v1894, %v1957
      %vm2033 = vcmp.eq.s32.totalorder %v1893, %v1960
      %vm2034 = vcmp.eq.s32.totalorder %v1894, %v1960
      %vm2035 = vcmp.eq.s32.totalorder %v1893, %v1963
      %vm2036 = vcmp.eq.s32.totalorder %v1894, %v1963
      %vm2037 = vcmp.eq.s32.totalorder %v1893, %v1966
      %vm2038 = vcmp.eq.s32.totalorder %v1894, %v1966
      %vm2039 = vcmp.eq.s32.totalorder %v1893, %v1969
      %vm2040 = vcmp.eq.s32.totalorder %v1894, %v1969
      %vm2041 = vcmp.eq.s32.totalorder %v1893, %v1972
      %vm2042 = vcmp.eq.s32.totalorder %v1894, %v1972
      %vm2043 = vcmp.eq.s32.totalorder %v1893, %v1975
      %vm2044 = vcmp.eq.s32.totalorder %v1894, %v1975
      %vm2045 = vcmp.eq.s32.totalorder %v1893, %v1978
      %vm2046 = vcmp.eq.s32.totalorder %v1894, %v1978
      %vm2047 = vcmp.eq.s32.totalorder %v1893, %v1981
      %vm2048 = vcmp.eq.s32.totalorder %v1894, %v1981
      %vm2049 = vcmp.eq.s32.totalorder %v1893, %v1984
      %vm2050 = vcmp.eq.s32.totalorder %v1894, %v1984
      %vm2051 = vcmp.eq.s32.totalorder %v1893, %v1987
      %vm2052 = vcmp.eq.s32.totalorder %v1894, %v1987
      %vm2053 = vcmp.eq.s32.totalorder %v1893, %v1990
      %vm2054 = vcmp.eq.s32.totalorder %v1894, %v1990
      %2056 = vset.pattern.permute.xlu0 0
      %2057 = vperm.xlu0 %2056, %v1860
      %v2058 = vpop.permute.xlu0 %2057
      %2061 = vset.pattern.permute.xlu0 0
      %2062 = vperm.xlu0 %2061, %v1861
      %v2063 = vpop.permute.xlu0 %2062
      %2066 = vset.pattern.permute.xlu0 0
      %2067 = vperm.xlu0 %2066, %v1862
      %v2068 = vpop.permute.xlu0 %2067
      %2071 = vset.pattern.permute.xlu0 0
      %2072 = vperm.xlu0 %2071, %v1863
      %v2073 = vpop.permute.xlu0 %2072
      %2076 = vset.pattern.permute.xlu0 0
      %2077 = vperm.xlu0 %2076, %v1864
      %v2078 = vpop.permute.xlu0 %2077
      %2081 = vset.pattern.permute.xlu0 0
      %2082 = vperm.xlu0 %2081, %v1865
      %v2083 = vpop.permute.xlu0 %2082
      %2086 = vset.pattern.permute.xlu0 0
      %2087 = vperm.xlu0 %2086, %v1866
      %v2088 = vpop.permute.xlu0 %2087
      %2091 = vset.pattern.permute.xlu0 0
      %2092 = vperm.xlu0 %2091, %v1867
      %v2093 = vpop.permute.xlu0 %2092
      %2096 = vset.pattern.permute.xlu0 0
      %2097 = vperm.xlu0 %2096, %v1868
      %v2098 = vpop.permute.xlu0 %2097
      %2101 = vset.pattern.permute.xlu0 0
      %2102 = vperm.xlu0 %2101, %v1869
      %v2103 = vpop.permute.xlu0 %2102
      %2106 = vset.pattern.permute.xlu0 0
      %2107 = vperm.xlu0 %2106, %v1870
      %v2108 = vpop.permute.xlu0 %2107
      %2111 = vset.pattern.permute.xlu0 0
      %2112 = vperm.xlu0 %2111, %v1871
      %v2113 = vpop.permute.xlu0 %2112
      %2116 = vset.pattern.permute.xlu0 0
      %2117 = vperm.xlu0 %2116, %v1872
      %v2118 = vpop.permute.xlu0 %2117
      %2121 = vset.pattern.permute.xlu0 0
      %2122 = vperm.xlu0 %2121, %v1873
      %v2123 = vpop.permute.xlu0 %2122
      %2126 = vset.pattern.permute.xlu0 0
      %2127 = vperm.xlu0 %2126, %v1874
      %v2128 = vpop.permute.xlu0 %2127
      %2131 = vset.pattern.permute.xlu0 0
      %2132 = vperm.xlu0 %2131, %v1875
      %v2133 = vpop.permute.xlu0 %2132
      %2136 = vset.pattern.permute.xlu0 0
      %2137 = vperm.xlu0 %2136, %v1876
      %v2138 = vpop.permute.xlu0 %2137
      %2141 = vset.pattern.permute.xlu0 0
      %2142 = vperm.xlu0 %2141, %v1877
      %v2143 = vpop.permute.xlu0 %2142
      %2146 = vset.pattern.permute.xlu0 0
      %2147 = vperm.xlu0 %2146, %v1878
      %v2148 = vpop.permute.xlu0 %2147
      %2151 = vset.pattern.permute.xlu0 0
      %2152 = vperm.xlu0 %2151, %v1879
      %v2153 = vpop.permute.xlu0 %2152
      %2156 = vset.pattern.permute.xlu0 0
      %2157 = vperm.xlu0 %2156, %v1880
      %v2158 = vpop.permute.xlu0 %2157
      %2161 = vset.pattern.permute.xlu0 0
      %2162 = vperm.xlu0 %2161, %v1881
      %v2163 = vpop.permute.xlu0 %2162
      %2166 = vset.pattern.permute.xlu0 0
      %2167 = vperm.xlu0 %2166, %v1882
      %v2168 = vpop.permute.xlu0 %2167
      %2171 = vset.pattern.permute.xlu0 0
      %2172 = vperm.xlu0 %2171, %v1883
      %v2173 = vpop.permute.xlu0 %2172
      %2176 = vset.pattern.permute.xlu0 0
      %2177 = vperm.xlu0 %2176, %v1884
      %v2178 = vpop.permute.xlu0 %2177
      %2181 = vset.pattern.permute.xlu0 0
      %2182 = vperm.xlu0 %2181, %v1885
      %v2183 = vpop.permute.xlu0 %2182
      %2186 = vset.pattern.permute.xlu0 0
      %2187 = vperm.xlu0 %2186, %v1886
      %v2188 = vpop.permute.xlu0 %2187
      %2191 = vset.pattern.permute.xlu0 0
      %2192 = vperm.xlu0 %2191, %v1887
      %v2193 = vpop.permute.xlu0 %2192
      %2196 = vset.pattern.permute.xlu0 0
      %2197 = vperm.xlu0 %2196, %v1888
      %v2198 = vpop.permute.xlu0 %2197
      %2201 = vset.pattern.permute.xlu0 0
      %2202 = vperm.xlu0 %2201, %v1889
      %v2203 = vpop.permute.xlu0 %2202
      %2206 = vset.pattern.permute.xlu0 0
      %2207 = vperm.xlu0 %2206, %v1890
      %v2208 = vpop.permute.xlu0 %2207
      %2211 = vset.pattern.permute.xlu0 0
      %2212 = vperm.xlu0 %2211, %v1891
      %v2213 = vpop.permute.xlu0 %2212
      %v2215 = vsel %vm1991, %v2058, 0.0
      %v2216 = vsel %vm1992, %v2058, 0.0
      %v2217 = vsel %vm1993, %v2063, 0.0
      %v2218 = vsel %vm1994, %v2063, 0.0
      %v2219 = vsel %vm1995, %v2068, 0.0
      %v2220 = vsel %vm1996, %v2068, 0.0
      %v2221 = vsel %vm1997, %v2073, 0.0
      %v2222 = vsel %vm1998, %v2073, 0.0
      %v2223 = vsel %vm1999, %v2078, 0.0
      %v2224 = vsel %vm2000, %v2078, 0.0
      %v2225 = vsel %vm2001, %v2083, 0.0
      %v2226 = vsel %vm2002, %v2083, 0.0
      %v2227 = vsel %vm2003, %v2088, 0.0
      %v2228 = vsel %vm2004, %v2088, 0.0
      %v2229 = vsel %vm2005, %v2093, 0.0
      %v2230 = vsel %vm2006, %v2093, 0.0
      %v2231 = vsel %vm2007, %v2098, 0.0
      %v2232 = vsel %vm2008, %v2098, 0.0
      %v2233 = vsel %vm2009, %v2103, 0.0
      %v2234 = vsel %vm2010, %v2103, 0.0
      %v2235 = vsel %vm2011, %v2108, 0.0
      %v2236 = vsel %vm2012, %v2108, 0.0
      %v2237 = vsel %vm2013, %v2113, 0.0
      %v2238 = vsel %vm2014, %v2113, 0.0
      %v2239 = vsel %vm2015, %v2118, 0.0
      %v2240 = vsel %vm2016, %v2118, 0.0
      %v2241 = vsel %vm2017, %v2123, 0.0
      %v2242 = vsel %vm2018, %v2123, 0.0
      %v2243 = vsel %vm2019, %v2128, 0.0
      %v2244 = vsel %vm2020, %v2128, 0.0
      %v2245 = vsel %vm2021, %v2133, 0.0
      %v2246 = vsel %vm2022, %v2133, 0.0
      %v2247 = vsel %vm2023, %v2138, 0.0
      %v2248 = vsel %vm2024, %v2138, 0.0
      %v2249 = vsel %vm2025, %v2143, 0.0
      %v2250 = vsel %vm2026, %v2143, 0.0
      %v2251 = vsel %vm2027, %v2148, 0.0
      %v2252 = vsel %vm2028, %v2148, 0.0
      %v2253 = vsel %vm2029, %v2153, 0.0
      %v2254 = vsel %vm2030, %v2153, 0.0
      %v2255 = vsel %vm2031, %v2158, 0.0
      %v2256 = vsel %vm2032, %v2158, 0.0
      %v2257 = vsel %vm2033, %v2163, 0.0
      %v2258 = vsel %vm2034, %v2163, 0.0
      %v2259 = vsel %vm2035, %v2168, 0.0
      %v2260 = vsel %vm2036, %v2168, 0.0
      %v2261 = vsel %vm2037, %v2173, 0.0
      %v2262 = vsel %vm2038, %v2173, 0.0
      %v2263 = vsel %vm2039, %v2178, 0.0
      %v2264 = vsel %vm2040, %v2178, 0.0
      %v2265 = vsel %vm2041, %v2183, 0.0
      %v2266 = vsel %vm2042, %v2183, 0.0
      %v2267 = vsel %vm2043, %v2188, 0.0
      %v2268 = vsel %vm2044, %v2188, 0.0
      %v2269 = vsel %vm2045, %v2193, 0.0
      %v2270 = vsel %vm2046, %v2193, 0.0
      %v2271 = vsel %vm2047, %v2198, 0.0
      %v2272 = vsel %vm2048, %v2198, 0.0
      %v2273 = vsel %vm2049, %v2203, 0.0
      %v2274 = vsel %vm2050, %v2203, 0.0
      %v2275 = vsel %vm2051, %v2208, 0.0
      %v2276 = vsel %vm2052, %v2208, 0.0
      %v2277 = vsel %vm2053, %v2213, 0.0
      %v2278 = vsel %vm2054, %v2213, 0.0
      %v2279 = vadd.f32 %v2215, 0.0
      %v2280 = vadd.f32 %v2216, 0.0
      %v2281 = vadd.f32 %v2217, 0.0
      %v2282 = vadd.f32 %v2218, 0.0
      %v2283 = vadd.f32 %v2219, 0.0
      %v2284 = vadd.f32 %v2220, 0.0
      %v2285 = vadd.f32 %v2221, 0.0
      %v2286 = vadd.f32 %v2222, 0.0
      %v2287 = vadd.f32 %v2223, 0.0
      %v2288 = vadd.f32 %v2224, 0.0
      %v2289 = vadd.f32 %v2225, 0.0
      %v2290 = vadd.f32 %v2226, 0.0
      %v2291 = vadd.f32 %v2227, 0.0
      %v2292 = vadd.f32 %v2228, 0.0
      %v2293 = vadd.f32 %v2229, 0.0
      %v2294 = vadd.f32 %v2230, 0.0
      %v2295 = vadd.f32 %v2231, 0.0
      %v2296 = vadd.f32 %v2232, 0.0
      %v2297 = vadd.f32 %v2233, 0.0
      %v2298 = vadd.f32 %v2234, 0.0
      %v2299 = vadd.f32 %v2235, 0.0
      %v2300 = vadd.f32 %v2236, 0.0
      %v2301 = vadd.f32 %v2237, 0.0
      %v2302 = vadd.f32 %v2238, 0.0
      %v2303 = vadd.f32 %v2239, 0.0
      %v2304 = vadd.f32 %v2240, 0.0
      %v2305 = vadd.f32 %v2241, 0.0
      %v2306 = vadd.f32 %v2242, 0.0
      %v2307 = vadd.f32 %v2243, 0.0
      %v2308 = vadd.f32 %v2244, 0.0
      %v2309 = vadd.f32 %v2245, 0.0
      %v2310 = vadd.f32 %v2246, 0.0
      %v2311 = vadd.f32 %v2247, 0.0
      %v2312 = vadd.f32 %v2248, 0.0
      %v2313 = vadd.f32 %v2249, 0.0
      %v2314 = vadd.f32 %v2250, 0.0
      %v2315 = vadd.f32 %v2251, 0.0
      %v2316 = vadd.f32 %v2252, 0.0
      %v2317 = vadd.f32 %v2253, 0.0
      %v2318 = vadd.f32 %v2254, 0.0
      %v2319 = vadd.f32 %v2255, 0.0
      %v2320 = vadd.f32 %v2256, 0.0
      %v2321 = vadd.f32 %v2257, 0.0
      %v2322 = vadd.f32 %v2258, 0.0
      %v2323 = vadd.f32 %v2259, 0.0
      %v2324 = vadd.f32 %v2260, 0.0
      %v2325 = vadd.f32 %v2261, 0.0
      %v2326 = vadd.f32 %v2262, 0.0
      %v2327 = vadd.f32 %v2263, 0.0
      %v2328 = vadd.f32 %v2264, 0.0
      %v2329 = vadd.f32 %v2265, 0.0
      %v2330 = vadd.f32 %v2266, 0.0
      %v2331 = vadd.f32 %v2267, 0.0
      %v2332 = vadd.f32 %v2268, 0.0
      %v2333 = vadd.f32 %v2269, 0.0
      %v2334 = vadd.f32 %v2270, 0.0
      %v2335 = vadd.f32 %v2271, 0.0
      %v2336 = vadd.f32 %v2272, 0.0
      %v2337 = vadd.f32 %v2273, 0.0
      %v2338 = vadd.f32 %v2274, 0.0
      %v2339 = vadd.f32 %v2275, 0.0
      %v2340 = vadd.f32 %v2276, 0.0
      %v2341 = vadd.f32 %v2277, 0.0
      %v2342 = vadd.f32 %v2278, 0.0
      %2343 = vset.pattern.permute.xlu0 1
      %2344 = vperm.xlu0 %2343, %v1828
      %v2345 = vpop.permute.xlu0 %2344
      %2346 = vset.pattern.permute.xlu0 1
      %2347 = vperm.xlu0 %2346, %v1829
      %v2348 = vpop.permute.xlu0 %2347
      %2349 = vset.pattern.permute.xlu0 1
      %2350 = vperm.xlu0 %2349, %v1830
      %v2351 = vpop.permute.xlu0 %2350
      %2352 = vset.pattern.permute.xlu0 1
      %2353 = vperm.xlu0 %2352, %v1831
      %v2354 = vpop.permute.xlu0 %2353
      %2355 = vset.pattern.permute.xlu0 1
      %2356 = vperm.xlu0 %2355, %v1832
      %v2357 = vpop.permute.xlu0 %2356
      %2358 = vset.pattern.permute.xlu0 1
      %2359 = vperm.xlu0 %2358, %v1833
      %v2360 = vpop.permute.xlu0 %2359
      %2361 = vset.pattern.permute.xlu0 1
      %2362 = vperm.xlu0 %2361, %v1834
      %v2363 = vpop.permute.xlu0 %2362
      %2364 = vset.pattern.permute.xlu0 1
      %2365 = vperm.xlu0 %2364, %v1835
      %v2366 = vpop.permute.xlu0 %2365
      %2367 = vset.pattern.permute.xlu0 1
      %2368 = vperm.xlu0 %2367, %v1836
      %v2369 = vpop.permute.xlu0 %2368
      %2370 = vset.pattern.permute.xlu0 1
      %2371 = vperm.xlu0 %2370, %v1837
      %v2372 = vpop.permute.xlu0 %2371
      %2373 = vset.pattern.permute.xlu0 1
      %2374 = vperm.xlu0 %2373, %v1838
      %v2375 = vpop.permute.xlu0 %2374
      %2376 = vset.pattern.permute.xlu0 1
      %2377 = vperm.xlu0 %2376, %v1839
      %v2378 = vpop.permute.xlu0 %2377
      %2379 = vset.pattern.permute.xlu0 1
      %2380 = vperm.xlu0 %2379, %v1840
      %v2381 = vpop.permute.xlu0 %2380
      %2382 = vset.pattern.permute.xlu0 1
      %2383 = vperm.xlu0 %2382, %v1841
      %v2384 = vpop.permute.xlu0 %2383
      %2385 = vset.pattern.permute.xlu0 1
      %2386 = vperm.xlu0 %2385, %v1842
      %v2387 = vpop.permute.xlu0 %2386
      %2388 = vset.pattern.permute.xlu0 1
      %2389 = vperm.xlu0 %2388, %v1843
      %v2390 = vpop.permute.xlu0 %2389
      %2391 = vset.pattern.permute.xlu0 1
      %2392 = vperm.xlu0 %2391, %v1844
      %v2393 = vpop.permute.xlu0 %2392
      %2394 = vset.pattern.permute.xlu0 1
      %2395 = vperm.xlu0 %2394, %v1845
      %v2396 = vpop.permute.xlu0 %2395
      %2397 = vset.pattern.permute.xlu0 1
      %2398 = vperm.xlu0 %2397, %v1846
      %v2399 = vpop.permute.xlu0 %2398
      %2400 = vset.pattern.permute.xlu0 1
      %2401 = vperm.xlu0 %2400, %v1847
      %v2402 = vpop.permute.xlu0 %2401
      %2403 = vset.pattern.permute.xlu0 1
      %2404 = vperm.xlu0 %2403, %v1848
      %v2405 = vpop.permute.xlu0 %2404
      %2406 = vset.pattern.permute.xlu0 1
      %2407 = vperm.xlu0 %2406, %v1849
      %v2408 = vpop.permute.xlu0 %2407
      %2409 = vset.pattern.permute.xlu0 1
      %2410 = vperm.xlu0 %2409, %v1850
      %v2411 = vpop.permute.xlu0 %2410
      %2412 = vset.pattern.permute.xlu0 1
      %2413 = vperm.xlu0 %2412, %v1851
      %v2414 = vpop.permute.xlu0 %2413
      %2415 = vset.pattern.permute.xlu0 1
      %2416 = vperm.xlu0 %2415, %v1852
      %v2417 = vpop.permute.xlu0 %2416
      %2418 = vset.pattern.permute.xlu0 1
      %2419 = vperm.xlu0 %2418, %v1853
      %v2420 = vpop.permute.xlu0 %2419
      %2421 = vset.pattern.permute.xlu0 1
      %2422 = vperm.xlu0 %2421, %v1854
      %v2423 = vpop.permute.xlu0 %2422
      %2424 = vset.pattern.permute.xlu0 1
      %2425 = vperm.xlu0 %2424, %v1855
      %v2426 = vpop.permute.xlu0 %2425
      %2427 = vset.pattern.permute.xlu0 1
      %2428 = vperm.xlu0 %2427, %v1856
      %v2429 = vpop.permute.xlu0 %2428
      %2430 = vset.pattern.permute.xlu0 1
      %2431 = vperm.xlu0 %2430, %v1857
      %v2432 = vpop.permute.xlu0 %2431
      %2433 = vset.pattern.permute.xlu0 1
      %2434 = vperm.xlu0 %2433, %v1858
      %v2435 = vpop.permute.xlu0 %2434
      %2436 = vset.pattern.permute.xlu0 1
      %2437 = vperm.xlu0 %2436, %v1859
      %v2438 = vpop.permute.xlu0 %2437
      %vm2439 = vcmp.eq.s32.totalorder %v1893, %v2345
      %vm2440 = vcmp.eq.s32.totalorder %v1894, %v2345
      %vm2441 = vcmp.eq.s32.totalorder %v1893, %v2348
      %vm2442 = vcmp.eq.s32.totalorder %v1894, %v2348
      %vm2443 = vcmp.eq.s32.totalorder %v1893, %v2351
      %vm2444 = vcmp.eq.s32.totalorder %v1894, %v2351
      %vm2445 = vcmp.eq.s32.totalorder %v1893, %v2354
      %vm2446 = vcmp.eq.s32.totalorder %v1894, %v2354
      %vm2447 = vcmp.eq.s32.totalorder %v1893, %v2357
      %vm2448 = vcmp.eq.s32.totalorder %v1894, %v2357
      %vm2449 = vcmp.eq.s32.totalorder %v1893, %v2360
      %vm2450 = vcmp.eq.s32.totalorder %v1894, %v2360
      %vm2451 = vcmp.eq.s32.totalorder %v1893, %v2363
      %vm2452 = vcmp.eq.s32.totalorder %v1894, %v2363
      %vm2453 = vcmp.eq.s32.totalorder %v1893, %v2366
      %vm2454 = vcmp.eq.s32.totalorder %v1894, %v2366
      %vm2455 = vcmp.eq.s32.totalorder %v1893, %v2369
      %vm2456 = vcmp.eq.s32.totalorder %v1894, %v2369
      %vm2457 = vcmp.eq.s32.totalorder %v1893, %v2372
      %vm2458 = vcmp.eq.s32.totalorder %v1894, %v2372
      %vm2459 = vcmp.eq.s32.totalorder %v1893, %v2375
      %vm2460 = vcmp.eq.s32.totalorder %v1894, %v2375
      %vm2461 = vcmp.eq.s32.totalorder %v1893, %v2378
      %vm2462 = vcmp.eq.s32.totalorder %v1894, %v2378
      %vm2463 = vcmp.eq.s32.totalorder %v1893, %v2381
      %vm2464 = vcmp.eq.s32.totalorder %v1894, %v2381
      %vm2465 = vcmp.eq.s32.totalorder %v1893, %v2384
      %vm2466 = vcmp.eq.s32.totalorder %v1894, %v2384
      %vm2467 = vcmp.eq.s32.totalorder %v1893, %v2387
      %vm2468 = vcmp.eq.s32.totalorder %v1894, %v2387
      %vm2469 = vcmp.eq.s32.totalorder %v1893, %v2390
      %vm2470 = vcmp.eq.s32.totalorder %v1894, %v2390
      %vm2471 = vcmp.eq.s32.totalorder %v1893, %v2393
      %vm2472 = vcmp.eq.s32.totalorder %v1894, %v2393
      %vm2473 = vcmp.eq.s32.totalorder %v1893, %v2396
      %vm2474 = vcmp.eq.s32.totalorder %v1894, %v2396
      %vm2475 = vcmp.eq.s32.totalorder %v1893, %v2399
      %vm2476 = vcmp.eq.s32.totalorder %v1894, %v2399
      %vm2477 = vcmp.eq.s32.totalorder %v1893, %v2402
      %vm2478 = vcmp.eq.s32.totalorder %v1894, %v2402
      %vm2479 = vcmp.eq.s32.totalorder %v1893, %v2405
      %vm2480 = vcmp.eq.s32.totalorder %v1894, %v2405
      %vm2481 = vcmp.eq.s32.totalorder %v1893, %v2408
      %vm2482 = vcmp.eq.s32.totalorder %v1894, %v2408
      %vm2483 = vcmp.eq.s32.totalorder %v1893, %v2411
      %vm2484 = vcmp.eq.s32.totalorder %v1894, %v2411
      %vm2485 = vcmp.eq.s32.totalorder %v1893, %v2414
      %vm2486 = vcmp.eq.s32.totalorder %v1894, %v2414
      %vm2487 = vcmp.eq.s32.totalorder %v1893, %v2417
      %vm2488 = vcmp.eq.s32.totalorder %v1894, %v2417
      %vm2489 = vcmp.eq.s32.totalorder %v1893, %v2420
      %vm2490 = vcmp.eq.s32.totalorder %v1894, %v2420
      %vm2491 = vcmp.eq.s32.totalorder %v1893, %v2423
      %vm2492 = vcmp.eq.s32.totalorder %v1894, %v2423
      %vm2493 = vcmp.eq.s32.totalorder %v1893, %v2426
      %vm2494 = vcmp.eq.s32.totalorder %v1894, %v2426
      %vm2495 = vcmp.eq.s32.totalorder %v1893, %v2429
      %vm2496 = vcmp.eq.s32.totalorder %v1894, %v2429
      %vm2497 = vcmp.eq.s32.totalorder %v1893, %v2432
      %vm2498 = vcmp.eq.s32.totalorder %v1894, %v2432
      %vm2499 = vcmp.eq.s32.totalorder %v1893, %v2435
      %vm2500 = vcmp.eq.s32.totalorder %v1894, %v2435
      %vm2501 = vcmp.eq.s32.totalorder %v1893, %v2438
      %vm2502 = vcmp.eq.s32.totalorder %v1894, %v2438
      %2503 = vset.pattern.permute.xlu0 1
      %2504 = vperm.xlu0 %2503, %v1860
      %v2505 = vpop.permute.xlu0 %2504
      %2507 = vset.pattern.permute.xlu0 1
      %2508 = vperm.xlu0 %2507, %v1861
      %v2509 = vpop.permute.xlu0 %2508
      %2511 = vset.pattern.permute.xlu0 1
      %2512 = vperm.xlu0 %2511, %v1862
      %v2513 = vpop.permute.xlu0 %2512
      %2515 = vset.pattern.permute.xlu0 1
      %2516 = vperm.xlu0 %2515, %v1863
      %v2517 = vpop.permute.xlu0 %2516
      %2519 = vset.pattern.permute.xlu0 1
      %2520 = vperm.xlu0 %2519, %v1864
      %v2521 = vpop.permute.xlu0 %2520
      %2523 = vset.pattern.permute.xlu0 1
      %2524 = vperm.xlu0 %2523, %v1865
      %v2525 = vpop.permute.xlu0 %2524
      %2527 = vset.pattern.permute.xlu0 1
      %2528 = vperm.xlu0 %2527, %v1866
      %v2529 = vpop.permute.xlu0 %2528
      %2531 = vset.pattern.permute.xlu0 1
      %2532 = vperm.xlu0 %2531, %v1867
      %v2533 = vpop.permute.xlu0 %2532
      %2535 = vset.pattern.permute.xlu0 1
      %2536 = vperm.xlu0 %2535, %v1868
      %v2537 = vpop.permute.xlu0 %2536
      %2539 = vset.pattern.permute.xlu0 1
      %2540 = vperm.xlu0 %2539, %v1869
      %v2541 = vpop.permute.xlu0 %2540
      %2543 = vset.pattern.permute.xlu0 1
      %2544 = vperm.xlu0 %2543, %v1870
      %v2545 = vpop.permute.xlu0 %2544
      %2547 = vset.pattern.permute.xlu0 1
      %2548 = vperm.xlu0 %2547, %v1871
      %v2549 = vpop.permute.xlu0 %2548
      %2551 = vset.pattern.permute.xlu0 1
      %2552 = vperm.xlu0 %2551, %v1872
      %v2553 = vpop.permute.xlu0 %2552
      %2555 = vset.pattern.permute.xlu0 1
      %2556 = vperm.xlu0 %2555, %v1873
      %v2557 = vpop.permute.xlu0 %2556
      %2559 = vset.pattern.permute.xlu0 1
      %2560 = vperm.xlu0 %2559, %v1874
      %v2561 = vpop.permute.xlu0 %2560
      %2563 = vset.pattern.permute.xlu0 1
      %2564 = vperm.xlu0 %2563, %v1875
      %v2565 = vpop.permute.xlu0 %2564
      %2567 = vset.pattern.permute.xlu0 1
      %2568 = vperm.xlu0 %2567, %v1876
      %v2569 = vpop.permute.xlu0 %2568
      %2571 = vset.pattern.permute.xlu0 1
      %2572 = vperm.xlu0 %2571, %v1877
      %v2573 = vpop.permute.xlu0 %2572
      %2575 = vset.pattern.permute.xlu0 1
      %2576 = vperm.xlu0 %2575, %v1878
      %v2577 = vpop.permute.xlu0 %2576
      %2579 = vset.pattern.permute.xlu0 1
      %2580 = vperm.xlu0 %2579, %v1879
      %v2581 = vpop.permute.xlu0 %2580
      %2583 = vset.pattern.permute.xlu0 1
      %2584 = vperm.xlu0 %2583, %v1880
      %v2585 = vpop.permute.xlu0 %2584
      %2587 = vset.pattern.permute.xlu0 1
      %2588 = vperm.xlu0 %2587, %v1881
      %v2589 = vpop.permute.xlu0 %2588
      %2591 = vset.pattern.permute.xlu0 1
      %2592 = vperm.xlu0 %2591, %v1882
      %v2593 = vpop.permute.xlu0 %2592
      %2595 = vset.pattern.permute.xlu0 1
      %2596 = vperm.xlu0 %2595, %v1883
      %v2597 = vpop.permute.xlu0 %2596
      %2599 = vset.pattern.permute.xlu0 1
      %2600 = vperm.xlu0 %2599, %v1884
      %v2601 = vpop.permute.xlu0 %2600
      %2603 = vset.pattern.permute.xlu0 1
      %2604 = vperm.xlu0 %2603, %v1885
      %v2605 = vpop.permute.xlu0 %2604
      %2607 = vset.pattern.permute.xlu0 1
      %2608 = vperm.xlu0 %2607, %v1886
      %v2609 = vpop.permute.xlu0 %2608
      %2611 = vset.pattern.permute.xlu0 1
      %2612 = vperm.xlu0 %2611, %v1887
      %v2613 = vpop.permute.xlu0 %2612
      %2615 = vset.pattern.permute.xlu0 1
      %2616 = vperm.xlu0 %2615, %v1888
      %v2617 = vpop.permute.xlu0 %2616
      %2619 = vset.pattern.permute.xlu0 1
      %2620 = vperm.xlu0 %2619, %v1889
      %v2621 = vpop.permute.xlu0 %2620
      %2623 = vset.pattern.permute.xlu0 1
      %2624 = vperm.xlu0 %2623, %v1890
      %v2625 = vpop.permute.xlu0 %2624
      %2627 = vset.pattern.permute.xlu0 1
      %2628 = vperm.xlu0 %2627, %v1891
      %v2629 = vpop.permute.xlu0 %2628
      %v2631 = vsel %vm2439, %v2505, 0.0
      %v2632 = vsel %vm2440, %v2505, 0.0
      %v2633 = vsel %vm2441, %v2509, 0.0
      %v2634 = vsel %vm2442, %v2509, 0.0
      %v2635 = vsel %vm2443, %v2513, 0.0
      %v2636 = vsel %vm2444, %v2513, 0.0
      %v2637 = vsel %vm2445, %v2517, 0.0
      %v2638 = vsel %vm2446, %v2517, 0.0
      %v2639 = vsel %vm2447, %v2521, 0.0
      %v2640 = vsel %vm2448, %v2521, 0.0
      %v2641 = vsel %vm2449, %v2525, 0.0
      %v2642 = vsel %vm2450, %v2525, 0.0
      %v2643 = vsel %vm2451, %v2529, 0.0
      %v2644 = vsel %vm2452, %v2529, 0.0
      %v2645 = vsel %vm2453, %v2533, 0.0
      %v2646 = vsel %vm2454, %v2533, 0.0
      %v2647 = vsel %vm2455, %v2537, 0.0
      %v2648 = vsel %vm2456, %v2537, 0.0
      %v2649 = vsel %vm2457, %v2541, 0.0
      %v2650 = vsel %vm2458, %v2541, 0.0
      %v2651 = vsel %vm2459, %v2545, 0.0
      %v2652 = vsel %vm2460, %v2545, 0.0
      %v2653 = vsel %vm2461, %v2549, 0.0
      %v2654 = vsel %vm2462, %v2549, 0.0
      %v2655 = vsel %vm2463, %v2553, 0.0
      %v2656 = vsel %vm2464, %v2553, 0.0
      %v2657 = vsel %vm2465, %v2557, 0.0
      %v2658 = vsel %vm2466, %v2557, 0.0
      %v2659 = vsel %vm2467, %v2561, 0.0
      %v2660 = vsel %vm2468, %v2561, 0.0
      %v2661 = vsel %vm2469, %v2565, 0.0
      %v2662 = vsel %vm2470, %v2565, 0.0
      %v2663 = vsel %vm2471, %v2569, 0.0
      %v2664 = vsel %vm2472, %v2569, 0.0
      %v2665 = vsel %vm2473, %v2573, 0.0
      %v2666 = vsel %vm2474, %v2573, 0.0
      %v2667 = vsel %vm2475, %v2577, 0.0
      %v2668 = vsel %vm2476, %v2577, 0.0
      %v2669 = vsel %vm2477, %v2581, 0.0
      %v2670 = vsel %vm2478, %v2581, 0.0
      %v2671 = vsel %vm2479, %v2585, 0.0
      %v2672 = vsel %vm2480, %v2585, 0.0
      %v2673 = vsel %vm2481, %v2589, 0.0
      %v2674 = vsel %vm2482, %v2589, 0.0
      %v2675 = vsel %vm2483, %v2593, 0.0
      %v2676 = vsel %vm2484, %v2593, 0.0
      %v2677 = vsel %vm2485, %v2597, 0.0
      %v2678 = vsel %vm2486, %v2597, 0.0
      %v2679 = vsel %vm2487, %v2601, 0.0
      %v2680 = vsel %vm2488, %v2601, 0.0
      %v2681 = vsel %vm2489, %v2605, 0.0
      %v2682 = vsel %vm2490, %v2605, 0.0
      %v2683 = vsel %vm2491, %v2609, 0.0
      %v2684 = vsel %vm2492, %v2609, 0.0
      %v2685 = vsel %vm2493, %v2613, 0.0
      %v2686 = vsel %vm2494, %v2613, 0.0
      %v2687 = vsel %vm2495, %v2617, 0.0
      %v2688 = vsel %vm2496, %v2617, 0.0
      %v2689 = vsel %vm2497, %v2621, 0.0
      %v2690 = vsel %vm2498, %v2621, 0.0
      %v2691 = vsel %vm2499, %v2625, 0.0
      %v2692 = vsel %vm2500, %v2625, 0.0
      %v2693 = vsel %vm2501, %v2629, 0.0
      %v2694 = vsel %vm2502, %v2629, 0.0
      %v2695 = vadd.f32 %v2279, %v2631
      %v2696 = vadd.f32 %v2280, %v2632
      %v2697 = vadd.f32 %v2281, %v2633
      %v2698 = vadd.f32 %v2282, %v2634
      %v2699 = vadd.f32 %v2283, %v2635
      %v2700 = vadd.f32 %v2284, %v2636
      %v2701 = vadd.f32 %v2285, %v2637
      %v2702 = vadd.f32 %v2286, %v2638
      %v2703 = vadd.f32 %v2287, %v2639
      %v2704 = vadd.f32 %v2288, %v2640
      %v2705 = vadd.f32 %v2289, %v2641
      %v2706 = vadd.f32 %v2290, %v2642
      %v2707 = vadd.f32 %v2291, %v2643
      %v2708 = vadd.f32 %v2292, %v2644
      %v2709 = vadd.f32 %v2293, %v2645
      %v2710 = vadd.f32 %v2294, %v2646
      %v2711 = vadd.f32 %v2295, %v2647
      %v2712 = vadd.f32 %v2296, %v2648
      %v2713 = vadd.f32 %v2297, %v2649
      %v2714 = vadd.f32 %v2298, %v2650
      %v2715 = vadd.f32 %v2299, %v2651
      %v2716 = vadd.f32 %v2300, %v2652
      %v2717 = vadd.f32 %v2301, %v2653
      %v2718 = vadd.f32 %v2302, %v2654
      %v2719 = vadd.f32 %v2303, %v2655
      %v2720 = vadd.f32 %v2304, %v2656
      %v2721 = vadd.f32 %v2305, %v2657
      %v2722 = vadd.f32 %v2306, %v2658
      %v2723 = vadd.f32 %v2307, %v2659
      %v2724 = vadd.f32 %v2308, %v2660
      %v2725 = vadd.f32 %v2309, %v2661
      %v2726 = vadd.f32 %v2310, %v2662
      %v2727 = vadd.f32 %v2311, %v2663
      %v2728 = vadd.f32 %v2312, %v2664
      %v2729 = vadd.f32 %v2313, %v2665
      %v2730 = vadd.f32 %v2314, %v2666
      %v2731 = vadd.f32 %v2315, %v2667
      %v2732 = vadd.f32 %v2316, %v2668
      %v2733 = vadd.f32 %v2317, %v2669
      %v2734 = vadd.f32 %v2318, %v2670
      %v2735 = vadd.f32 %v2319, %v2671
      %v2736 = vadd.f32 %v2320, %v2672
      %v2737 = vadd.f32 %v2321, %v2673
      %v2738 = vadd.f32 %v2322, %v2674
      %v2739 = vadd.f32 %v2323, %v2675
      %v2740 = vadd.f32 %v2324, %v2676
      %v2741 = vadd.f32 %v2325, %v2677
      %v2742 = vadd.f32 %v2326, %v2678
      %v2743 = vadd.f32 %v2327, %v2679
      %v2744 = vadd.f32 %v2328, %v2680
      %v2745 = vadd.f32 %v2329, %v2681
      %v2746 = vadd.f32 %v2330, %v2682
      %v2747 = vadd.f32 %v2331, %v2683
      %v2748 = vadd.f32 %v2332, %v2684
      %v2749 = vadd.f32 %v2333, %v2685
      %v2750 = vadd.f32 %v2334, %v2686
      %v2751 = vadd.f32 %v2335, %v2687
      %v2752 = vadd.f32 %v2336, %v2688
      %v2753 = vadd.f32 %v2337, %v2689
      %v2754 = vadd.f32 %v2338, %v2690
      %v2755 = vadd.f32 %v2339, %v2691
      %v2756 = vadd.f32 %v2340, %v2692
      %v2757 = vadd.f32 %v2341, %v2693
      %v2758 = vadd.f32 %v2342, %v2694
      %2759 = vset.pattern.permute.xlu0 2
      %2760 = vperm.xlu0 %2759, %v1828
      %v2761 = vpop.permute.xlu0 %2760
      %2762 = vset.pattern.permute.xlu0 2
      %2763 = vperm.xlu0 %2762, %v1829
      %v2764 = vpop.permute.xlu0 %2763
      %2765 = vset.pattern.permute.xlu0 2
      %2766 = vperm.xlu0 %2765, %v1830
      %v2767 = vpop.permute.xlu0 %2766
      %2768 = vset.pattern.permute.xlu0 2
      %2769 = vperm.xlu0 %2768, %v1831
      %v2770 = vpop.permute.xlu0 %2769
      %2771 = vset.pattern.permute.xlu0 2
      %2772 = vperm.xlu0 %2771, %v1832
      %v2773 = vpop.permute.xlu0 %2772
      %2774 = vset.pattern.permute.xlu0 2
      %2775 = vperm.xlu0 %2774, %v1833
      %v2776 = vpop.permute.xlu0 %2775
      %2777 = vset.pattern.permute.xlu0 2
      %2778 = vperm.xlu0 %2777, %v1834
      %v2779 = vpop.permute.xlu0 %2778
      %2780 = vset.pattern.permute.xlu0 2
      %2781 = vperm.xlu0 %2780, %v1835
      %v2782 = vpop.permute.xlu0 %2781
      %2783 = vset.pattern.permute.xlu0 2
      %2784 = vperm.xlu0 %2783, %v1836
      %v2785 = vpop.permute.xlu0 %2784
      %2786 = vset.pattern.permute.xlu0 2
      %2787 = vperm.xlu0 %2786, %v1837
      %v2788 = vpop.permute.xlu0 %2787
      %2789 = vset.pattern.permute.xlu0 2
      %2790 = vperm.xlu0 %2789, %v1838
      %v2791 = vpop.permute.xlu0 %2790
      %2792 = vset.pattern.permute.xlu0 2
      %2793 = vperm.xlu0 %2792, %v1839
      %v2794 = vpop.permute.xlu0 %2793
      %2795 = vset.pattern.permute.xlu0 2
      %2796 = vperm.xlu0 %2795, %v1840
      %v2797 = vpop.permute.xlu0 %2796
      %2798 = vset.pattern.permute.xlu0 2
      %2799 = vperm.xlu0 %2798, %v1841
      %v2800 = vpop.permute.xlu0 %2799
      %2801 = vset.pattern.permute.xlu0 2
      %2802 = vperm.xlu0 %2801, %v1842
      %v2803 = vpop.permute.xlu0 %2802
      %2804 = vset.pattern.permute.xlu0 2
      %2805 = vperm.xlu0 %2804, %v1843
      %v2806 = vpop.permute.xlu0 %2805
      %2807 = vset.pattern.permute.xlu0 2
      %2808 = vperm.xlu0 %2807, %v1844
      %v2809 = vpop.permute.xlu0 %2808
      %2810 = vset.pattern.permute.xlu0 2
      %2811 = vperm.xlu0 %2810, %v1845
      %v2812 = vpop.permute.xlu0 %2811
      %2813 = vset.pattern.permute.xlu0 2
      %2814 = vperm.xlu0 %2813, %v1846
      %v2815 = vpop.permute.xlu0 %2814
      %2816 = vset.pattern.permute.xlu0 2
      %2817 = vperm.xlu0 %2816, %v1847
      %v2818 = vpop.permute.xlu0 %2817
      %2819 = vset.pattern.permute.xlu0 2
      %2820 = vperm.xlu0 %2819, %v1848
      %v2821 = vpop.permute.xlu0 %2820
      %2822 = vset.pattern.permute.xlu0 2
      %2823 = vperm.xlu0 %2822, %v1849
      %v2824 = vpop.permute.xlu0 %2823
      %2825 = vset.pattern.permute.xlu0 2
      %2826 = vperm.xlu0 %2825, %v1850
      %v2827 = vpop.permute.xlu0 %2826
      %2828 = vset.pattern.permute.xlu0 2
      %2829 = vperm.xlu0 %2828, %v1851
      %v2830 = vpop.permute.xlu0 %2829
      %2831 = vset.pattern.permute.xlu0 2
      %2832 = vperm.xlu0 %2831, %v1852
      %v2833 = vpop.permute.xlu0 %2832
      %2834 = vset.pattern.permute.xlu0 2
      %2835 = vperm.xlu0 %2834, %v1853
      %v2836 = vpop.permute.xlu0 %2835
      %2837 = vset.pattern.permute.xlu0 2
      %2838 = vperm.xlu0 %2837, %v1854
      %v2839 = vpop.permute.xlu0 %2838
      %2840 = vset.pattern.permute.xlu0 2
      %2841 = vperm.xlu0 %2840, %v1855
      %v2842 = vpop.permute.xlu0 %2841
      %2843 = vset.pattern.permute.xlu0 2
      %2844 = vperm.xlu0 %2843, %v1856
      %v2845 = vpop.permute.xlu0 %2844
      %2846 = vset.pattern.permute.xlu0 2
      %2847 = vperm.xlu0 %2846, %v1857
      %v2848 = vpop.permute.xlu0 %2847
      %2849 = vset.pattern.permute.xlu0 2
      %2850 = vperm.xlu0 %2849, %v1858
      %v2851 = vpop.permute.xlu0 %2850
      %2852 = vset.pattern.permute.xlu0 2
      %2853 = vperm.xlu0 %2852, %v1859
      %v2854 = vpop.permute.xlu0 %2853
      %vm2855 = vcmp.eq.s32.totalorder %v1893, %v2761
      %vm2856 = vcmp.eq.s32.totalorder %v1894, %v2761
      %vm2857 = vcmp.eq.s32.totalorder %v1893, %v2764
      %vm2858 = vcmp.eq.s32.totalorder %v1894, %v2764
      %vm2859 = vcmp.eq.s32.totalorder %v1893, %v2767
      %vm2860 = vcmp.eq.s32.totalorder %v1894, %v2767
      %vm2861 = vcmp.eq.s32.totalorder %v1893, %v2770
      %vm2862 = vcmp.eq.s32.totalorder %v1894, %v2770
      %vm2863 = vcmp.eq.s32.totalorder %v1893, %v2773
      %vm2864 = vcmp.eq.s32.totalorder %v1894, %v2773
      %vm2865 = vcmp.eq.s32.totalorder %v1893, %v2776
      %vm2866 = vcmp.eq.s32.totalorder %v1894, %v2776
      %vm2867 = vcmp.eq.s32.totalorder %v1893, %v2779
      %vm2868 = vcmp.eq.s32.totalorder %v1894, %v2779
      %vm2869 = vcmp.eq.s32.totalorder %v1893, %v2782
      %vm2870 = vcmp.eq.s32.totalorder %v1894, %v2782
      %vm2871 = vcmp.eq.s32.totalorder %v1893, %v2785
      %vm2872 = vcmp.eq.s32.totalorder %v1894, %v2785
      %vm2873 = vcmp.eq.s32.totalorder %v1893, %v2788
      %vm2874 = vcmp.eq.s32.totalorder %v1894, %v2788
      %vm2875 = vcmp.eq.s32.totalorder %v1893, %v2791
      %vm2876 = vcmp.eq.s32.totalorder %v1894, %v2791
      %vm2877 = vcmp.eq.s32.totalorder %v1893, %v2794
      %vm2878 = vcmp.eq.s32.totalorder %v1894, %v2794
      %vm2879 = vcmp.eq.s32.totalorder %v1893, %v2797
      %vm2880 = vcmp.eq.s32.totalorder %v1894, %v2797
      %vm2881 = vcmp.eq.s32.totalorder %v1893, %v2800
      %vm2882 = vcmp.eq.s32.totalorder %v1894, %v2800
      %vm2883 = vcmp.eq.s32.totalorder %v1893, %v2803
      %vm2884 = vcmp.eq.s32.totalorder %v1894, %v2803
      %vm2885 = vcmp.eq.s32.totalorder %v1893, %v2806
      %vm2886 = vcmp.eq.s32.totalorder %v1894, %v2806
      %vm2887 = vcmp.eq.s32.totalorder %v1893, %v2809
      %vm2888 = vcmp.eq.s32.totalorder %v1894, %v2809
      %vm2889 = vcmp.eq.s32.totalorder %v1893, %v2812
      %vm2890 = vcmp.eq.s32.totalorder %v1894, %v2812
      %vm2891 = vcmp.eq.s32.totalorder %v1893, %v2815
      %vm2892 = vcmp.eq.s32.totalorder %v1894, %v2815
      %vm2893 = vcmp.eq.s32.totalorder %v1893, %v2818
      %vm2894 = vcmp.eq.s32.totalorder %v1894, %v2818
      %vm2895 = vcmp.eq.s32.totalorder %v1893, %v2821
      %vm2896 = vcmp.eq.s32.totalorder %v1894, %v2821
      %vm2897 = vcmp.eq.s32.totalorder %v1893, %v2824
      %vm2898 = vcmp.eq.s32.totalorder %v1894, %v2824
      %vm2899 = vcmp.eq.s32.totalorder %v1893, %v2827
      %vm2900 = vcmp.eq.s32.totalorder %v1894, %v2827
      %vm2901 = vcmp.eq.s32.totalorder %v1893, %v2830
      %vm2902 = vcmp.eq.s32.totalorder %v1894, %v2830
      %vm2903 = vcmp.eq.s32.totalorder %v1893, %v2833
      %vm2904 = vcmp.eq.s32.totalorder %v1894, %v2833
      %vm2905 = vcmp.eq.s32.totalorder %v1893, %v2836
      %vm2906 = vcmp.eq.s32.totalorder %v1894, %v2836
      %vm2907 = vcmp.eq.s32.totalorder %v1893, %v2839
      %vm2908 = vcmp.eq.s32.totalorder %v1894, %v2839
      %vm2909 = vcmp.eq.s32.totalorder %v1893, %v2842
      %vm2910 = vcmp.eq.s32.totalorder %v1894, %v2842
      %vm2911 = vcmp.eq.s32.totalorder %v1893, %v2845
      %vm2912 = vcmp.eq.s32.totalorder %v1894, %v2845
      %vm2913 = vcmp.eq.s32.totalorder %v1893, %v2848
      %vm2914 = vcmp.eq.s32.totalorder %v1894, %v2848
      %vm2915 = vcmp.eq.s32.totalorder %v1893, %v2851
      %vm2916 = vcmp.eq.s32.totalorder %v1894, %v2851
      %vm2917 = vcmp.eq.s32.totalorder %v1893, %v2854
      %vm2918 = vcmp.eq.s32.totalorder %v1894, %v2854
      %2919 = vset.pattern.permute.xlu0 2
      %2920 = vperm.xlu0 %2919, %v1860
      %v2921 = vpop.permute.xlu0 %2920
      %2923 = vset.pattern.permute.xlu0 2
      %2924 = vperm.xlu0 %2923, %v1861
      %v2925 = vpop.permute.xlu0 %2924
      %2927 = vset.pattern.permute.xlu0 2
      %2928 = vperm.xlu0 %2927, %v1862
      %v2929 = vpop.permute.xlu0 %2928
      %2931 = vset.pattern.permute.xlu0 2
      %2932 = vperm.xlu0 %2931, %v1863
      %v2933 = vpop.permute.xlu0 %2932
      %2935 = vset.pattern.permute.xlu0 2
      %2936 = vperm.xlu0 %2935, %v1864
      %v2937 = vpop.permute.xlu0 %2936
      %2939 = vset.pattern.permute.xlu0 2
      %2940 = vperm.xlu0 %2939, %v1865
      %v2941 = vpop.permute.xlu0 %2940
      %2943 = vset.pattern.permute.xlu0 2
      %2944 = vperm.xlu0 %2943, %v1866
      %v2945 = vpop.permute.xlu0 %2944
      %2947 = vset.pattern.permute.xlu0 2
      %2948 = vperm.xlu0 %2947, %v1867
      %v2949 = vpop.permute.xlu0 %2948
      %2951 = vset.pattern.permute.xlu0 2
      %2952 = vperm.xlu0 %2951, %v1868
      %v2953 = vpop.permute.xlu0 %2952
      %2955 = vset.pattern.permute.xlu0 2
      %2956 = vperm.xlu0 %2955, %v1869
      %v2957 = vpop.permute.xlu0 %2956
      %2959 = vset.pattern.permute.xlu0 2
      %2960 = vperm.xlu0 %2959, %v1870
      %v2961 = vpop.permute.xlu0 %2960
      %2963 = vset.pattern.permute.xlu0 2
      %2964 = vperm.xlu0 %2963, %v1871
      %v2965 = vpop.permute.xlu0 %2964
      %2967 = vset.pattern.permute.xlu0 2
      %2968 = vperm.xlu0 %2967, %v1872
      %v2969 = vpop.permute.xlu0 %2968
      %2971 = vset.pattern.permute.xlu0 2
      %2972 = vperm.xlu0 %2971, %v1873
      %v2973 = vpop.permute.xlu0 %2972
      %2975 = vset.pattern.permute.xlu0 2
      %2976 = vperm.xlu0 %2975, %v1874
      %v2977 = vpop.permute.xlu0 %2976
      %2979 = vset.pattern.permute.xlu0 2
      %2980 = vperm.xlu0 %2979, %v1875
      %v2981 = vpop.permute.xlu0 %2980
      %2983 = vset.pattern.permute.xlu0 2
      %2984 = vperm.xlu0 %2983, %v1876
      %v2985 = vpop.permute.xlu0 %2984
      %2987 = vset.pattern.permute.xlu0 2
      %2988 = vperm.xlu0 %2987, %v1877
      %v2989 = vpop.permute.xlu0 %2988
      %2991 = vset.pattern.permute.xlu0 2
      %2992 = vperm.xlu0 %2991, %v1878
      %v2993 = vpop.permute.xlu0 %2992
      %2995 = vset.pattern.permute.xlu0 2
      %2996 = vperm.xlu0 %2995, %v1879
      %v2997 = vpop.permute.xlu0 %2996
      %2999 = vset.pattern.permute.xlu0 2
      %3000 = vperm.xlu0 %2999, %v1880
      %v3001 = vpop.permute.xlu0 %3000
      %3003 = vset.pattern.permute.xlu0 2
      %3004 = vperm.xlu0 %3003, %v1881
      %v3005 = vpop.permute.xlu0 %3004
      %3007 = vset.pattern.permute.xlu0 2
      %3008 = vperm.xlu0 %3007, %v1882
      %v3009 = vpop.permute.xlu0 %3008
      %3011 = vset.pattern.permute.xlu0 2
      %3012 = vperm.xlu0 %3011, %v1883
      %v3013 = vpop.permute.xlu0 %3012
      %3015 = vset.pattern.permute.xlu0 2
      %3016 = vperm.xlu0 %3015, %v1884
      %v3017 = vpop.permute.xlu0 %3016
      %3019 = vset.pattern.permute.xlu0 2
      %3020 = vperm.xlu0 %3019, %v1885
      %v3021 = vpop.permute.xlu0 %3020
      %3023 = vset.pattern.permute.xlu0 2
      %3024 = vperm.xlu0 %3023, %v1886
      %v3025 = vpop.permute.xlu0 %3024
      %3027 = vset.pattern.permute.xlu0 2
      %3028 = vperm.xlu0 %3027, %v1887
      %v3029 = vpop.permute.xlu0 %3028
      %3031 = vset.pattern.permute.xlu0 2
      %3032 = vperm.xlu0 %3031, %v1888
      %v3033 = vpop.permute.xlu0 %3032
      %3035 = vset.pattern.permute.xlu0 2
      %3036 = vperm.xlu0 %3035, %v1889
      %v3037 = vpop.permute.xlu0 %3036
      %3039 = vset.pattern.permute.xlu0 2
      %3040 = vperm.xlu0 %3039, %v1890
      %v3041 = vpop.permute.xlu0 %3040
      %3043 = vset.pattern.permute.xlu0 2
      %3044 = vperm.xlu0 %3043, %v1891
      %v3045 = vpop.permute.xlu0 %3044
      %v3047 = vsel %vm2855, %v2921, 0.0
      %v3048 = vsel %vm2856, %v2921, 0.0
      %v3049 = vsel %vm2857, %v2925, 0.0
      %v3050 = vsel %vm2858, %v2925, 0.0
      %v3051 = vsel %vm2859, %v2929, 0.0
      %v3052 = vsel %vm2860, %v2929, 0.0
      %v3053 = vsel %vm2861, %v2933, 0.0
      %v3054 = vsel %vm2862, %v2933, 0.0
      %v3055 = vsel %vm2863, %v2937, 0.0
      %v3056 = vsel %vm2864, %v2937, 0.0
      %v3057 = vsel %vm2865, %v2941, 0.0
      %v3058 = vsel %vm2866, %v2941, 0.0
      %v3059 = vsel %vm2867, %v2945, 0.0
      %v3060 = vsel %vm2868, %v2945, 0.0
      %v3061 = vsel %vm2869, %v2949, 0.0
      %v3062 = vsel %vm2870, %v2949, 0.0
      %v3063 = vsel %vm2871, %v2953, 0.0
      %v3064 = vsel %vm2872, %v2953, 0.0
      %v3065 = vsel %vm2873, %v2957, 0.0
      %v3066 = vsel %vm2874, %v2957, 0.0
      %v3067 = vsel %vm2875, %v2961, 0.0
      %v3068 = vsel %vm2876, %v2961, 0.0
      %v3069 = vsel %vm2877, %v2965, 0.0
      %v3070 = vsel %vm2878, %v2965, 0.0
      %v3071 = vsel %vm2879, %v2969, 0.0
      %v3072 = vsel %vm2880, %v2969, 0.0
      %v3073 = vsel %vm2881, %v2973, 0.0
      %v3074 = vsel %vm2882, %v2973, 0.0
      %v3075 = vsel %vm2883, %v2977, 0.0
      %v3076 = vsel %vm2884, %v2977, 0.0
      %v3077 = vsel %vm2885, %v2981, 0.0
      %v3078 = vsel %vm2886, %v2981, 0.0
      %v3079 = vsel %vm2887, %v2985, 0.0
      %v3080 = vsel %vm2888, %v2985, 0.0
      %v3081 = vsel %vm2889, %v2989, 0.0
      %v3082 = vsel %vm2890, %v2989, 0.0
      %v3083 = vsel %vm2891, %v2993, 0.0
      %v3084 = vsel %vm2892, %v2993, 0.0
      %v3085 = vsel %vm2893, %v2997, 0.0
      %v3086 = vsel %vm2894, %v2997, 0.0
      %v3087 = vsel %vm2895, %v3001, 0.0
      %v3088 = vsel %vm2896, %v3001, 0.0
      %v3089 = vsel %vm2897, %v3005, 0.0
      %v3090 = vsel %vm2898, %v3005, 0.0
      %v3091 = vsel %vm2899, %v3009, 0.0
      %v3092 = vsel %vm2900, %v3009, 0.0
      %v3093 = vsel %vm2901, %v3013, 0.0
      %v3094 = vsel %vm2902, %v3013, 0.0
      %v3095 = vsel %vm2903, %v3017, 0.0
      %v3096 = vsel %vm2904, %v3017, 0.0
      %v3097 = vsel %vm2905, %v3021, 0.0
      %v3098 = vsel %vm2906, %v3021, 0.0
      %v3099 = vsel %vm2907, %v3025, 0.0
      %v3100 = vsel %vm2908, %v3025, 0.0
      %v3101 = vsel %vm2909, %v3029, 0.0
      %v3102 = vsel %vm2910, %v3029, 0.0
      %v3103 = vsel %vm2911, %v3033, 0.0
      %v3104 = vsel %vm2912, %v3033, 0.0
      %v3105 = vsel %vm2913, %v3037, 0.0
      %v3106 = vsel %vm2914, %v3037, 0.0
      %v3107 = vsel %vm2915, %v3041, 0.0
      %v3108 = vsel %vm2916, %v3041, 0.0
      %v3109 = vsel %vm2917, %v3045, 0.0
      %v3110 = vsel %vm2918, %v3045, 0.0
      %v3111 = vadd.f32 %v2695, %v3047
      %v3112 = vadd.f32 %v2696, %v3048
      %v3113 = vadd.f32 %v2697, %v3049
      %v3114 = vadd.f32 %v2698, %v3050
      %v3115 = vadd.f32 %v2699, %v3051
      %v3116 = vadd.f32 %v2700, %v3052
      %v3117 = vadd.f32 %v2701, %v3053
      %v3118 = vadd.f32 %v2702, %v3054
      %v3119 = vadd.f32 %v2703, %v3055
      %v3120 = vadd.f32 %v2704, %v3056
      %v3121 = vadd.f32 %v2705, %v3057
      %v3122 = vadd.f32 %v2706, %v3058
      %v3123 = vadd.f32 %v2707, %v3059
      %v3124 = vadd.f32 %v2708, %v3060
      %v3125 = vadd.f32 %v2709, %v3061
      %v3126 = vadd.f32 %v2710, %v3062
      %v3127 = vadd.f32 %v2711, %v3063
      %v3128 = vadd.f32 %v2712, %v3064
      %v3129 = vadd.f32 %v2713, %v3065
      %v3130 = vadd.f32 %v2714, %v3066
      %v3131 = vadd.f32 %v2715, %v3067
      %v3132 = vadd.f32 %v2716, %v3068
      %v3133 = vadd.f32 %v2717, %v3069
      %v3134 = vadd.f32 %v2718, %v3070
      %v3135 = vadd.f32 %v2719, %v3071
      %v3136 = vadd.f32 %v2720, %v3072
      %v3137 = vadd.f32 %v2721, %v3073
      %v3138 = vadd.f32 %v2722, %v3074
      %v3139 = vadd.f32 %v2723, %v3075
      %v3140 = vadd.f32 %v2724, %v3076
      %v3141 = vadd.f32 %v2725, %v3077
      %v3142 = vadd.f32 %v2726, %v3078
      %v3143 = vadd.f32 %v2727, %v3079
      %v3144 = vadd.f32 %v2728, %v3080
      %v3145 = vadd.f32 %v2729, %v3081
      %v3146 = vadd.f32 %v2730, %v3082
      %v3147 = vadd.f32 %v2731, %v3083
      %v3148 = vadd.f32 %v2732, %v3084
      %v3149 = vadd.f32 %v2733, %v3085
      %v3150 = vadd.f32 %v2734, %v3086
      %v3151 = vadd.f32 %v2735, %v3087
      %v3152 = vadd.f32 %v2736, %v3088
      %v3153 = vadd.f32 %v2737, %v3089
      %v3154 = vadd.f32 %v2738, %v3090
      %v3155 = vadd.f32 %v2739, %v3091
      %v3156 = vadd.f32 %v2740, %v3092
      %v3157 = vadd.f32 %v2741, %v3093
      %v3158 = vadd.f32 %v2742, %v3094
      %v3159 = vadd.f32 %v2743, %v3095
      %v3160 = vadd.f32 %v2744, %v3096
      %v3161 = vadd.f32 %v2745, %v3097
      %v3162 = vadd.f32 %v2746, %v3098
      %v3163 = vadd.f32 %v2747, %v3099
      %v3164 = vadd.f32 %v2748, %v3100
      %v3165 = vadd.f32 %v2749, %v3101
      %v3166 = vadd.f32 %v2750, %v3102
      %v3167 = vadd.f32 %v2751, %v3103
      %v3168 = vadd.f32 %v2752, %v3104
      %v3169 = vadd.f32 %v2753, %v3105
      %v3170 = vadd.f32 %v2754, %v3106
      %v3171 = vadd.f32 %v2755, %v3107
      %v3172 = vadd.f32 %v2756, %v3108
      %v3173 = vadd.f32 %v2757, %v3109
      %v3174 = vadd.f32 %v2758, %v3110
      %v3175 = vpack.c.bf16 %v3113, %v3111
      %v3176 = vpack.c.bf16 %v3114, %v3112
      %v3177 = vpack.c.bf16 %v3117, %v3115
      %v3178 = vpack.c.bf16 %v3118, %v3116
      %v3179 = vpack.c.bf16 %v3121, %v3119
      %v3180 = vpack.c.bf16 %v3122, %v3120
      %v3181 = vpack.c.bf16 %v3125, %v3123
      %v3182 = vpack.c.bf16 %v3126, %v3124
      %v3183 = vpack.c.bf16 %v3129, %v3127
      %v3184 = vpack.c.bf16 %v3130, %v3128
      %v3185 = vpack.c.bf16 %v3133, %v3131
      %v3186 = vpack.c.bf16 %v3134, %v3132
      %v3187 = vpack.c.bf16 %v3137, %v3135
      %v3188 = vpack.c.bf16 %v3138, %v3136
      %v3189 = vpack.c.bf16 %v3141, %v3139
      %v3190 = vpack.c.bf16 %v3142, %v3140
      %v3191 = vpack.c.bf16 %v3145, %v3143
      %v3192 = vpack.c.bf16 %v3146, %v3144
      %v3193 = vpack.c.bf16 %v3149, %v3147
      %v3194 = vpack.c.bf16 %v3150, %v3148
      %v3195 = vpack.c.bf16 %v3153, %v3151
      %v3196 = vpack.c.bf16 %v3154, %v3152
      %v3197 = vpack.c.bf16 %v3157, %v3155
      %v3198 = vpack.c.bf16 %v3158, %v3156
      %v3199 = vpack.c.bf16 %v3161, %v3159
      %v3200 = vpack.c.bf16 %v3162, %v3160
      %v3201 = vpack.c.bf16 %v3165, %v3163
      %v3202 = vpack.c.bf16 %v3166, %v3164
      %v3203 = vpack.c.bf16 %v3169, %v3167
      %v3204 = vpack.c.bf16 %v3170, %v3168
      %v3205 = vpack.c.bf16 %v3173, %v3171
      %v3206 = vpack.c.bf16 %v3174, %v3172
      %3207 = vmatpush.bf16.msra.mxu0 %v1819
      %3208 = vmatpush.bf16.msra.mxu0 %v1818
      %3209 = vmatpush.bf16.msra.mxu0 %v1817
      %3210 = vmatpush.bf16.msra.mxu0 %v1816
      %3211 = vmatpush.bf16.msra.mxu0 %v1815
      %3212 = vmatpush.bf16.msra.mxu0 %v1814
      %3213 = vmatpush.bf16.msra.mxu0 %v1813
      %3214 = vmatpush.bf16.msra.mxu0 %v1812
      %3215 = vmatmul.bf16.gmra.mxu0 %v3175
      %v3216 = vpop.f32.mrf.mxu0
      %v3217 = vadd.f32 0.0, %v3216
      %v3218 = vpop.f32.mrf.mxu0
      %v3219 = vadd.f32 0.0, %v3218
      %3220 = vmatmul.bf16.gmra.mxu0 %v3177
      %v3221 = vpop.f32.mrf.mxu0
      %v3222 = vadd.f32 0.0, %v3221
      %v3223 = vpop.f32.mrf.mxu0
      %v3224 = vadd.f32 0.0, %v3223
      %3225 = vmatmul.bf16.gmra.mxu0 %v3179
      %v3226 = vpop.f32.mrf.mxu0
      %v3227 = vadd.f32 0.0, %v3226
      %v3228 = vpop.f32.mrf.mxu0
      %v3229 = vadd.f32 0.0, %v3228
      %3230 = vmatmul.bf16.gmra.mxu0 %v3181
      %v3231 = vpop.f32.mrf.mxu0
      %v3232 = vadd.f32 0.0, %v3231
      %v3233 = vpop.f32.mrf.mxu0
      %v3234 = vadd.f32 0.0, %v3233
      %3235 = vmatmul.bf16.gmra.mxu0 %v3183
      %v3236 = vpop.f32.mrf.mxu0
      %v3237 = vadd.f32 0.0, %v3236
      %v3238 = vpop.f32.mrf.mxu0
      %v3239 = vadd.f32 0.0, %v3238
      %3240 = vmatmul.bf16.gmra.mxu0 %v3185
      %v3241 = vpop.f32.mrf.mxu0
      %v3242 = vadd.f32 0.0, %v3241
      %v3243 = vpop.f32.mrf.mxu0
      %v3244 = vadd.f32 0.0, %v3243
      %3245 = vmatmul.bf16.gmra.mxu0 %v3187
      %v3246 = vpop.f32.mrf.mxu0
      %v3247 = vadd.f32 0.0, %v3246
      %v3248 = vpop.f32.mrf.mxu0
      %v3249 = vadd.f32 0.0, %v3248
      %3250 = vmatmul.bf16.gmra.mxu0 %v3189
      %v3251 = vpop.f32.mrf.mxu0
      %v3252 = vadd.f32 0.0, %v3251
      %v3253 = vpop.f32.mrf.mxu0
      %v3254 = vadd.f32 0.0, %v3253
      %3255 = vmatmul.bf16.gmra.mxu0 %v3191
      %v3256 = vpop.f32.mrf.mxu0
      %v3257 = vadd.f32 0.0, %v3256
      %v3258 = vpop.f32.mrf.mxu0
      %v3259 = vadd.f32 0.0, %v3258
      %3260 = vmatmul.bf16.gmra.mxu0 %v3193
      %v3261 = vpop.f32.mrf.mxu0
      %v3262 = vadd.f32 0.0, %v3261
      %v3263 = vpop.f32.mrf.mxu0
      %v3264 = vadd.f32 0.0, %v3263
      %3265 = vmatmul.bf16.gmra.mxu0 %v3195
      %v3266 = vpop.f32.mrf.mxu0
      %v3267 = vadd.f32 0.0, %v3266
      %v3268 = vpop.f32.mrf.mxu0
      %v3269 = vadd.f32 0.0, %v3268
      %3270 = vmatmul.bf16.gmra.mxu0 %v3197
      %v3271 = vpop.f32.mrf.mxu0
      %v3272 = vadd.f32 0.0, %v3271
      %v3273 = vpop.f32.mrf.mxu0
      %v3274 = vadd.f32 0.0, %v3273
      %3275 = vmatmul.bf16.gmra.mxu0 %v3199
      %v3276 = vpop.f32.mrf.mxu0
      %v3277 = vadd.f32 0.0, %v3276
      %v3278 = vpop.f32.mrf.mxu0
      %v3279 = vadd.f32 0.0, %v3278
      %3280 = vmatmul.bf16.gmra.mxu0 %v3201
      %v3281 = vpop.f32.mrf.mxu0
      %v3282 = vadd.f32 0.0, %v3281
      %v3283 = vpop.f32.mrf.mxu0
      %v3284 = vadd.f32 0.0, %v3283
      %3285 = vmatmul.bf16.gmra.mxu0 %v3203
      %v3286 = vpop.f32.mrf.mxu0
      %v3287 = vadd.f32 0.0, %v3286
      %v3288 = vpop.f32.mrf.mxu0
      %v3289 = vadd.f32 0.0, %v3288
      %3290 = vmatmul.bf16.gmra.mxu0 %v3205
      %v3291 = vpop.f32.mrf.mxu0
      %v3292 = vadd.f32 0.0, %v3291
      %v3293 = vpop.f32.mrf.mxu0
      %v3294 = vadd.f32 0.0, %v3293
      %3295 = vdwg.mxu0
      %3296 = vmatpush.bf16.msra.mxu0 %v1827
      %3297 = vmatpush.bf16.msra.mxu0 %v1826
      %3298 = vmatpush.bf16.msra.mxu0 %v1825
      %3299 = vmatpush.bf16.msra.mxu0 %v1824
      %3300 = vmatpush.bf16.msra.mxu0 %v1823
      %3301 = vmatpush.bf16.msra.mxu0 %v1822
      %3302 = vmatpush.bf16.msra.mxu0 %v1821
      %3303 = vmatpush.bf16.msra.mxu0 %v1820
      %3304 = vmatmul.bf16.gmra.mxu0 %v3176
      %v3305 = vpop.f32.mrf.mxu0
      %v3306 = vadd.f32 %v3217, %v3305
      %v3307 = vpop.f32.mrf.mxu0
      %v3308 = vadd.f32 %v3219, %v3307
      %3309 = vmatmul.bf16.gmra.mxu0 %v3178
      %v3310 = vpop.f32.mrf.mxu0
      %v3311 = vadd.f32 %v3222, %v3310
      %v3312 = vpop.f32.mrf.mxu0
      %v3313 = vadd.f32 %v3224, %v3312
      %3314 = vmatmul.bf16.gmra.mxu0 %v3180
      %v3315 = vpop.f32.mrf.mxu0
      %v3316 = vadd.f32 %v3227, %v3315
      %v3317 = vpop.f32.mrf.mxu0
      %v3318 = vadd.f32 %v3229, %v3317
      %3319 = vmatmul.bf16.gmra.mxu0 %v3182
      %v3320 = vpop.f32.mrf.mxu0
      %v3321 = vadd.f32 %v3232, %v3320
      %v3322 = vpop.f32.mrf.mxu0
      %v3323 = vadd.f32 %v3234, %v3322
      %3324 = vmatmul.bf16.gmra.mxu0 %v3184
      %v3325 = vpop.f32.mrf.mxu0
      %v3326 = vadd.f32 %v3237, %v3325
      %v3327 = vpop.f32.mrf.mxu0
      %v3328 = vadd.f32 %v3239, %v3327
      %3329 = vmatmul.bf16.gmra.mxu0 %v3186
      %v3330 = vpop.f32.mrf.mxu0
      %v3331 = vadd.f32 %v3242, %v3330
      %v3332 = vpop.f32.mrf.mxu0
      %v3333 = vadd.f32 %v3244, %v3332
      %3334 = vmatmul.bf16.gmra.mxu0 %v3188
      %v3335 = vpop.f32.mrf.mxu0
      %v3336 = vadd.f32 %v3247, %v3335
      %v3337 = vpop.f32.mrf.mxu0
      %v3338 = vadd.f32 %v3249, %v3337
      %3339 = vmatmul.bf16.gmra.mxu0 %v3190
      %v3340 = vpop.f32.mrf.mxu0
      %v3341 = vadd.f32 %v3252, %v3340
      %v3342 = vpop.f32.mrf.mxu0
      %v3343 = vadd.f32 %v3254, %v3342
      %3344 = vmatmul.bf16.gmra.mxu0 %v3192
      %v3345 = vpop.f32.mrf.mxu0
      %v3346 = vadd.f32 %v3257, %v3345
      %v3347 = vpop.f32.mrf.mxu0
      %v3348 = vadd.f32 %v3259, %v3347
      %3349 = vmatmul.bf16.gmra.mxu0 %v3194
      %v3350 = vpop.f32.mrf.mxu0
      %v3351 = vadd.f32 %v3262, %v3350
      %v3352 = vpop.f32.mrf.mxu0
      %v3353 = vadd.f32 %v3264, %v3352
      %3354 = vmatmul.bf16.gmra.mxu0 %v3196
      %v3355 = vpop.f32.mrf.mxu0
      %v3356 = vadd.f32 %v3267, %v3355
      %v3357 = vpop.f32.mrf.mxu0
      %v3358 = vadd.f32 %v3269, %v3357
      %3359 = vmatmul.bf16.gmra.mxu0 %v3198
      %v3360 = vpop.f32.mrf.mxu0
      %v3361 = vadd.f32 %v3272, %v3360
      %v3362 = vpop.f32.mrf.mxu0
      %v3363 = vadd.f32 %v3274, %v3362
      %3364 = vmatmul.bf16.gmra.mxu0 %v3200
      %v3365 = vpop.f32.mrf.mxu0
      %v3366 = vadd.f32 %v3277, %v3365
      %v3367 = vpop.f32.mrf.mxu0
      %v3368 = vadd.f32 %v3279, %v3367
      %3369 = vmatmul.bf16.gmra.mxu0 %v3202
      %v3370 = vpop.f32.mrf.mxu0
      %v3371 = vadd.f32 %v3282, %v3370
      %v3372 = vpop.f32.mrf.mxu0
      %v3373 = vadd.f32 %v3284, %v3372
      %3374 = vmatmul.bf16.gmra.mxu0 %v3204
      %v3375 = vpop.f32.mrf.mxu0
      %v3376 = vadd.f32 %v3287, %v3375
      %v3377 = vpop.f32.mrf.mxu0
      %v3378 = vadd.f32 %v3289, %v3377
      %3379 = vmatmul.bf16.gmra.mxu0 %v3206
      %v3380 = vpop.f32.mrf.mxu0
      %v3381 = vadd.f32 %v3292, %v3380
      %v3382 = vpop.f32.mrf.mxu0
      %v3383 = vadd.f32 %v3294, %v3382
      %3384 = vdwg.mxu0
      %v3385 = vadd.f32 %v1780, %v3306
      %v3386 = vadd.f32 %v1781, %v3308
      %v3387 = vadd.f32 %v1782, %v3311
      %v3388 = vadd.f32 %v1783, %v3313
      %v3389 = vadd.f32 %v1784, %v3316
      %v3390 = vadd.f32 %v1785, %v3318
      %v3391 = vadd.f32 %v1786, %v3321
      %v3392 = vadd.f32 %v1787, %v3323
      %v3393 = vadd.f32 %v1788, %v3326
      %v3394 = vadd.f32 %v1789, %v3328
      %v3395 = vadd.f32 %v1790, %v3331
      %v3396 = vadd.f32 %v1791, %v3333
      %v3397 = vadd.f32 %v1792, %v3336
      %v3398 = vadd.f32 %v1793, %v3338
      %v3399 = vadd.f32 %v1794, %v3341
      %v3400 = vadd.f32 %v1795, %v3343
      %v3401 = vadd.f32 %v1796, %v3346
      %v3402 = vadd.f32 %v1797, %v3348
      %v3403 = vadd.f32 %v1798, %v3351
      %v3404 = vadd.f32 %v1799, %v3353
      %v3405 = vadd.f32 %v1800, %v3356
      %v3406 = vadd.f32 %v1801, %v3358
      %v3407 = vadd.f32 %v1802, %v3361
      %v3408 = vadd.f32 %v1803, %v3363
      %v3409 = vadd.f32 %v1804, %v3366
      %v3410 = vadd.f32 %v1805, %v3368
      %v3411 = vadd.f32 %v1806, %v3371
      %v3412 = vadd.f32 %v1807, %v3373
      %v3413 = vadd.f32 %v1808, %v3376
      %v3414 = vadd.f32 %v1809, %v3378
      %v3415 = vadd.f32 %v1810, %v3381
      %v3416 = vadd.f32 %v1811, %v3383
      %3417 = vst [vmem:[%s691] sm:$0xff] %v3385
      %3418 = vst [vmem:[%s691 + $0x8] sm:$0xff] %v3386
      %3419 = vst [vmem:[%s691 + $0x10] sm:$0xff] %v3387
      %3420 = vst [vmem:[%s691 + $0x18] sm:$0xff] %v3388
      %3421 = vst [vmem:[%s691 + $0x20] sm:$0xff] %v3389
      %3422 = vst [vmem:[%s691 + $0x28] sm:$0xff] %v3390
      %3423 = vst [vmem:[%s691 + $0x30] sm:$0xff] %v3391
      %3424 = vst [vmem:[%s691 + $0x38] sm:$0xff] %v3392
      %3425 = vst [vmem:[%s691 + $0x40] sm:$0xff] %v3393
      %3426 = vst [vmem:[%s691 + $0x48] sm:$0xff] %v3394
      %3427 = vst [vmem:[%s691 + $0x50] sm:$0xff] %v3395
      %3428 = vst [vmem:[%s691 + $0x58] sm:$0xff] %v3396
      %3429 = vst [vmem:[%s691 + $0x60] sm:$0xff] %v3397
      %3430 = vst [vmem:[%s691 + $0x68] sm:$0xff] %v3398
      %3431 = vst [vmem:[%s691 + $0x70] sm:$0xff] %v3399
      %3432 = vst [vmem:[%s691 + $0x78] sm:$0xff] %v3400
      %3433 = vst [vmem:[%s691 + $0x80] sm:$0xff] %v3401
      %3434 = vst [vmem:[%s691 + $0x88] sm:$0xff] %v3402
      %3435 = vst [vmem:[%s691 + $0x90] sm:$0xff] %v3403
      %3436 = vst [vmem:[%s691 + $0x98] sm:$0xff] %v3404
      %3437 = vst [vmem:[%s691 + $0xa0] sm:$0xff] %v3405
      %3438 = vst [vmem:[%s691 + $0xa8] sm:$0xff] %v3406
      %3439 = vst [vmem:[%s691 + $0xb0] sm:$0xff] %v3407
      %3440 = vst [vmem:[%s691 + $0xb8] sm:$0xff] %v3408
      %3441 = vst [vmem:[%s691 + $0xc0] sm:$0xff] %v3409
      %3442 = vst [vmem:[%s691 + $0xc8] sm:$0xff] %v3410
      %3443 = vst [vmem:[%s691 + $0xd0] sm:$0xff] %v3411
      %3444 = vst [vmem:[%s691 + $0xd8] sm:$0xff] %v3412
      %3445 = vst [vmem:[%s691 + $0xe0] sm:$0xff] %v3413
      %3446 = vst [vmem:[%s691 + $0xe8] sm:$0xff] %v3414
      %3447 = vst [vmem:[%s691 + $0xf0] sm:$0xff] %v3415
      %3448 = vst [vmem:[%s691 + $0xf8] sm:$0xff] %v3416
      %v3449 = vpack.c.bf16 %v3386, %v3385
      %v3450 = vpack.c.bf16 %v3388, %v3387
      %v3451 = vpack.c.bf16 %v3390, %v3389
      %v3452 = vpack.c.bf16 %v3392, %v3391
      %v3453 = vpack.c.bf16 %v3394, %v3393
      %v3454 = vpack.c.bf16 %v3396, %v3395
      %v3455 = vpack.c.bf16 %v3398, %v3397
      %v3456 = vpack.c.bf16 %v3400, %v3399
      %v3457 = vpack.c.bf16 %v3402, %v3401
      %v3458 = vpack.c.bf16 %v3404, %v3403
      %v3459 = vpack.c.bf16 %v3406, %v3405
      %v3460 = vpack.c.bf16 %v3408, %v3407
      %v3461 = vpack.c.bf16 %v3410, %v3409
      %v3462 = vpack.c.bf16 %v3412, %v3411
      %v3463 = vpack.c.bf16 %v3414, %v3413
      %v3464 = vpack.c.bf16 %v3416, %v3415
      %v3465 = vld [vmem:[%s674] sm:$0xff]
      %v3466 = vld [vmem:[%s674 + $0x8] sm:$0xff]
      %v3467 = vld [vmem:[%s674 + $0x10] sm:$0xff]
      %v3468 = vld [vmem:[%s674 + $0x18] sm:$0xff]
      %v3469 = vld [vmem:[%s674 + $0x20] sm:$0xff]
      %v3470 = vld [vmem:[%s674 + $0x28] sm:$0xff]
      %v3471 = vld [vmem:[%s674 + $0x30] sm:$0xff]
      %v3472 = vld [vmem:[%s674 + $0x38] sm:$0xff]
      %v3473 = vld [vmem:[%s674 + $0x40] sm:$0xff]
      %v3474 = vld [vmem:[%s674 + $0x48] sm:$0xff]
      %v3475 = vld [vmem:[%s674 + $0x50] sm:$0xff]
      %v3476 = vld [vmem:[%s674 + $0x58] sm:$0xff]
      %v3477 = vld [vmem:[%s674 + $0x60] sm:$0xff]
      %v3478 = vld [vmem:[%s674 + $0x68] sm:$0xff]
      %v3479 = vld [vmem:[%s674 + $0x70] sm:$0xff]
      %v3480 = vld [vmem:[%s674 + $0x78] sm:$0xff]
      %v3481 = vld [vmem:[%s678] sm:$0x3]
      %v3483 = vperm.slane %v3481, 0
      %v3484 = vperm.slane %v3481, 1
      %v3503 = vunpack.c.l.b16 %v3465
      %v3504 = vunpack.c.h.b16 %v3465
      %v3505 = vunpack.c.l.b16 %v3466
      %v3506 = vunpack.c.h.b16 %v3466
      %v3507 = vunpack.c.l.b16 %v3467
      %v3508 = vunpack.c.h.b16 %v3467
      %v3509 = vunpack.c.l.b16 %v3468
      %v3510 = vunpack.c.h.b16 %v3468
      %v3511 = vunpack.c.l.b16 %v3469
      %v3512 = vunpack.c.h.b16 %v3469
      %v3513 = vunpack.c.l.b16 %v3470
      %v3514 = vunpack.c.h.b16 %v3470
      %v3515 = vunpack.c.l.b16 %v3471
      %v3516 = vunpack.c.h.b16 %v3471
      %v3517 = vunpack.c.l.b16 %v3472
      %v3518 = vunpack.c.h.b16 %v3472
      %v3519 = vunpack.c.l.b16 %v3473
      %v3520 = vunpack.c.h.b16 %v3473
      %v3521 = vunpack.c.l.b16 %v3474
      %v3522 = vunpack.c.h.b16 %v3474
      %v3523 = vunpack.c.l.b16 %v3475
      %v3524 = vunpack.c.h.b16 %v3475
      %v3525 = vunpack.c.l.b16 %v3476
      %v3526 = vunpack.c.h.b16 %v3476
      %v3527 = vunpack.c.l.b16 %v3477
      %v3528 = vunpack.c.h.b16 %v3477
      %v3529 = vunpack.c.l.b16 %v3478
      %v3530 = vunpack.c.h.b16 %v3478
      %v3531 = vunpack.c.l.b16 %v3479
      %v3532 = vunpack.c.h.b16 %v3479
      %v3533 = vunpack.c.l.b16 %v3480
      %v3534 = vunpack.c.h.b16 %v3480
      %v3535 = vpack.c.b16 %v3505, %v3503
      %v3536 = vpack.c.b16 %v3506, %v3504
      %v3537 = vpack.c.b16 %v3509, %v3507
      %v3538 = vpack.c.b16 %v3510, %v3508
      %v3539 = vpack.c.b16 %v3513, %v3511
      %v3540 = vpack.c.b16 %v3514, %v3512
      %v3541 = vpack.c.b16 %v3517, %v3515
      %v3542 = vpack.c.b16 %v3518, %v3516
      %v3543 = vpack.c.b16 %v3521, %v3519
      %v3544 = vpack.c.b16 %v3522, %v3520
      %v3545 = vpack.c.b16 %v3525, %v3523
      %v3546 = vpack.c.b16 %v3526, %v3524
      %v3547 = vpack.c.b16 %v3529, %v3527
      %v3548 = vpack.c.b16 %v3530, %v3528
      %v3549 = vpack.c.b16 %v3533, %v3531
      %v3550 = vpack.c.b16 %v3534, %v3532
      %3567 = vmatpush.bf16.msra.mxu0 %v3549
      %3568 = vmatpush.bf16.msra.mxu0 %v3547
      %3569 = vmatpush.bf16.msra.mxu0 %v3545
      %3570 = vmatpush.bf16.msra.mxu0 %v3543
      %3571 = vmatpush.bf16.msra.mxu0 %v3541
      %3572 = vmatpush.bf16.msra.mxu0 %v3539
      %3573 = vmatpush.bf16.msra.mxu0 %v3537
      %3574 = vmatpush.bf16.msra.mxu0 %v3535
      %3575 = vmatmul.bf16.gmra.mxu0 %v3449
      %v3576 = vpop.f32.mrf.mxu0
      %v3577 = vadd.f32 %v3483, %v3576
      %v3578 = vpop.f32.mrf.mxu0
      %v3579 = vadd.f32 %v3483, %v3578
      %3580 = vmatmul.bf16.gmra.mxu0 %v3450
      %v3581 = vpop.f32.mrf.mxu0
      %v3582 = vadd.f32 %v3483, %v3581
      %v3583 = vpop.f32.mrf.mxu0
      %v3584 = vadd.f32 %v3483, %v3583
      %3585 = vmatmul.bf16.gmra.mxu0 %v3451
      %v3586 = vpop.f32.mrf.mxu0
      %v3587 = vadd.f32 %v3483, %v3586
      %v3588 = vpop.f32.mrf.mxu0
      %v3589 = vadd.f32 %v3483, %v3588
      %3590 = vmatmul.bf16.gmra.mxu0 %v3452
      %v3591 = vpop.f32.mrf.mxu0
      %v3592 = vadd.f32 %v3483, %v3591
      %v3593 = vpop.f32.mrf.mxu0
      %v3594 = vadd.f32 %v3483, %v3593
      %3595 = vmatmul.bf16.gmra.mxu0 %v3453
      %v3596 = vpop.f32.mrf.mxu0
      %v3597 = vadd.f32 %v3483, %v3596
      %v3598 = vpop.f32.mrf.mxu0
      %v3599 = vadd.f32 %v3483, %v3598
      %3600 = vmatmul.bf16.gmra.mxu0 %v3454
      %v3601 = vpop.f32.mrf.mxu0
      %v3602 = vadd.f32 %v3483, %v3601
      %v3603 = vpop.f32.mrf.mxu0
      %v3604 = vadd.f32 %v3483, %v3603
      %3605 = vmatmul.bf16.gmra.mxu0 %v3455
      %v3606 = vpop.f32.mrf.mxu0
      %v3607 = vadd.f32 %v3483, %v3606
      %v3608 = vpop.f32.mrf.mxu0
      %v3609 = vadd.f32 %v3483, %v3608
      %3610 = vmatmul.bf16.gmra.mxu0 %v3456
      %v3611 = vpop.f32.mrf.mxu0
      %v3612 = vadd.f32 %v3483, %v3611
      %v3613 = vpop.f32.mrf.mxu0
      %v3614 = vadd.f32 %v3483, %v3613
      %3615 = vmatmul.bf16.gmra.mxu0 %v3457
      %v3616 = vpop.f32.mrf.mxu0
      %v3617 = vadd.f32 %v3483, %v3616
      %v3618 = vpop.f32.mrf.mxu0
      %v3619 = vadd.f32 %v3483, %v3618
      %3620 = vmatmul.bf16.gmra.mxu0 %v3458
      %v3621 = vpop.f32.mrf.mxu0
      %v3622 = vadd.f32 %v3483, %v3621
      %v3623 = vpop.f32.mrf.mxu0
      %v3624 = vadd.f32 %v3483, %v3623
      %3625 = vmatmul.bf16.gmra.mxu0 %v3459
      %v3626 = vpop.f32.mrf.mxu0
      %v3627 = vadd.f32 %v3483, %v3626
      %v3628 = vpop.f32.mrf.mxu0
      %v3629 = vadd.f32 %v3483, %v3628
      %3630 = vmatmul.bf16.gmra.mxu0 %v3460
      %v3631 = vpop.f32.mrf.mxu0
      %v3632 = vadd.f32 %v3483, %v3631
      %v3633 = vpop.f32.mrf.mxu0
      %v3634 = vadd.f32 %v3483, %v3633
      %3635 = vmatmul.bf16.gmra.mxu0 %v3461
      %v3636 = vpop.f32.mrf.mxu0
      %v3637 = vadd.f32 %v3483, %v3636
      %v3638 = vpop.f32.mrf.mxu0
      %v3639 = vadd.f32 %v3483, %v3638
      %3640 = vmatmul.bf16.gmra.mxu0 %v3462
      %v3641 = vpop.f32.mrf.mxu0
      %v3642 = vadd.f32 %v3483, %v3641
      %v3643 = vpop.f32.mrf.mxu0
      %v3644 = vadd.f32 %v3483, %v3643
      %3645 = vmatmul.bf16.gmra.mxu0 %v3463
      %v3646 = vpop.f32.mrf.mxu0
      %v3647 = vadd.f32 %v3483, %v3646
      %v3648 = vpop.f32.mrf.mxu0
      %v3649 = vadd.f32 %v3483, %v3648
      %3650 = vmatmul.bf16.gmra.mxu0 %v3464
      %v3651 = vpop.f32.mrf.mxu0
      %v3652 = vadd.f32 %v3483, %v3651
      %v3653 = vpop.f32.mrf.mxu0
      %v3654 = vadd.f32 %v3483, %v3653
      %3655 = vdwg.mxu0
      %3656 = vmatpush.bf16.msra.mxu0 %v3550
      %3657 = vmatpush.bf16.msra.mxu0 %v3548
      %3658 = vmatpush.bf16.msra.mxu0 %v3546
      %3659 = vmatpush.bf16.msra.mxu0 %v3544
      %3660 = vmatpush.bf16.msra.mxu0 %v3542
      %3661 = vmatpush.bf16.msra.mxu0 %v3540
      %3662 = vmatpush.bf16.msra.mxu0 %v3538
      %3663 = vmatpush.bf16.msra.mxu0 %v3536
      %3664 = vmatmul.bf16.gmra.mxu0 %v3449
      %v3665 = vpop.f32.mrf.mxu0
      %v3666 = vadd.f32 %v3484, %v3665
      %v3667 = vpop.f32.mrf.mxu0
      %v3668 = vadd.f32 %v3484, %v3667
      %3669 = vmatmul.bf16.gmra.mxu0 %v3450
      %v3670 = vpop.f32.mrf.mxu0
      %v3671 = vadd.f32 %v3484, %v3670
      %v3672 = vpop.f32.mrf.mxu0
      %v3673 = vadd.f32 %v3484, %v3672
      %3674 = vmatmul.bf16.gmra.mxu0 %v3451
      %v3675 = vpop.f32.mrf.mxu0
      %v3676 = vadd.f32 %v3484, %v3675
      %v3677 = vpop.f32.mrf.mxu0
      %v3678 = vadd.f32 %v3484, %v3677
      %3679 = vmatmul.bf16.gmra.mxu0 %v3452
      %v3680 = vpop.f32.mrf.mxu0
      %v3681 = vadd.f32 %v3484, %v3680
      %v3682 = vpop.f32.mrf.mxu0
      %v3683 = vadd.f32 %v3484, %v3682
      %3684 = vmatmul.bf16.gmra.mxu0 %v3453
      %v3685 = vpop.f32.mrf.mxu0
      %v3686 = vadd.f32 %v3484, %v3685
      %v3687 = vpop.f32.mrf.mxu0
      %v3688 = vadd.f32 %v3484, %v3687
      %3689 = vmatmul.bf16.gmra.mxu0 %v3454
      %v3690 = vpop.f32.mrf.mxu0
      %v3691 = vadd.f32 %v3484, %v3690
      %v3692 = vpop.f32.mrf.mxu0
      %v3693 = vadd.f32 %v3484, %v3692
      %3694 = vmatmul.bf16.gmra.mxu0 %v3455
      %v3695 = vpop.f32.mrf.mxu0
      %v3696 = vadd.f32 %v3484, %v3695
      %v3697 = vpop.f32.mrf.mxu0
      %v3698 = vadd.f32 %v3484, %v3697
      %3699 = vmatmul.bf16.gmra.mxu0 %v3456
      %v3700 = vpop.f32.mrf.mxu0
      %v3701 = vadd.f32 %v3484, %v3700
      %v3702 = vpop.f32.mrf.mxu0
      %v3703 = vadd.f32 %v3484, %v3702
      %3704 = vmatmul.bf16.gmra.mxu0 %v3457
      %v3705 = vpop.f32.mrf.mxu0
      %v3706 = vadd.f32 %v3484, %v3705
      %v3707 = vpop.f32.mrf.mxu0
      %v3708 = vadd.f32 %v3484, %v3707
      %3709 = vmatmul.bf16.gmra.mxu0 %v3458
      %v3710 = vpop.f32.mrf.mxu0
      %v3711 = vadd.f32 %v3484, %v3710
      %v3712 = vpop.f32.mrf.mxu0
      %v3713 = vadd.f32 %v3484, %v3712
      %3714 = vmatmul.bf16.gmra.mxu0 %v3459
      %v3715 = vpop.f32.mrf.mxu0
      %v3716 = vadd.f32 %v3484, %v3715
      %v3717 = vpop.f32.mrf.mxu0
      %v3718 = vadd.f32 %v3484, %v3717
      %3719 = vmatmul.bf16.gmra.mxu0 %v3460
      %v3720 = vpop.f32.mrf.mxu0
      %v3721 = vadd.f32 %v3484, %v3720
      %v3722 = vpop.f32.mrf.mxu0
      %v3723 = vadd.f32 %v3484, %v3722
      %3724 = vmatmul.bf16.gmra.mxu0 %v3461
      %v3725 = vpop.f32.mrf.mxu0
      %v3726 = vadd.f32 %v3484, %v3725
      %v3727 = vpop.f32.mrf.mxu0
      %v3728 = vadd.f32 %v3484, %v3727
      %3729 = vmatmul.bf16.gmra.mxu0 %v3462
      %v3730 = vpop.f32.mrf.mxu0
      %v3731 = vadd.f32 %v3484, %v3730
      %v3732 = vpop.f32.mrf.mxu0
      %v3733 = vadd.f32 %v3484, %v3732
      %3734 = vmatmul.bf16.gmra.mxu0 %v3463
      %v3735 = vpop.f32.mrf.mxu0
      %v3736 = vadd.f32 %v3484, %v3735
      %v3737 = vpop.f32.mrf.mxu0
      %v3738 = vadd.f32 %v3484, %v3737
      %3739 = vmatmul.bf16.gmra.mxu0 %v3464
      %v3740 = vpop.f32.mrf.mxu0
      %v3741 = vadd.f32 %v3484, %v3740
      %v3742 = vpop.f32.mrf.mxu0
      %v3743 = vadd.f32 %v3484, %v3742
      %3744 = vdwg.mxu0
      %v3745 = vmax.f32 %v3577, 0.0
      %v3746 = vmax.f32 %v3666, 0.0
      %v3747 = vmax.f32 %v3579, 0.0
      %v3748 = vmax.f32 %v3668, 0.0
      %v3749 = vmax.f32 %v3582, 0.0
      %v3750 = vmax.f32 %v3671, 0.0
      %v3751 = vmax.f32 %v3584, 0.0
      %v3752 = vmax.f32 %v3673, 0.0
      %v3753 = vmax.f32 %v3587, 0.0
      %v3754 = vmax.f32 %v3676, 0.0
      %v3755 = vmax.f32 %v3589, 0.0
      %v3756 = vmax.f32 %v3678, 0.0
      %v3757 = vmax.f32 %v3592, 0.0
      %v3758 = vmax.f32 %v3681, 0.0
      %v3759 = vmax.f32 %v3594, 0.0
      %v3760 = vmax.f32 %v3683, 0.0
      %v3761 = vmax.f32 %v3597, 0.0
      %v3762 = vmax.f32 %v3686, 0.0
      %v3763 = vmax.f32 %v3599, 0.0
      %v3764 = vmax.f32 %v3688, 0.0
      %v3765 = vmax.f32 %v3602, 0.0
      %v3766 = vmax.f32 %v3691, 0.0
      %v3767 = vmax.f32 %v3604, 0.0
      %v3768 = vmax.f32 %v3693, 0.0
      %v3769 = vmax.f32 %v3607, 0.0
      %v3770 = vmax.f32 %v3696, 0.0
      %v3771 = vmax.f32 %v3609, 0.0
      %v3772 = vmax.f32 %v3698, 0.0
      %v3773 = vmax.f32 %v3612, 0.0
      %v3774 = vmax.f32 %v3701, 0.0
      %v3775 = vmax.f32 %v3614, 0.0
      %v3776 = vmax.f32 %v3703, 0.0
      %v3777 = vmax.f32 %v3617, 0.0
      %v3778 = vmax.f32 %v3706, 0.0
      %v3779 = vmax.f32 %v3619, 0.0
      %v3780 = vmax.f32 %v3708, 0.0
      %v3781 = vmax.f32 %v3622, 0.0
      %v3782 = vmax.f32 %v3711, 0.0
      %v3783 = vmax.f32 %v3624, 0.0
      %v3784 = vmax.f32 %v3713, 0.0
      %v3785 = vmax.f32 %v3627, 0.0
      %v3786 = vmax.f32 %v3716, 0.0
      %v3787 = vmax.f32 %v3629, 0.0
      %v3788 = vmax.f32 %v3718, 0.0
      %v3789 = vmax.f32 %v3632, 0.0
      %v3790 = vmax.f32 %v3721, 0.0
      %v3791 = vmax.f32 %v3634, 0.0
      %v3792 = vmax.f32 %v3723, 0.0
      %v3793 = vmax.f32 %v3637, 0.0
      %v3794 = vmax.f32 %v3726, 0.0
      %v3795 = vmax.f32 %v3639, 0.0
      %v3796 = vmax.f32 %v3728, 0.0
      %v3797 = vmax.f32 %v3642, 0.0
      %v3798 = vmax.f32 %v3731, 0.0
      %v3799 = vmax.f32 %v3644, 0.0
      %v3800 = vmax.f32 %v3733, 0.0
      %v3801 = vmax.f32 %v3647, 0.0
      %v3802 = vmax.f32 %v3736, 0.0
      %v3803 = vmax.f32 %v3649, 0.0
      %v3804 = vmax.f32 %v3738, 0.0
      %v3805 = vmax.f32 %v3652, 0.0
      %v3806 = vmax.f32 %v3741, 0.0
      %v3807 = vmax.f32 %v3654, 0.0
      %v3808 = vmax.f32 %v3743, 0.0
      %v3809 = vpack.c.bf16 %v3747, %v3745
      %v3810 = vpack.c.bf16 %v3748, %v3746
      %v3811 = vpack.c.bf16 %v3751, %v3749
      %v3812 = vpack.c.bf16 %v3752, %v3750
      %v3813 = vpack.c.bf16 %v3755, %v3753
      %v3814 = vpack.c.bf16 %v3756, %v3754
      %v3815 = vpack.c.bf16 %v3759, %v3757
      %v3816 = vpack.c.bf16 %v3760, %v3758
      %v3817 = vpack.c.bf16 %v3763, %v3761
      %v3818 = vpack.c.bf16 %v3764, %v3762
      %v3819 = vpack.c.bf16 %v3767, %v3765
      %v3820 = vpack.c.bf16 %v3768, %v3766
      %v3821 = vpack.c.bf16 %v3771, %v3769
      %v3822 = vpack.c.bf16 %v3772, %v3770
      %v3823 = vpack.c.bf16 %v3775, %v3773
      %v3824 = vpack.c.bf16 %v3776, %v3774
      %v3825 = vpack.c.bf16 %v3779, %v3777
      %v3826 = vpack.c.bf16 %v3780, %v3778
      %v3827 = vpack.c.bf16 %v3783, %v3781
      %v3828 = vpack.c.bf16 %v3784, %v3782
      %v3829 = vpack.c.bf16 %v3787, %v3785
      %v3830 = vpack.c.bf16 %v3788, %v3786
      %v3831 = vpack.c.bf16 %v3791, %v3789
      %v3832 = vpack.c.bf16 %v3792, %v3790
      %v3833 = vpack.c.bf16 %v3795, %v3793
      %v3834 = vpack.c.bf16 %v3796, %v3794
      %v3835 = vpack.c.bf16 %v3799, %v3797
      %v3836 = vpack.c.bf16 %v3800, %v3798
      %v3837 = vpack.c.bf16 %v3803, %v3801
      %v3838 = vpack.c.bf16 %v3804, %v3802
      %v3839 = vpack.c.bf16 %v3807, %v3805
      %v3840 = vpack.c.bf16 %v3808, %v3806
      %v3841 = vld [vmem:[%s683] sm:$0xf]
      %v3842 = vld [vmem:[%s683 + $0x4] sm:$0xf]
      %v3843 = vld [vmem:[%s683 + $0x8] sm:$0xf]
      %v3844 = vld [vmem:[%s683 + $0xc] sm:$0xf]
      %v3845 = vld [vmem:[%s683 + $0x10] sm:$0xf]
      %v3846 = vld [vmem:[%s683 + $0x14] sm:$0xf]
      %v3847 = vld [vmem:[%s683 + $0x18] sm:$0xf]
      %v3848 = vld [vmem:[%s683 + $0x1c] sm:$0xf]
      %v3849 = vld [vmem:[%s683 + $0x20] sm:$0xf]
      %v3850 = vld [vmem:[%s683 + $0x24] sm:$0xf]
      %v3851 = vld [vmem:[%s683 + $0x28] sm:$0xf]
      %v3852 = vld [vmem:[%s683 + $0x2c] sm:$0xf]
      %v3853 = vld [vmem:[%s683 + $0x30] sm:$0xf]
      %v3854 = vld [vmem:[%s683 + $0x34] sm:$0xf]
      %v3855 = vld [vmem:[%s683 + $0x38] sm:$0xf]
      %v3856 = vld [vmem:[%s683 + $0x3c] sm:$0xf]
      %v3857 = vld [vmem:[%s683 + $0x40] sm:$0xf]
      %v3858 = vld [vmem:[%s683 + $0x44] sm:$0xf]
      %v3859 = vld [vmem:[%s683 + $0x48] sm:$0xf]
      %v3860 = vld [vmem:[%s683 + $0x4c] sm:$0xf]
      %v3861 = vld [vmem:[%s683 + $0x50] sm:$0xf]
      %v3862 = vld [vmem:[%s683 + $0x54] sm:$0xf]
      %v3863 = vld [vmem:[%s683 + $0x58] sm:$0xf]
      %v3864 = vld [vmem:[%s683 + $0x5c] sm:$0xf]
      %v3865 = vld [vmem:[%s683 + $0x60] sm:$0xf]
      %v3866 = vld [vmem:[%s683 + $0x64] sm:$0xf]
      %v3867 = vld [vmem:[%s683 + $0x68] sm:$0xf]
      %v3868 = vld [vmem:[%s683 + $0x6c] sm:$0xf]
      %v3869 = vld [vmem:[%s683 + $0x70] sm:$0xf]
      %v3870 = vld [vmem:[%s683 + $0x74] sm:$0xf]
      %v3871 = vld [vmem:[%s683 + $0x78] sm:$0xf]
      %v3872 = vld [vmem:[%s683 + $0x7c] sm:$0xf]
      %v3873 = vld [vmem:[%s686] sm:$0x1]
      %v3875 = vperm.slane %v3873, 0
      %v3909 = vunpack.c.l.b16 %v3841
      %v3910 = vunpack.c.l.b16 %v3842
      %v3911 = vunpack.c.l.b16 %v3843
      %v3912 = vunpack.c.l.b16 %v3844
      %v3913 = vunpack.c.l.b16 %v3845
      %v3914 = vunpack.c.l.b16 %v3846
      %v3915 = vunpack.c.l.b16 %v3847
      %v3916 = vunpack.c.l.b16 %v3848
      %v3917 = vunpack.c.l.b16 %v3849
      %v3918 = vunpack.c.l.b16 %v3850
      %v3919 = vunpack.c.l.b16 %v3851
      %v3920 = vunpack.c.l.b16 %v3852
      %v3921 = vunpack.c.l.b16 %v3853
      %v3922 = vunpack.c.l.b16 %v3854
      %v3923 = vunpack.c.l.b16 %v3855
      %v3924 = vunpack.c.l.b16 %v3856
      %v3925 = vunpack.c.l.b16 %v3857
      %v3926 = vunpack.c.l.b16 %v3858
      %v3927 = vunpack.c.l.b16 %v3859
      %v3928 = vunpack.c.l.b16 %v3860
      %v3929 = vunpack.c.l.b16 %v3861
      %v3930 = vunpack.c.l.b16 %v3862
      %v3931 = vunpack.c.l.b16 %v3863
      %v3932 = vunpack.c.l.b16 %v3864
      %v3933 = vunpack.c.l.b16 %v3865
      %v3934 = vunpack.c.l.b16 %v3866
      %v3935 = vunpack.c.l.b16 %v3867
      %v3936 = vunpack.c.l.b16 %v3868
      %v3937 = vunpack.c.l.b16 %v3869
      %v3938 = vunpack.c.l.b16 %v3870
      %v3939 = vunpack.c.l.b16 %v3871
      %v3940 = vunpack.c.l.b16 %v3872
      %v3941 = vpack.c.b16 %v3910, %v3909
      %v3942 = vpack.c.b16 %v3912, %v3911
      %v3943 = vpack.c.b16 %v3914, %v3913
      %v3944 = vpack.c.b16 %v3916, %v3915
      %v3945 = vpack.c.b16 %v3918, %v3917
      %v3946 = vpack.c.b16 %v3920, %v3919
      %v3947 = vpack.c.b16 %v3922, %v3921
      %v3948 = vpack.c.b16 %v3924, %v3923
      %v3949 = vpack.c.b16 %v3926, %v3925
      %v3950 = vpack.c.b16 %v3928, %v3927
      %v3951 = vpack.c.b16 %v3930, %v3929
      %v3952 = vpack.c.b16 %v3932, %v3931
      %v3953 = vpack.c.b16 %v3934, %v3933
      %v3954 = vpack.c.b16 %v3936, %v3935
      %v3955 = vpack.c.b16 %v3938, %v3937
      %v3956 = vpack.c.b16 %v3940, %v3939
      %3973 = vmatpush.bf16.msra.mxu0 %v3948
      %3974 = vmatpush.bf16.msra.mxu0 %v3947
      %3975 = vmatpush.bf16.msra.mxu0 %v3946
      %3976 = vmatpush.bf16.msra.mxu0 %v3945
      %3977 = vmatpush.bf16.msra.mxu0 %v3944
      %3978 = vmatpush.bf16.msra.mxu0 %v3943
      %3979 = vmatpush.bf16.msra.mxu0 %v3942
      %3980 = vmatpush.bf16.msra.mxu0 %v3941
      %3981 = vmatmul.bf16.gmra.mxu0 %v3809
      %v3982 = vpop.f32.mrf.mxu0
      %v3983 = vadd.f32 %v3875, %v3982
      %v3984 = vpop.f32.mrf.mxu0
      %v3985 = vadd.f32 %v3875, %v3984
      %3986 = vmatmul.bf16.gmra.mxu0 %v3811
      %v3987 = vpop.f32.mrf.mxu0
      %v3988 = vadd.f32 %v3875, %v3987
      %v3989 = vpop.f32.mrf.mxu0
      %v3990 = vadd.f32 %v3875, %v3989
      %3991 = vmatmul.bf16.gmra.mxu0 %v3813
      %v3992 = vpop.f32.mrf.mxu0
      %v3993 = vadd.f32 %v3875, %v3992
      %v3994 = vpop.f32.mrf.mxu0
      %v3995 = vadd.f32 %v3875, %v3994
      %3996 = vmatmul.bf16.gmra.mxu0 %v3815
      %v3997 = vpop.f32.mrf.mxu0
      %v3998 = vadd.f32 %v3875, %v3997
      %v3999 = vpop.f32.mrf.mxu0
      %v4000 = vadd.f32 %v3875, %v3999
      %4001 = vmatmul.bf16.gmra.mxu0 %v3817
      %v4002 = vpop.f32.mrf.mxu0
      %v4003 = vadd.f32 %v3875, %v4002
      %v4004 = vpop.f32.mrf.mxu0
      %v4005 = vadd.f32 %v3875, %v4004
      %4006 = vmatmul.bf16.gmra.mxu0 %v3819
      %v4007 = vpop.f32.mrf.mxu0
      %v4008 = vadd.f32 %v3875, %v4007
      %v4009 = vpop.f32.mrf.mxu0
      %v4010 = vadd.f32 %v3875, %v4009
      %4011 = vmatmul.bf16.gmra.mxu0 %v3821
      %v4012 = vpop.f32.mrf.mxu0
      %v4013 = vadd.f32 %v3875, %v4012
      %v4014 = vpop.f32.mrf.mxu0
      %v4015 = vadd.f32 %v3875, %v4014
      %4016 = vmatmul.bf16.gmra.mxu0 %v3823
      %v4017 = vpop.f32.mrf.mxu0
      %v4018 = vadd.f32 %v3875, %v4017
      %v4019 = vpop.f32.mrf.mxu0
      %v4020 = vadd.f32 %v3875, %v4019
      %4021 = vmatmul.bf16.gmra.mxu0 %v3825
      %v4022 = vpop.f32.mrf.mxu0
      %v4023 = vadd.f32 %v3875, %v4022
      %v4024 = vpop.f32.mrf.mxu0
      %v4025 = vadd.f32 %v3875, %v4024
      %4026 = vmatmul.bf16.gmra.mxu0 %v3827
      %v4027 = vpop.f32.mrf.mxu0
      %v4028 = vadd.f32 %v3875, %v4027
      %v4029 = vpop.f32.mrf.mxu0
      %v4030 = vadd.f32 %v3875, %v4029
      %4031 = vmatmul.bf16.gmra.mxu0 %v3829
      %v4032 = vpop.f32.mrf.mxu0
      %v4033 = vadd.f32 %v3875, %v4032
      %v4034 = vpop.f32.mrf.mxu0
      %v4035 = vadd.f32 %v3875, %v4034
      %4036 = vmatmul.bf16.gmra.mxu0 %v3831
      %v4037 = vpop.f32.mrf.mxu0
      %v4038 = vadd.f32 %v3875, %v4037
      %v4039 = vpop.f32.mrf.mxu0
      %v4040 = vadd.f32 %v3875, %v4039
      %4041 = vmatmul.bf16.gmra.mxu0 %v3833
      %v4042 = vpop.f32.mrf.mxu0
      %v4043 = vadd.f32 %v3875, %v4042
      %v4044 = vpop.f32.mrf.mxu0
      %v4045 = vadd.f32 %v3875, %v4044
      %4046 = vmatmul.bf16.gmra.mxu0 %v3835
      %v4047 = vpop.f32.mrf.mxu0
      %v4048 = vadd.f32 %v3875, %v4047
      %v4049 = vpop.f32.mrf.mxu0
      %v4050 = vadd.f32 %v3875, %v4049
      %4051 = vmatmul.bf16.gmra.mxu0 %v3837
      %v4052 = vpop.f32.mrf.mxu0
      %v4053 = vadd.f32 %v3875, %v4052
      %v4054 = vpop.f32.mrf.mxu0
      %v4055 = vadd.f32 %v3875, %v4054
      %4056 = vmatmul.bf16.gmra.mxu0 %v3839
      %v4057 = vpop.f32.mrf.mxu0
      %v4058 = vadd.f32 %v3875, %v4057
      %v4059 = vpop.f32.mrf.mxu0
      %v4060 = vadd.f32 %v3875, %v4059
      %4061 = vdwg.mxu0
      %4062 = vmatpush.bf16.msra.mxu0 %v3956
      %4063 = vmatpush.bf16.msra.mxu0 %v3955
      %4064 = vmatpush.bf16.msra.mxu0 %v3954
      %4065 = vmatpush.bf16.msra.mxu0 %v3953
      %4066 = vmatpush.bf16.msra.mxu0 %v3952
      %4067 = vmatpush.bf16.msra.mxu0 %v3951
      %4068 = vmatpush.bf16.msra.mxu0 %v3950
      %4069 = vmatpush.bf16.msra.mxu0 %v3949
      %4070 = vmatmul.bf16.gmra.mxu0 %v3810
      %v4071 = vpop.f32.mrf.mxu0
      %v4072 = vadd.f32 %v3983, %v4071
      %v4073 = vpop.f32.mrf.mxu0
      %v4074 = vadd.f32 %v3985, %v4073
      %4075 = vmatmul.bf16.gmra.mxu0 %v3812
      %v4076 = vpop.f32.mrf.mxu0
      %v4077 = vadd.f32 %v3988, %v4076
      %v4078 = vpop.f32.mrf.mxu0
      %v4079 = vadd.f32 %v3990, %v4078
      %4080 = vmatmul.bf16.gmra.mxu0 %v3814
      %v4081 = vpop.f32.mrf.mxu0
      %v4082 = vadd.f32 %v3993, %v4081
      %v4083 = vpop.f32.mrf.mxu0
      %v4084 = vadd.f32 %v3995, %v4083
      %4085 = vmatmul.bf16.gmra.mxu0 %v3816
      %v4086 = vpop.f32.mrf.mxu0
      %v4087 = vadd.f32 %v3998, %v4086
      %v4088 = vpop.f32.mrf.mxu0
      %v4089 = vadd.f32 %v4000, %v4088
      %4090 = vmatmul.bf16.gmra.mxu0 %v3818
      %v4091 = vpop.f32.mrf.mxu0
      %v4092 = vadd.f32 %v4003, %v4091
      %v4093 = vpop.f32.mrf.mxu0
      %v4094 = vadd.f32 %v4005, %v4093
      %4095 = vmatmul.bf16.gmra.mxu0 %v3820
      %v4096 = vpop.f32.mrf.mxu0
      %v4097 = vadd.f32 %v4008, %v4096
      %v4098 = vpop.f32.mrf.mxu0
      %v4099 = vadd.f32 %v4010, %v4098
      %4100 = vmatmul.bf16.gmra.mxu0 %v3822
      %v4101 = vpop.f32.mrf.mxu0
      %v4102 = vadd.f32 %v4013, %v4101
      %v4103 = vpop.f32.mrf.mxu0
      %v4104 = vadd.f32 %v4015, %v4103
      %4105 = vmatmul.bf16.gmra.mxu0 %v3824
      %v4106 = vpop.f32.mrf.mxu0
      %v4107 = vadd.f32 %v4018, %v4106
      %v4108 = vpop.f32.mrf.mxu0
      %v4109 = vadd.f32 %v4020, %v4108
      %4110 = vmatmul.bf16.gmra.mxu0 %v3826
      %v4111 = vpop.f32.mrf.mxu0
      %v4112 = vadd.f32 %v4023, %v4111
      %v4113 = vpop.f32.mrf.mxu0
      %v4114 = vadd.f32 %v4025, %v4113
      %4115 = vmatmul.bf16.gmra.mxu0 %v3828
      %v4116 = vpop.f32.mrf.mxu0
      %v4117 = vadd.f32 %v4028, %v4116
      %v4118 = vpop.f32.mrf.mxu0
      %v4119 = vadd.f32 %v4030, %v4118
      %4120 = vmatmul.bf16.gmra.mxu0 %v3830
      %v4121 = vpop.f32.mrf.mxu0
      %v4122 = vadd.f32 %v4033, %v4121
      %v4123 = vpop.f32.mrf.mxu0
      %v4124 = vadd.f32 %v4035, %v4123
      %4125 = vmatmul.bf16.gmra.mxu0 %v3832
      %v4126 = vpop.f32.mrf.mxu0
      %v4127 = vadd.f32 %v4038, %v4126
      %v4128 = vpop.f32.mrf.mxu0
      %v4129 = vadd.f32 %v4040, %v4128
      %4130 = vmatmul.bf16.gmra.mxu0 %v3834
      %v4131 = vpop.f32.mrf.mxu0
      %v4132 = vadd.f32 %v4043, %v4131
      %v4133 = vpop.f32.mrf.mxu0
      %v4134 = vadd.f32 %v4045, %v4133
      %4135 = vmatmul.bf16.gmra.mxu0 %v3836
      %v4136 = vpop.f32.mrf.mxu0
      %v4137 = vadd.f32 %v4048, %v4136
      %v4138 = vpop.f32.mrf.mxu0
      %v4139 = vadd.f32 %v4050, %v4138
      %4140 = vmatmul.bf16.gmra.mxu0 %v3838
      %v4141 = vpop.f32.mrf.mxu0
      %v4142 = vadd.f32 %v4053, %v4141
      %v4143 = vpop.f32.mrf.mxu0
      %v4144 = vadd.f32 %v4055, %v4143
      %4145 = vmatmul.bf16.gmra.mxu0 %v3840
      %v4146 = vpop.f32.mrf.mxu0
      %v4147 = vadd.f32 %v4058, %v4146
      %v4148 = vpop.f32.mrf.mxu0
      %v4149 = vadd.f32 %v4060, %v4148
      %4150 = vdwg.mxu0
      %v4151 = vmax.f32 %v4072, 0.0
      %v4152 = vmax.f32 %v4074, 0.0
      %v4153 = vmax.f32 %v4077, 0.0
      %v4154 = vmax.f32 %v4079, 0.0
      %v4155 = vmax.f32 %v4082, 0.0
      %v4156 = vmax.f32 %v4084, 0.0
      %v4157 = vmax.f32 %v4087, 0.0
      %v4158 = vmax.f32 %v4089, 0.0
      %v4159 = vmax.f32 %v4092, 0.0
      %v4160 = vmax.f32 %v4094, 0.0
      %v4161 = vmax.f32 %v4097, 0.0
      %v4162 = vmax.f32 %v4099, 0.0
      %v4163 = vmax.f32 %v4102, 0.0
      %v4164 = vmax.f32 %v4104, 0.0
      %v4165 = vmax.f32 %v4107, 0.0
      %v4166 = vmax.f32 %v4109, 0.0
      %v4167 = vmax.f32 %v4112, 0.0
      %v4168 = vmax.f32 %v4114, 0.0
      %v4169 = vmax.f32 %v4117, 0.0
      %v4170 = vmax.f32 %v4119, 0.0
      %v4171 = vmax.f32 %v4122, 0.0
      %v4172 = vmax.f32 %v4124, 0.0
      %v4173 = vmax.f32 %v4127, 0.0
      %v4174 = vmax.f32 %v4129, 0.0
      %v4175 = vmax.f32 %v4132, 0.0
      %v4176 = vmax.f32 %v4134, 0.0
      %v4177 = vmax.f32 %v4137, 0.0
      %v4178 = vmax.f32 %v4139, 0.0
      %v4179 = vmax.f32 %v4142, 0.0
      %v4180 = vmax.f32 %v4144, 0.0
      %v4181 = vmax.f32 %v4147, 0.0
      %v4182 = vmax.f32 %v4149, 0.0
      %4183 = vst [vmem:[%s696] sm:$0xff] %v4151
      %4184 = vst [vmem:[%s696 + $0x8] sm:$0xff] %v4152
      %4185 = vst [vmem:[%s696 + $0x10] sm:$0xff] %v4153
      %4186 = vst [vmem:[%s696 + $0x18] sm:$0xff] %v4154
      %4187 = vst [vmem:[%s696 + $0x20] sm:$0xff] %v4155
      %4188 = vst [vmem:[%s696 + $0x28] sm:$0xff] %v4156
      %4189 = vst [vmem:[%s696 + $0x30] sm:$0xff] %v4157
      %4190 = vst [vmem:[%s696 + $0x38] sm:$0xff] %v4158
      %4191 = vst [vmem:[%s696 + $0x40] sm:$0xff] %v4159
      %4192 = vst [vmem:[%s696 + $0x48] sm:$0xff] %v4160
      %4193 = vst [vmem:[%s696 + $0x50] sm:$0xff] %v4161
      %4194 = vst [vmem:[%s696 + $0x58] sm:$0xff] %v4162
      %4195 = vst [vmem:[%s696 + $0x60] sm:$0xff] %v4163
      %4196 = vst [vmem:[%s696 + $0x68] sm:$0xff] %v4164
      %4197 = vst [vmem:[%s696 + $0x70] sm:$0xff] %v4165
      %4198 = vst [vmem:[%s696 + $0x78] sm:$0xff] %v4166
      %4199 = vst [vmem:[%s696 + $0x80] sm:$0xff] %v4167
      %4200 = vst [vmem:[%s696 + $0x88] sm:$0xff] %v4168
      %4201 = vst [vmem:[%s696 + $0x90] sm:$0xff] %v4169
      %4202 = vst [vmem:[%s696 + $0x98] sm:$0xff] %v4170
      %4203 = vst [vmem:[%s696 + $0xa0] sm:$0xff] %v4171
      %4204 = vst [vmem:[%s696 + $0xa8] sm:$0xff] %v4172
      %4205 = vst [vmem:[%s696 + $0xb0] sm:$0xff] %v4173
      %4206 = vst [vmem:[%s696 + $0xb8] sm:$0xff] %v4174
      %4207 = vst [vmem:[%s696 + $0xc0] sm:$0xff] %v4175
      %4208 = vst [vmem:[%s696 + $0xc8] sm:$0xff] %v4176
      %4209 = vst [vmem:[%s696 + $0xd0] sm:$0xff] %v4177
      %4210 = vst [vmem:[%s696 + $0xd8] sm:$0xff] %v4178
      %4211 = vst [vmem:[%s696 + $0xe0] sm:$0xff] %v4179
      %4212 = vst [vmem:[%s696 + $0xe8] sm:$0xff] %v4180
      %4213 = vst [vmem:[%s696 + $0xf0] sm:$0xff] %v4181
      %4214 = vst [vmem:[%s696 + $0xf8] sm:$0xff] %v4182
      %p4215 = scmp.lt.s32.totalorder %s26, 1
      %s4216 = scalar_select %p4215, %s26, 1
      %s4217 = smul.addr %s4216, 32
      %s4218 = smul.addr %s4217, 8
      %s4219 = scalar_lea.vmem %s13, %s4218
      %p4220 = scmp.lt.s32.totalorder %s26, 1
      %s4221 = scalar_select %p4220, %s26, 1
      %s4222 = smul.addr %s4221, 32
      %s4223 = smul.addr %s4222, 8
      %s4224 = scalar_lea.vmem %s14, %s4223
      // Predicated region
      $region73: #{msne_forward.1} parent=71 // pred_check
        %p4225 = pneg %p382
      $region74: #{msne_forward.1} parent=71 // pred_check_branch
        %4227 = sbr.rel (%p4225) target = $region76
      $region75: #{msne_forward.1} parent=71 // pred_region
        _
      $region76: #{msne_forward.1} parent=71 // pred_fallthru
        _
      // Predicated region
      $region77: #{msne_forward.1} parent=71 // pred_check
        %p4228 = pneg %p408
      $region78: #{msne_forward.1} parent=71 // pred_check_branch
        %4230 = sbr.rel (%p4228) target = $region80
      $region79: #{msne_forward.1} parent=71 // pred_region
        _
      $region80: #{msne_forward.1} parent=71 // pred_fallthru
        _
    $region72: #{msne_forward.1} parent=5 // pred_fallthru
      _
    %p4231 = scmp.le.s32.totalorder 2, %s21
    // Predicated region
    $region81: #{msne_forward.1} parent=5 // pred_check
      %p4232 = pneg %p4231
    $region82: #{msne_forward.1} parent=5 // pred_check_branch
      %4234 = sbr.rel (%p4232) target = $region84
    $region83: #{msne_forward.1} parent=5 // pred_region
      %s4235 = ssub.s32 %s21, 2
      // Predicated region
      $region85: #{msne_forward.1} parent=83 // pred_check
        %p4236 = pneg %p388
      $region86: #{msne_forward.1} parent=83 // pred_check_branch
        %4238 = sbr.rel (%p4236) target = $region88
      $region87: #{msne_forward.1} parent=83 // pred_region
        %p4239 = scmp.lt.s32.totalorder %s27, 1
        %s4240 = scalar_select %p4239, %s27, 1
        %s4241 = smul.addr %s4240, 32
        %s4242 = smul.addr %s4241, 8
        %s4243 = scalar_lea.vmem %s13, %s4242
      $region88: #{msne_forward.1} parent=83 // pred_fallthru
        _
      // Predicated region
      $region89: #{msne_forward.1} parent=83 // pred_check
        %p4244 = pneg %p414
      $region90: #{msne_forward.1} parent=83 // pred_check_branch
        %4246 = sbr.rel (%p4244) target = $region92
      $region91: #{msne_forward.1} parent=83 // pred_region
        %p4247 = scmp.lt.s32.totalorder %s27, 1
        %s4248 = scalar_select %p4247, %s27, 1
        %s4249 = smul.addr %s4248, 32
        %s4250 = smul.addr %s4249, 8
        %s4251 = scalar_lea.vmem %s14, %s4250
      $region92: #{msne_forward.1} parent=83 // pred_fallthru
        _
    $region84: #{msne_forward.1} parent=5 // pred_fallthru
      _
  $region6: #{msne_forward.1} parent=0 // loop_footer
    %s25 = sadd.s32 1, %s21
  $region7: #{msne_forward.1} parent=0 // loop_footer_branch
    %20 = sbr.rel target = $region3
  $region8: #{msne_forward.1} parent=0 // loop_exit
    _

</llo_original>
